<compile_context>
chip_gen: v6e
topology: v6e:2x2x1
jax: 0.10.0
libtpu: 0.0.40
codegen_flags: <defaults>
</compile_context>

<pallas_src>
import jax
import jax.numpy as jnp
from jax.experimental import pallas as pl
from jax.experimental.pallas import tpu as pltpu

BN_EPS = 1e-5


# ----------------------------------------------------------------------------
# Kernel: 6 fused matmul + bias (+ ReLU) stages, all tensors VMEM-resident.
# ----------------------------------------------------------------------------
def dqn_kernel(
    x_ref,
    w1_ref, b1_ref, w2_ref, b2_ref, w3_ref, b3_ref,
    w4_ref, b4_ref, w5_ref, b5_ref, w6_ref, b6_ref,
    out_ref,
):
    # Activations feed the MXU in bf16; accumulation, bias add and ReLU in fp32.
    h = x_ref[...].astype(jnp.bfloat16)
    hidden = (
        (w1_ref, b1_ref), (w2_ref, b2_ref), (w3_ref, b3_ref),
        (w4_ref, b4_ref), (w5_ref, b5_ref),
    )
    for w_ref, b_ref in hidden:  # fcN -> (folded bnN) -> relu ; dropout = identity
        y = jnp.dot(h, w_ref[...], preferred_element_type=jnp.float32) + b_ref[...]
        h = jnp.maximum(y, 0.0).astype(jnp.bfloat16)
    # fc6: no BN / ReLU
    out_ref[...] = (
        jnp.dot(h, w6_ref[...], preferred_element_type=jnp.float32) + b6_ref[...]
    ).astype(out_ref.dtype)


# ----------------------------------------------------------------------------
# Parameter construction (mirrors nn.Linear / nn.BatchNorm1d shapes).
# ----------------------------------------------------------------------------
def init_dqn_params(key, input_dim, output_dim):
    dims = [input_dim, 256, 512, 1000, 512, 256, output_dim]
    params = []
    for i in range(6):
        fan_in, fan_out = dims[i], dims[i + 1]
        key, kw, kb = jax.random.split(key, 3)
        bound = 1.0 / jnp.sqrt(fan_in)
        layer = {
            # stored pre-transposed: (in_features, out_features)
            "w": jax.random.uniform(kw, (fan_in, fan_out), jnp.float32, -bound, bound),
            "b": jax.random.uniform(kb, (fan_out,), jnp.float32, -bound, bound),
        }
        if i < 5:  # bn1..bn5
            key, kg, kbb, km, kv = jax.random.split(key, 5)
            layer["gamma"] = jax.random.uniform(kg, (fan_out,), jnp.float32, 0.5, 1.5)
            layer["beta"] = jax.random.uniform(kbb, (fan_out,), jnp.float32, -0.5, 0.5)
            layer["rmean"] = jax.random.uniform(km, (fan_out,), jnp.float32, -0.5, 0.5)
            layer["rvar"] = jax.random.uniform(kv, (fan_out,), jnp.float32, 0.5, 1.5)
        params.append(layer)
    return params


def fold_and_pack(raw_params, lane_multiple=128):
    """Fold eval-mode BN into the Linear, pad hidden widths to 128 lanes, cast
    weights to bf16. Returns [w1, b1, ..., w6, b6] ready for the kernel."""
    packed = []
    n = len(raw_params)
    pad_from_prev = 0
    for i, layer in enumerate(raw_params):
        w = layer["w"].astype(jnp.float32)
        b = layer["b"].astype(jnp.float32)
        if "gamma" in layer:  # fold BatchNorm (running stats) into W, b
            scale = layer["gamma"] * jax.lax.rsqrt(layer["rvar"] + BN_EPS)
            w = w * scale[None, :]
            b = (b - layer["rmean"]) * scale + layer["beta"]
        if pad_from_prev:  # zero rows matching previous layer's padded columns
            w = jnp.pad(w, ((0, pad_from_prev), (0, 0)))
        pad_cols = 0
        if i < n - 1:  # pad hidden widths (1000 -> 1024); keep final output width
            pad_cols = (-w.shape[1]) % lane_multiple
        if pad_cols:
            w = jnp.pad(w, ((0, 0), (0, pad_cols)))
            b = jnp.pad(b, ((0, pad_cols),))
        pad_from_prev = pad_cols
        packed.append(w.astype(jnp.bfloat16))
        packed.append(b.reshape(1, -1).astype(jnp.float32))
    return packed


# ----------------------------------------------------------------------------
# pallas_call wrapper.
# ----------------------------------------------------------------------------
def dqn_forward(x, packed_params):
    batch, in_dim = x.shape
    out_dim = packed_params[-1].shape[-1]

    # Whole batch in one block when small; 128-row blocks (parallel grid ->
    # megacore / DMA pipelining) when large.
    if batch <= 128:
        tb = batch
    else:
        assert batch % 128 == 0, "batch > 128 must be a multiple of 128"
        tb = 128
    grid = (batch // tb,)

    x_spec = pl.BlockSpec((tb, in_dim), lambda i: (i, 0))
    out_spec = pl.BlockSpec((tb, out_dim), lambda i: (i, 0))
    param_specs = [pl.BlockSpec(p.shape, lambda i: (0, 0)) for p in packed_params]

    return pl.pallas_call(
        dqn_kernel,
        out_shape=jax.ShapeDtypeStruct((batch, out_dim), jnp.float32),
        grid=grid,
        in_specs=[x_spec] + param_specs,
        out_specs=out_spec,
        compiler_params=pltpu.CompilerParams(
            dimension_semantics=("parallel",),
            vmem_limit_bytes=32 << 20,  # fits v7x's 64 MiB physical VMEM
        ),
    )(x, *packed_params)


# ----------------------------------------------------------------------------
# References.
# ----------------------------------------------------------------------------
def dqn_reference_fp32(x, raw_params):
    """Original module semantics (eval mode), all fp32, BN not folded."""
    h = x.astype(jnp.float32)
    for layer in raw_params:
        h = h @ layer["w"] + layer["b"]
        if "gamma" in layer:
            h = (h - layer["rmean"]) * jax.lax.rsqrt(layer["rvar"] + BN_EPS)
            h = h * layer["gamma"] + layer["beta"]
            h = jnp.maximum(h, 0.0)
    return h


def dqn_reference_packed(x, packed_params):
    """Mirror of the kernel numerics (bf16 weights/activations, fp32 accum)."""
    h = x.astype(jnp.bfloat16)
    n_layers = len(packed_params) // 2
    for i in range(n_layers):
        w, b = packed_params[2 * i], packed_params[2 * i + 1]
        y = jnp.dot(h, w, preferred_element_type=jnp.float32) + b
        h = jnp.maximum(y, 0.0).astype(jnp.bfloat16) if i < n_layers - 1 else y
    return h


if __name__ == "__main__":
    input_dim, output_dim, batch = 64, 8, 8

    key = jax.random.PRNGKey(0)
    key, kx = jax.random.split(key)
    x = jax.random.normal(kx, (batch, input_dim), jnp.float32)

    raw_params = init_dqn_params(key, input_dim, output_dim)
    packed_params = fold_and_pack(raw_params)

    out = jax.block_until_ready(dqn_forward(x, packed_params))
    assert out.shape == (batch, output_dim)

    # 1) exact-numerics reference (same bf16 weights / fp32 accumulate)
    ref_same = dqn_reference_packed(x, packed_params)
    assert jnp.allclose(out, ref_same, atol=1e-2, rtol=1e-2), "mismatch vs packed reference"

    # 2) original fp32 module semantics (loose tolerance for bf16 weights)
    ref_fp32 = dqn_reference_fp32(x, raw_params)
    assert jnp.allclose(out, ref_fp32, atol=0.1, rtol=0.1), "mismatch vs fp32 reference"

    print("KERNEL_OK")
</pallas_src>

<mosaic_0001>
module attributes {stable_mosaic.version = 11 : i64} {
  func.func @dqn_kernel(%arg0: i32, %arg1: memref<8x64xf32, #tpu.memory_space<vmem>>, %arg2: memref<64x256xbf16, #tpu.memory_space<vmem>>, %arg3: memref<1x256xf32, #tpu.memory_space<vmem>>, %arg4: memref<256x512xbf16, #tpu.memory_space<vmem>>, %arg5: memref<1x512xf32, #tpu.memory_space<vmem>>, %arg6: memref<512x1024xbf16, #tpu.memory_space<vmem>>, %arg7: memref<1x1024xf32, #tpu.memory_space<vmem>>, %arg8: memref<1024x512xbf16, #tpu.memory_space<vmem>>, %arg9: memref<1x512xf32, #tpu.memory_space<vmem>>, %arg10: memref<512x256xbf16, #tpu.memory_space<vmem>>, %arg11: memref<1x256xf32, #tpu.memory_space<vmem>>, %arg12: memref<256x8xbf16, #tpu.memory_space<vmem>>, %arg13: memref<1x8xf32, #tpu.memory_space<vmem>>, %arg14: memref<8x8xf32, #tpu.memory_space<vmem>>) attributes {dimension_semantics = [#tpu.dimension_semantics<parallel>], iteration_bounds = array<i64: 1>, scalar_prefetch = 0 : i64, scratch_operands = 0 : i64, tpu.core_type = #tpu.core_type<tc>, window_params = [{transform_indices = @transform_0, window_bounds = array<i64: 8, 64>}, {pipeline_mode = #tpu.pipeline_mode<synchronous>, transform_indices = @transform_1, window_bounds = array<i64: 64, 256>}, {pipeline_mode = #tpu.pipeline_mode<synchronous>, transform_indices = @transform_2, window_bounds = array<i64: 1, 256>}, {pipeline_mode = #tpu.pipeline_mode<synchronous>, transform_indices = @transform_3, window_bounds = array<i64: 256, 512>}, {pipeline_mode = #tpu.pipeline_mode<synchronous>, transform_indices = @transform_4, window_bounds = array<i64: 1, 512>}, {pipeline_mode = #tpu.pipeline_mode<synchronous>, transform_indices = @transform_5, window_bounds = array<i64: 512, 1024>}, {pipeline_mode = #tpu.pipeline_mode<synchronous>, transform_indices = @transform_6, window_bounds = array<i64: 1, 1024>}, {pipeline_mode = #tpu.pipeline_mode<synchronous>, transform_indices = @transform_7, window_bounds = array<i64: 1024, 512>}, {pipeline_mode = #tpu.pipeline_mode<synchronous>, transform_indices = @transform_8, window_bounds = array<i64: 1, 512>}, {pipeline_mode = #tpu.pipeline_mode<synchronous>, transform_indices = @transform_9, window_bounds = array<i64: 512, 256>}, {pipeline_mode = #tpu.pipeline_mode<synchronous>, transform_indices = @transform_10, window_bounds = array<i64: 1, 256>}, {pipeline_mode = #tpu.pipeline_mode<synchronous>, transform_indices = @transform_11, window_bounds = array<i64: 256, 8>}, {pipeline_mode = #tpu.pipeline_mode<synchronous>, transform_indices = @transform_12, window_bounds = array<i64: 1, 8>}, {transform_indices = @transform_13, window_bounds = array<i64: 8, 8>}]} {
    %c0 = arith.constant 0 : index
    %c0_0 = arith.constant 0 : index
    %0 = vector.load %arg1[%c0, %c0_0] : memref<8x64xf32, #tpu.memory_space<vmem>>, vector<8x64xf32>
    %1 = arith.truncf %0 : vector<8x64xf32> to vector<8x64xbf16>
    %c0_1 = arith.constant 0 : index
    %c0_2 = arith.constant 0 : index
    %2 = vector.load %arg2[%c0_1, %c0_2] : memref<64x256xbf16, #tpu.memory_space<vmem>>, vector<64x256xbf16>
    %cst = arith.constant dense<0.000000e+00> : vector<8x256xf32>
    %3 = tpu.matmul %1, %2, %cst {dimension_numbers = #tpu.dot_dimension_numbers<[1], [0], [0], [1], [0, 0, 1, 1], [], []>} : vector<8x64xbf16>, vector<64x256xbf16>, vector<8x256xf32> -> vector<8x256xf32>
    %c0_3 = arith.constant 0 : index
    %c0_4 = arith.constant 0 : index
    %4 = vector.load %arg3[%c0_3, %c0_4] : memref<1x256xf32, #tpu.memory_space<vmem>>, vector<1x256xf32>
    %5 = vector.broadcast %4 : vector<1x256xf32> to vector<8x256xf32>
    %6 = arith.addf %3, %5 : vector<8x256xf32>
    %cst_5 = arith.constant 0.000000e+00 : f32
    %7 = vector.broadcast %cst_5 : f32 to vector<8x256xf32>
    %8 = arith.maximumf %6, %7 : vector<8x256xf32>
    %9 = arith.truncf %8 : vector<8x256xf32> to vector<8x256xbf16>
    %c0_6 = arith.constant 0 : index
    %c0_7 = arith.constant 0 : index
    %10 = vector.load %arg4[%c0_6, %c0_7] : memref<256x512xbf16, #tpu.memory_space<vmem>>, vector<256x512xbf16>
    %cst_8 = arith.constant dense<0.000000e+00> : vector<8x512xf32>
    %11 = tpu.matmul %9, %10, %cst_8 {dimension_numbers = #tpu.dot_dimension_numbers<[1], [0], [0], [1], [0, 0, 1, 1], [], []>} : vector<8x256xbf16>, vector<256x512xbf16>, vector<8x512xf32> -> vector<8x512xf32>
    %c0_9 = arith.constant 0 : index
    %c0_10 = arith.constant 0 : index
    %12 = vector.load %arg5[%c0_9, %c0_10] : memref<1x512xf32, #tpu.memory_space<vmem>>, vector<1x512xf32>
    %13 = vector.broadcast %12 : vector<1x512xf32> to vector<8x512xf32>
    %14 = arith.addf %11, %13 : vector<8x512xf32>
    %cst_11 = arith.constant 0.000000e+00 : f32
    %15 = vector.broadcast %cst_11 : f32 to vector<8x512xf32>
    %16 = arith.maximumf %14, %15 : vector<8x512xf32>
    %17 = arith.truncf %16 : vector<8x512xf32> to vector<8x512xbf16>
    %c0_12 = arith.constant 0 : index
    %c0_13 = arith.constant 0 : index
    %18 = vector.load %arg6[%c0_12, %c0_13] : memref<512x1024xbf16, #tpu.memory_space<vmem>>, vector<512x1024xbf16>
    %cst_14 = arith.constant dense<0.000000e+00> : vector<8x1024xf32>
    %19 = tpu.matmul %17, %18, %cst_14 {dimension_numbers = #tpu.dot_dimension_numbers<[1], [0], [0], [1], [0, 0, 1, 1], [], []>} : vector<8x512xbf16>, vector<512x1024xbf16>, vector<8x1024xf32> -> vector<8x1024xf32>
    %c0_15 = arith.constant 0 : index
    %c0_16 = arith.constant 0 : index
    %20 = vector.load %arg7[%c0_15, %c0_16] : memref<1x1024xf32, #tpu.memory_space<vmem>>, vector<1x1024xf32>
    %21 = vector.broadcast %20 : vector<1x1024xf32> to vector<8x1024xf32>
    %22 = arith.addf %19, %21 : vector<8x1024xf32>
    %cst_17 = arith.constant 0.000000e+00 : f32
    %23 = vector.broadcast %cst_17 : f32 to vector<8x1024xf32>
    %24 = arith.maximumf %22, %23 : vector<8x1024xf32>
    %25 = arith.truncf %24 : vector<8x1024xf32> to vector<8x1024xbf16>
    %c0_18 = arith.constant 0 : index
    %c0_19 = arith.constant 0 : index
    %26 = vector.load %arg8[%c0_18, %c0_19] : memref<1024x512xbf16, #tpu.memory_space<vmem>>, vector<1024x512xbf16>
    %cst_20 = arith.constant dense<0.000000e+00> : vector<8x512xf32>
    %27 = tpu.matmul %25, %26, %cst_20 {dimension_numbers = #tpu.dot_dimension_numbers<[1], [0], [0], [1], [0, 0, 1, 1], [], []>} : vector<8x1024xbf16>, vector<1024x512xbf16>, vector<8x512xf32> -> vector<8x512xf32>
    %c0_21 = arith.constant 0 : index
    %c0_22 = arith.constant 0 : index
    %28 = vector.load %arg9[%c0_21, %c0_22] : memref<1x512xf32, #tpu.memory_space<vmem>>, vector<1x512xf32>
    %29 = vector.broadcast %28 : vector<1x512xf32> to vector<8x512xf32>
    %30 = arith.addf %27, %29 : vector<8x512xf32>
    %cst_23 = arith.constant 0.000000e+00 : f32
    %31 = vector.broadcast %cst_23 : f32 to vector<8x512xf32>
    %32 = arith.maximumf %30, %31 : vector<8x512xf32>
    %33 = arith.truncf %32 : vector<8x512xf32> to vector<8x512xbf16>
    %c0_24 = arith.constant 0 : index
    %c0_25 = arith.constant 0 : index
    %34 = vector.load %arg10[%c0_24, %c0_25] : memref<512x256xbf16, #tpu.memory_space<vmem>>, vector<512x256xbf16>
    %cst_26 = arith.constant dense<0.000000e+00> : vector<8x256xf32>
    %35 = tpu.matmul %33, %34, %cst_26 {dimension_numbers = #tpu.dot_dimension_numbers<[1], [0], [0], [1], [0, 0, 1, 1], [], []>} : vector<8x512xbf16>, vector<512x256xbf16>, vector<8x256xf32> -> vector<8x256xf32>
    %c0_27 = arith.constant 0 : index
    %c0_28 = arith.constant 0 : index
    %36 = vector.load %arg11[%c0_27, %c0_28] : memref<1x256xf32, #tpu.memory_space<vmem>>, vector<1x256xf32>
    %37 = vector.broadcast %36 : vector<1x256xf32> to vector<8x256xf32>
    %38 = arith.addf %35, %37 : vector<8x256xf32>
    %cst_29 = arith.constant 0.000000e+00 : f32
    %39 = vector.broadcast %cst_29 : f32 to vector<8x256xf32>
    %40 = arith.maximumf %38, %39 : vector<8x256xf32>
    %41 = arith.truncf %40 : vector<8x256xf32> to vector<8x256xbf16>
    %c0_30 = arith.constant 0 : index
    %c0_31 = arith.constant 0 : index
    %42 = vector.load %arg12[%c0_30, %c0_31] : memref<256x8xbf16, #tpu.memory_space<vmem>>, vector<256x8xbf16>
    %cst_32 = arith.constant dense<0.000000e+00> : vector<8x8xf32>
    %43 = tpu.matmul %41, %42, %cst_32 {dimension_numbers = #tpu.dot_dimension_numbers<[1], [0], [0], [1], [0, 0, 1, 1], [], []>} : vector<8x256xbf16>, vector<256x8xbf16>, vector<8x8xf32> -> vector<8x8xf32>
    %c0_33 = arith.constant 0 : index
    %c0_34 = arith.constant 0 : index
    %44 = vector.load %arg13[%c0_33, %c0_34] : memref<1x8xf32, #tpu.memory_space<vmem>>, vector<1x8xf32>
    %45 = vector.broadcast %44 : vector<1x8xf32> to vector<8x8xf32>
    %46 = arith.addf %43, %45 : vector<8x8xf32>
    %c0_35 = arith.constant 0 : index
    %c0_36 = arith.constant 0 : index
    %47 = vector.load %arg14[%c0_35, %c0_36] : memref<8x8xf32, #tpu.memory_space<vmem>>, vector<8x8xf32>
    tpu.vector_store %arg14[%c0_35, %c0_36], %46 {strides = array<i32>} : memref<8x8xf32, #tpu.memory_space<vmem>>, vector<8x8xf32>,
    return
  }
  func.func @transform_0(%arg0: i32) -> (i32, i32) {
    %c0_i32 = arith.constant 0 : i32
    %c0_i32_0 = arith.constant 0 : i32
    return %arg0, %c0_i32 : i32, i32
  }
  func.func @transform_1(%arg0: i32) -> (i32, i32) {
    %c0_i32 = arith.constant 0 : i32
    %c0_i32_0 = arith.constant 0 : i32
    %c0_i32_1 = arith.constant 0 : i32
    return %c0_i32, %c0_i32_0 : i32, i32
  }
  func.func @transform_2(%arg0: i32) -> (i32, i32) {
    %c0_i32 = arith.constant 0 : i32
    %c0_i32_0 = arith.constant 0 : i32
    %c0_i32_1 = arith.constant 0 : i32
    return %c0_i32, %c0_i32_0 : i32, i32
  }
  func.func @transform_3(%arg0: i32) -> (i32, i32) {
    %c0_i32 = arith.constant 0 : i32
    %c0_i32_0 = arith.constant 0 : i32
    %c0_i32_1 = arith.constant 0 : i32
    return %c0_i32, %c0_i32_0 : i32, i32
  }
  func.func @transform_4(%arg0: i32) -> (i32, i32) {
    %c0_i32 = arith.constant 0 : i32
    %c0_i32_0 = arith.constant 0 : i32
    %c0_i32_1 = arith.constant 0 : i32
    return %c0_i32, %c0_i32_0 : i32, i32
  }
  func.func @transform_5(%arg0: i32) -> (i32, i32) {
    %c0_i32 = arith.constant 0 : i32
    %c0_i32_0 = arith.constant 0 : i32
    %c0_i32_1 = arith.constant 0 : i32
    return %c0_i32, %c0_i32_0 : i32, i32
  }
  func.func @transform_6(%arg0: i32) -> (i32, i32) {
    %c0_i32 = arith.constant 0 : i32
    %c0_i32_0 = arith.constant 0 : i32
    %c0_i32_1 = arith.constant 0 : i32
    return %c0_i32, %c0_i32_0 : i32, i32
  }
  func.func @transform_7(%arg0: i32) -> (i32, i32) {
    %c0_i32 = arith.constant 0 : i32
    %c0_i32_0 = arith.constant 0 : i32
    %c0_i32_1 = arith.constant 0 : i32
    return %c0_i32, %c0_i32_0 : i32, i32
  }
  func.func @transform_8(%arg0: i32) -> (i32, i32) {
    %c0_i32 = arith.constant 0 : i32
    %c0_i32_0 = arith.constant 0 : i32
    %c0_i32_1 = arith.constant 0 : i32
    return %c0_i32, %c0_i32_0 : i32, i32
  }
  func.func @transform_9(%arg0: i32) -> (i32, i32) {
    %c0_i32 = arith.constant 0 : i32
    %c0_i32_0 = arith.constant 0 : i32
    %c0_i32_1 = arith.constant 0 : i32
    return %c0_i32, %c0_i32_0 : i32, i32
  }
  func.func @transform_10(%arg0: i32) -> (i32, i32) {
    %c0_i32 = arith.constant 0 : i32
    %c0_i32_0 = arith.constant 0 : i32
    %c0_i32_1 = arith.constant 0 : i32
    return %c0_i32, %c0_i32_0 : i32, i32
  }
  func.func @transform_11(%arg0: i32) -> (i32, i32) {
    %c0_i32 = arith.constant 0 : i32
    %c0_i32_0 = arith.constant 0 : i32
    %c0_i32_1 = arith.constant 0 : i32
    return %c0_i32, %c0_i32_0 : i32, i32
  }
  func.func @transform_12(%arg0: i32) -> (i32, i32) {
    %c0_i32 = arith.constant 0 : i32
    %c0_i32_0 = arith.constant 0 : i32
    %c0_i32_1 = arith.constant 0 : i32
    return %c0_i32, %c0_i32_0 : i32, i32
  }
  func.func @transform_13(%arg0: i32) -> (i32, i32) {
    %c0_i32 = arith.constant 0 : i32
    %c0_i32_0 = arith.constant 0 : i32
    return %arg0, %c0_i32 : i32, i32
  }
}

</mosaic_0001>

<llo_original>
// kernel: tpu_custom_call.1
$region0: #{tpu_custom_call.1}
  #allocation0 [shape = 'u32[]', space=smem, size = 0x4, offset = 0x4, fixed_abs, tag = 'smem constant byte address 0x4 - core index']
  #allocation1 [shape = 'u32[144,128]{1,0:T(1,128)}', space=vmem, size = 0x12000, scoped, tag = 'internal scratch']
  %s0 = inlined_call_operand.vmem [shape: f32[8,64], index: 0, kind: input, shape index: {}]
  %s1 = inlined_call_operand.vmem [shape: bf16[64,256], index: 1, kind: input, shape index: {}]
  %s2 = inlined_call_operand.vmem [shape: f32[1,256], index: 2, kind: input, shape index: {}]
  %s3 = inlined_call_operand.hbm [shape: bf16[256,512], index: 3, kind: input, shape index: {}]
  %s4 = inlined_call_operand.vmem [shape: f32[1,512], index: 4, kind: input, shape index: {}]
  %s5 = inlined_call_operand.hbm [shape: bf16[512,1024], index: 5, kind: input, shape index: {}]
  %s6 = inlined_call_operand.vmem [shape: f32[1,1024], index: 6, kind: input, shape index: {}]
  %s7 = inlined_call_operand.hbm [shape: bf16[1024,512], index: 7, kind: input, shape index: {}]
  %s8 = inlined_call_operand.vmem [shape: f32[1,512], index: 8, kind: input, shape index: {}]
  %s9 = inlined_call_operand.hbm [shape: bf16[512,256], index: 9, kind: input, shape index: {}]
  %s10 = inlined_call_operand.vmem [shape: f32[1,256], index: 10, kind: input, shape index: {}]
  %s11 = inlined_call_operand.vmem [shape: bf16[256,8], index: 11, kind: input, shape index: {}]
  %s12 = inlined_call_operand.vmem [shape: f32[1,8], index: 12, kind: input, shape index: {}]
  %s13 = inlined_call_operand.hbm [shape: f32[8,8], index: 13, kind: output, shape index: {}]
  %s14 = sld [smem:[#allocation0]]
  $region78: #{tpu_custom_call.1} parent=0
    _
  %s16 = ssub.s32 1, %s14
  %s17 = scalar_select 0, %s16, %s14
  $region1: #{tpu_custom_call.1} parent=0
    #allocation2 [shape = 'u8[262144]{0}', space=vmem, size = 0x40000, scoped, tag = 'input window, operand 3, single buffered']
    #allocation3 [shape = 's32[1]{0}', space=sflag, size = 0x4, scoped, tag = 'scoped memory for tpu_custom_call.1']
    #allocation4 [shape = 's32[1]{0}', space=sflag, size = 0x4, scoped, tag = 'scoped memory for tpu_custom_call.1']
    #allocation5 [shape = 'u8[1048576]{0}', space=vmem, size = 0x100000, scoped, tag = 'input window, operand 5, single buffered']
    #allocation6 [shape = 's32[1]{0}', space=sflag, size = 0x4, scoped, tag = 'scoped memory for tpu_custom_call.1']
    #allocation7 [shape = 'u8[1048576]{0}', space=vmem, size = 0x100000, scoped, tag = 'input window, operand 7, single buffered']
    #allocation8 [shape = 'u8[262144]{0}', space=vmem, size = 0x40000, scoped, tag = 'input window, operand 9, single buffered']
    #allocation9 [shape = 's32[1]{0}', space=sflag, size = 0x4, scoped, tag = 'scoped memory for tpu_custom_call.1']
    #allocation10 [shape = 'u8[4096]{0}', space=vmem, size = 0x1000, scoped, tag = 'output window, operand 0, single buffered']
    %18 = vsyncpa [#allocation3], 0
    %19 = vsyncpa [#allocation6], 0
    %20 = vsyncpa [#allocation9], 0
    %21 = vsyncpa [#allocation4], 0
    // Predicated region
    $region2: #{tpu_custom_call.1} parent=1 // pred_check
      _
    $region3: #{tpu_custom_call.1} parent=1 // pred_check_branch
      %23 = sbr.rel (0) target = $region5
    $region4: #{tpu_custom_call.1} parent=1 // pred_region
      _
    $region5: #{tpu_custom_call.1} parent=1 // pred_fallthru
      _
    // Predicated region
    $region6: #{tpu_custom_call.1} parent=1 // pred_check
      _
    $region7: #{tpu_custom_call.1} parent=1 // pred_check_branch
      %25 = sbr.rel (0) target = $region9
    $region8: #{tpu_custom_call.1} parent=1 // pred_region
      _
    $region9: #{tpu_custom_call.1} parent=1 // pred_fallthru
      _
    // Predicated region
    $region10: #{tpu_custom_call.1} parent=1 // pred_check
      _
    $region11: #{tpu_custom_call.1} parent=1 // pred_check_branch
      %27 = sbr.rel (0) target = $region13
    $region12: #{tpu_custom_call.1} parent=1 // pred_region
      _
    $region13: #{tpu_custom_call.1} parent=1 // pred_fallthru
      _
    // Predicated region
    $region14: #{tpu_custom_call.1} parent=1 // pred_check
      _
    $region15: #{tpu_custom_call.1} parent=1 // pred_check_branch
      %29 = sbr.rel (0) target = $region17
    $region16: #{tpu_custom_call.1} parent=1 // pred_region
      %s31 = ssub.s32 8192, 8192
      %32 = vsyncadd [#allocation3], %s31
      %s33 = sshll.u32 [#allocation2], 4
      %s34 = int_to_ptr.vmem [resolvable:$true] %s33
      %39 = dma.hbm_to_vmem [thread:$0]  %s3, 8192, %s34, [#allocation3], 256, 256, 16
    $region17: #{tpu_custom_call.1} parent=1 // pred_fallthru
      _
    // Predicated region
    $region18: #{tpu_custom_call.1} parent=1 // pred_check
      _
    $region19: #{tpu_custom_call.1} parent=1 // pred_check_branch
      %41 = sbr.rel (0) target = $region21
    $region20: #{tpu_custom_call.1} parent=1 // pred_region
      _
    $region21: #{tpu_custom_call.1} parent=1 // pred_fallthru
      _
    // Predicated region
    $region22: #{tpu_custom_call.1} parent=1 // pred_check
      _
    $region23: #{tpu_custom_call.1} parent=1 // pred_check_branch
      %43 = sbr.rel (0) target = $region25
    $region24: #{tpu_custom_call.1} parent=1 // pred_region
      %s45 = ssub.s32 32768, 32768
      %46 = vsyncadd [#allocation6], %s45
      %s47 = sshll.u32 [#allocation5], 4
      %s48 = int_to_ptr.vmem [resolvable:$true] %s47
      %53 = dma.hbm_to_vmem [thread:$0]  %s5, 32768, %s48, [#allocation6], 512, 512, 32
    $region25: #{tpu_custom_call.1} parent=1 // pred_fallthru
      _
    // Predicated region
    $region26: #{tpu_custom_call.1} parent=1 // pred_check
      _
    $region27: #{tpu_custom_call.1} parent=1 // pred_check_branch
      %55 = sbr.rel (0) target = $region29
    $region28: #{tpu_custom_call.1} parent=1 // pred_region
      _
    $region29: #{tpu_custom_call.1} parent=1 // pred_fallthru
      _
    // Predicated region
    $region30: #{tpu_custom_call.1} parent=1 // pred_check
      _
    $region31: #{tpu_custom_call.1} parent=1 // pred_check_branch
      %57 = sbr.rel (0) target = $region33
    $region32: #{tpu_custom_call.1} parent=1 // pred_region
      %s59 = ssub.s32 32768, 32768
      %60 = vsyncadd [#allocation6], %s59
      %s61 = sshll.u32 [#allocation7], 4
      %s62 = int_to_ptr.vmem [resolvable:$true] %s61
      %67 = dma.hbm_to_vmem [thread:$0]  %s7, 32768, %s62, [#allocation6], 256, 256, 16
    $region33: #{tpu_custom_call.1} parent=1 // pred_fallthru
      _
    // Predicated region
    $region34: #{tpu_custom_call.1} parent=1 // pred_check
      _
    $region35: #{tpu_custom_call.1} parent=1 // pred_check_branch
      %69 = sbr.rel (0) target = $region37
    $region36: #{tpu_custom_call.1} parent=1 // pred_region
      _
    $region37: #{tpu_custom_call.1} parent=1 // pred_fallthru
      _
    // Predicated region
    $region38: #{tpu_custom_call.1} parent=1 // pred_check
      _
    $region39: #{tpu_custom_call.1} parent=1 // pred_check_branch
      %71 = sbr.rel (0) target = $region41
    $region40: #{tpu_custom_call.1} parent=1 // pred_region
      %s73 = ssub.s32 8192, 8192
      %74 = vsyncadd [#allocation9], %s73
      %s75 = sshll.u32 [#allocation8], 4
      %s76 = int_to_ptr.vmem [resolvable:$true] %s75
      %81 = dma.hbm_to_vmem [thread:$0]  %s9, 8192, %s76, [#allocation9], 128, 128, 8
    $region41: #{tpu_custom_call.1} parent=1 // pred_fallthru
      _
    // Predicated region
    $region42: #{tpu_custom_call.1} parent=1 // pred_check
      _
    $region43: #{tpu_custom_call.1} parent=1 // pred_check_branch
      %83 = sbr.rel (0) target = $region45
    $region44: #{tpu_custom_call.1} parent=1 // pred_region
      _
    $region45: #{tpu_custom_call.1} parent=1 // pred_fallthru
      _
    // Predicated region
    $region46: #{tpu_custom_call.1} parent=1 // pred_check
      _
    $region47: #{tpu_custom_call.1} parent=1 // pred_check_branch
      %85 = sbr.rel (0) target = $region49
    $region48: #{tpu_custom_call.1} parent=1 // pred_region
      _
    $region49: #{tpu_custom_call.1} parent=1 // pred_fallthru
      _
    // Predicated region
    $region50: #{tpu_custom_call.1} parent=1 // pred_check
      _
    $region51: #{tpu_custom_call.1} parent=1 // pred_check_branch
      %87 = sbr.rel (0) target = $region53
    $region52: #{tpu_custom_call.1} parent=1 // pred_region
      _
    $region53: #{tpu_custom_call.1} parent=1 // pred_fallthru
      _
    // Predicated region
    $region54: #{tpu_custom_call.1} parent=1 // pred_check
      _
    $region55: #{tpu_custom_call.1} parent=1 // pred_check_branch
      %89 = sbr.rel (0) target = $region57
    $region56: #{tpu_custom_call.1} parent=1 // pred_region
      %90 = dma.done [#allocation3], 8192
    $region57: #{tpu_custom_call.1} parent=1 // pred_fallthru
      _
    // Predicated region
    $region58: #{tpu_custom_call.1} parent=1 // pred_check
      _
    $region59: #{tpu_custom_call.1} parent=1 // pred_check_branch
      %92 = sbr.rel (0) target = $region61
    $region60: #{tpu_custom_call.1} parent=1 // pred_region
      %93 = dma.done [#allocation6], 32768
    $region61: #{tpu_custom_call.1} parent=1 // pred_fallthru
      _
    // Predicated region
    $region62: #{tpu_custom_call.1} parent=1 // pred_check
      _
    $region63: #{tpu_custom_call.1} parent=1 // pred_check_branch
      %95 = sbr.rel (0) target = $region65
    $region64: #{tpu_custom_call.1} parent=1 // pred_region
      %96 = dma.done [#allocation6], 32768
    $region65: #{tpu_custom_call.1} parent=1 // pred_fallthru
      _
    // Predicated region
    $region66: #{tpu_custom_call.1} parent=1 // pred_check
      _
    $region67: #{tpu_custom_call.1} parent=1 // pred_check_branch
      %98 = sbr.rel (0) target = $region69
    $region68: #{tpu_custom_call.1} parent=1 // pred_region
      %99 = dma.done [#allocation9], 8192
    $region69: #{tpu_custom_call.1} parent=1 // pred_fallthru
      _
    %v101 = vld [vmem:[%s0] sm:$0xff]
    %v102 = vpack.c.bf16 %v101, %v101
    %v103 = vld [vmem:[%s1] sm:$0xff]
    %v104 = vld [vmem:[%s1 + $0x8] sm:$0xff]
    %v105 = vld [vmem:[%s1 + $0x10] sm:$0xff]
    %v106 = vld [vmem:[%s1 + $0x18] sm:$0xff]
    %v107 = vld [vmem:[%s1 + $0x20] sm:$0xff]
    %v108 = vld [vmem:[%s1 + $0x28] sm:$0xff]
    %v109 = vld [vmem:[%s1 + $0x30] sm:$0xff]
    %v110 = vld [vmem:[%s1 + $0x38] sm:$0xff]
    %v111 = vld [vmem:[%s2] sm:$0x3]
    %v113 = vlaneseq
    %v114 = vshrl.u32 %v113, 7
    %v115 = vsub.s32 0, %v114
    %v116 = vrot.slane %v111, %v115
    %v117 = vlaneseq
    %v118 = vshrl.u32 %v117, 7
    %v119 = vsub.s32 1, %v118
    %v120 = vrot.slane %v111, %v119
    %v131 = vunpack.c.l.b16 %v103
    %v132 = vunpack.c.h.b16 %v103
    %v133 = vunpack.c.l.b16 %v104
    %v134 = vunpack.c.h.b16 %v104
    %v135 = vunpack.c.l.b16 %v105
    %v136 = vunpack.c.h.b16 %v105
    %v137 = vunpack.c.l.b16 %v106
    %v138 = vunpack.c.h.b16 %v106
    %v139 = vunpack.c.l.b16 %v107
    %v140 = vunpack.c.h.b16 %v107
    %v141 = vunpack.c.l.b16 %v108
    %v142 = vunpack.c.h.b16 %v108
    %v143 = vunpack.c.l.b16 %v109
    %v144 = vunpack.c.h.b16 %v109
    %v145 = vunpack.c.l.b16 %v110
    %v146 = vunpack.c.h.b16 %v110
    %v147 = vpack.c.b16 %v133, %v131
    %v148 = vpack.c.b16 %v134, %v132
    %v149 = vpack.c.b16 %v137, %v135
    %v150 = vpack.c.b16 %v138, %v136
    %v151 = vpack.c.b16 %v141, %v139
    %v152 = vpack.c.b16 %v142, %v140
    %v153 = vpack.c.b16 %v145, %v143
    %v154 = vpack.c.b16 %v146, %v144
    %vm163 = vcmask 523264
    %v165 = vsel %vm163, %v102, 0
    %167 = vmatprep.subr.bf16.mxu0 0
    %168 = vmatpush1.bf16.msra.mxu0 0
    %169 = vmatprep.subr.bf16.mxu0 0
    %170 = vmatpush1.bf16.msra.mxu0 0
    %171 = vmatprep.subr.bf16.mxu0 0
    %172 = vmatpush1.bf16.msra.mxu0 0
    %173 = vmatprep.subr.bf16.mxu0 0
    %174 = vmatpush1.bf16.msra.mxu0 0
    %175 = vmatprep.subr.bf16.mxu0 %v154
    %176 = vmatpush1.bf16.msra.mxu0 %v153
    %177 = vmatprep.subr.bf16.mxu0 %v152
    %178 = vmatpush1.bf16.msra.mxu0 %v151
    %179 = vmatprep.subr.bf16.mxu0 %v150
    %180 = vmatpush1.bf16.msra.mxu0 %v149
    %181 = vmatprep.subr.bf16.mxu0 %v148
    %182 = vmatpush1.bf16.msra.mxu0 %v147
    %183 = vmatprep.subr.bf16.mxu0 0
    %184 = vmatpush2.bf16.msra.mxu0 0
    %185 = vmatprep.subr.bf16.mxu0 0
    %186 = vmatpush2.bf16.msra.mxu0 0
    %187 = vmatprep.subr.bf16.mxu0 0
    %188 = vmatpush2.bf16.msra.mxu0 0
    %189 = vmatprep.subr.bf16.mxu0 0
    %190 = vmatpush2.bf16.msra.mxu0 0
    %191 = vmatprep.subr.bf16.mxu0 0
    %192 = vmatpush2.bf16.msra.mxu0 0
    %193 = vmatprep.subr.bf16.mxu0 0
    %194 = vmatpush2.bf16.msra.mxu0 0
    %195 = vmatprep.subr.bf16.mxu0 0
    %196 = vmatpush2.bf16.msra.mxu0 0
    %197 = vmatprep.subr.bf16.mxu0 0
    %198 = vmatpush2.bf16.msra.mxu0 0
    %199 = vmatprep.mubr.bf16.mxu0 0
    %200 = vmatmul.mubr.bf16.gmra.mxu0 %v165
    %v201 = vpop.f32.mrf.mxu0
    %v202 = vadd.f32 %v116, %v201
    %v203 = vpop.f32.mrf.mxu0
    %v204 = vadd.f32 %v120, %v203
    %v205 = vpop.f32.mrf.mxu0
    %v206 = vpop.f32.mrf.mxu0
    %207 = vdwg.mxu0
    %v208 = vmax.f32 %v202, 0.0
    %v209 = vmax.f32 %v204, 0.0
    %v210 = vpack.c.bf16 %v208, %v208
    %v211 = vpack.c.bf16 %v209, %v209
    %v212 = vld [vmem:[#allocation2] sm:$0xff]
    %v213 = vld [vmem:[#allocation2 + $0x8] sm:$0xff]
    %v214 = vld [vmem:[#allocation2 + $0x10] sm:$0xff]
    %v215 = vld [vmem:[#allocation2 + $0x18] sm:$0xff]
    %v216 = vld [vmem:[#allocation2 + $0x20] sm:$0xff]
    %v217 = vld [vmem:[#allocation2 + $0x28] sm:$0xff]
    %v218 = vld [vmem:[#allocation2 + $0x30] sm:$0xff]
    %v219 = vld [vmem:[#allocation2 + $0x38] sm:$0xff]
    %v220 = vld [vmem:[#allocation2 + $0x40] sm:$0xff]
    %v221 = vld [vmem:[#allocation2 + $0x48] sm:$0xff]
    %v222 = vld [vmem:[#allocation2 + $0x50] sm:$0xff]
    %v223 = vld [vmem:[#allocation2 + $0x58] sm:$0xff]
    %v224 = vld [vmem:[#allocation2 + $0x60] sm:$0xff]
    %v225 = vld [vmem:[#allocation2 + $0x68] sm:$0xff]
    %v226 = vld [vmem:[#allocation2 + $0x70] sm:$0xff]
    %v227 = vld [vmem:[#allocation2 + $0x78] sm:$0xff]
    %v228 = vld [vmem:[#allocation2 + $0x80] sm:$0xff]
    %v229 = vld [vmem:[#allocation2 + $0x88] sm:$0xff]
    %v230 = vld [vmem:[#allocation2 + $0x90] sm:$0xff]
    %v231 = vld [vmem:[#allocation2 + $0x98] sm:$0xff]
    %v232 = vld [vmem:[#allocation2 + $0xa0] sm:$0xff]
    %v233 = vld [vmem:[#allocation2 + $0xa8] sm:$0xff]
    %v234 = vld [vmem:[#allocation2 + $0xb0] sm:$0xff]
    %v235 = vld [vmem:[#allocation2 + $0xb8] sm:$0xff]
    %v236 = vld [vmem:[#allocation2 + $0xc0] sm:$0xff]
    %v237 = vld [vmem:[#allocation2 + $0xc8] sm:$0xff]
    %v238 = vld [vmem:[#allocation2 + $0xd0] sm:$0xff]
    %v239 = vld [vmem:[#allocation2 + $0xd8] sm:$0xff]
    %v240 = vld [vmem:[#allocation2 + $0xe0] sm:$0xff]
    %v241 = vld [vmem:[#allocation2 + $0xe8] sm:$0xff]
    %v242 = vld [vmem:[#allocation2 + $0xf0] sm:$0xff]
    %v243 = vld [vmem:[#allocation2 + $0xf8] sm:$0xff]
    %v244 = vld [vmem:[#allocation2 + $0x100] sm:$0xff]
    %v245 = vld [vmem:[#allocation2 + $0x108] sm:$0xff]
    %v246 = vld [vmem:[#allocation2 + $0x110] sm:$0xff]
    %v247 = vld [vmem:[#allocation2 + $0x118] sm:$0xff]
    %v248 = vld [vmem:[#allocation2 + $0x120] sm:$0xff]
    %v249 = vld [vmem:[#allocation2 + $0x128] sm:$0xff]
    %v250 = vld [vmem:[#allocation2 + $0x130] sm:$0xff]
    %v251 = vld [vmem:[#allocation2 + $0x138] sm:$0xff]
    %v252 = vld [vmem:[#allocation2 + $0x140] sm:$0xff]
    %v253 = vld [vmem:[#allocation2 + $0x148] sm:$0xff]
    %v254 = vld [vmem:[#allocation2 + $0x150] sm:$0xff]
    %v255 = vld [vmem:[#allocation2 + $0x158] sm:$0xff]
    %v256 = vld [vmem:[#allocation2 + $0x160] sm:$0xff]
    %v257 = vld [vmem:[#allocation2 + $0x168] sm:$0xff]
    %v258 = vld [vmem:[#allocation2 + $0x170] sm:$0xff]
    %v259 = vld [vmem:[#allocation2 + $0x178] sm:$0xff]
    %v260 = vld [vmem:[#allocation2 + $0x180] sm:$0xff]
    %v261 = vld [vmem:[#allocation2 + $0x188] sm:$0xff]
    %v262 = vld [vmem:[#allocation2 + $0x190] sm:$0xff]
    %v263 = vld [vmem:[#allocation2 + $0x198] sm:$0xff]
    %v264 = vld [vmem:[#allocation2 + $0x1a0] sm:$0xff]
    %v265 = vld [vmem:[#allocation2 + $0x1a8] sm:$0xff]
    %v266 = vld [vmem:[#allocation2 + $0x1b0] sm:$0xff]
    %v267 = vld [vmem:[#allocation2 + $0x1b8] sm:$0xff]
    %v268 = vld [vmem:[#allocation2 + $0x1c0] sm:$0xff]
    %v269 = vld [vmem:[#allocation2 + $0x1c8] sm:$0xff]
    %v270 = vld [vmem:[#allocation2 + $0x1d0] sm:$0xff]
    %v271 = vld [vmem:[#allocation2 + $0x1d8] sm:$0xff]
    %v272 = vld [vmem:[#allocation2 + $0x1e0] sm:$0xff]
    %v273 = vld [vmem:[#allocation2 + $0x1e8] sm:$0xff]
    %v274 = vld [vmem:[#allocation2 + $0x1f0] sm:$0xff]
    %v275 = vld [vmem:[#allocation2 + $0x1f8] sm:$0xff]
    %v276 = vld [vmem:[%s4] sm:$0xf]
    %v278 = vlaneseq
    %v279 = vshrl.u32 %v278, 7
    %v280 = vsub.s32 0, %v279
    %v281 = vrot.slane %v276, %v280
    %v282 = vlaneseq
    %v283 = vshrl.u32 %v282, 7
    %v284 = vsub.s32 1, %v283
    %v285 = vrot.slane %v276, %v284
    %v286 = vlaneseq
    %v287 = vshrl.u32 %v286, 7
    %v288 = vsub.s32 2, %v287
    %v289 = vrot.slane %v276, %v288
    %v290 = vlaneseq
    %v291 = vshrl.u32 %v290, 7
    %v292 = vsub.s32 3, %v291
    %v293 = vrot.slane %v276, %v292
    %v362 = vunpack.c.l.b16 %v212
    %v363 = vunpack.c.h.b16 %v212
    %v364 = vunpack.c.l.b16 %v213
    %v365 = vunpack.c.h.b16 %v213
    %v366 = vunpack.c.l.b16 %v214
    %v367 = vunpack.c.h.b16 %v214
    %v368 = vunpack.c.l.b16 %v215
    %v369 = vunpack.c.h.b16 %v215
    %v370 = vunpack.c.l.b16 %v216
    %v371 = vunpack.c.h.b16 %v216
    %v372 = vunpack.c.l.b16 %v217
    %v373 = vunpack.c.h.b16 %v217
    %v374 = vunpack.c.l.b16 %v218
    %v375 = vunpack.c.h.b16 %v218
    %v376 = vunpack.c.l.b16 %v219
    %v377 = vunpack.c.h.b16 %v219
    %v378 = vunpack.c.l.b16 %v220
    %v379 = vunpack.c.h.b16 %v220
    %v380 = vunpack.c.l.b16 %v221
    %v381 = vunpack.c.h.b16 %v221
    %v382 = vunpack.c.l.b16 %v222
    %v383 = vunpack.c.h.b16 %v222
    %v384 = vunpack.c.l.b16 %v223
    %v385 = vunpack.c.h.b16 %v223
    %v386 = vunpack.c.l.b16 %v224
    %v387 = vunpack.c.h.b16 %v224
    %v388 = vunpack.c.l.b16 %v225
    %v389 = vunpack.c.h.b16 %v225
    %v390 = vunpack.c.l.b16 %v226
    %v391 = vunpack.c.h.b16 %v226
    %v392 = vunpack.c.l.b16 %v227
    %v393 = vunpack.c.h.b16 %v227
    %v394 = vunpack.c.l.b16 %v228
    %v395 = vunpack.c.h.b16 %v228
    %v396 = vunpack.c.l.b16 %v229
    %v397 = vunpack.c.h.b16 %v229
    %v398 = vunpack.c.l.b16 %v230
    %v399 = vunpack.c.h.b16 %v230
    %v400 = vunpack.c.l.b16 %v231
    %v401 = vunpack.c.h.b16 %v231
    %v402 = vunpack.c.l.b16 %v232
    %v403 = vunpack.c.h.b16 %v232
    %v404 = vunpack.c.l.b16 %v233
    %v405 = vunpack.c.h.b16 %v233
    %v406 = vunpack.c.l.b16 %v234
    %v407 = vunpack.c.h.b16 %v234
    %v408 = vunpack.c.l.b16 %v235
    %v409 = vunpack.c.h.b16 %v235
    %v410 = vunpack.c.l.b16 %v236
    %v411 = vunpack.c.h.b16 %v236
    %v412 = vunpack.c.l.b16 %v237
    %v413 = vunpack.c.h.b16 %v237
    %v414 = vunpack.c.l.b16 %v238
    %v415 = vunpack.c.h.b16 %v238
    %v416 = vunpack.c.l.b16 %v239
    %v417 = vunpack.c.h.b16 %v239
    %v418 = vunpack.c.l.b16 %v240
    %v419 = vunpack.c.h.b16 %v240
    %v420 = vunpack.c.l.b16 %v241
    %v421 = vunpack.c.h.b16 %v241
    %v422 = vunpack.c.l.b16 %v242
    %v423 = vunpack.c.h.b16 %v242
    %v424 = vunpack.c.l.b16 %v243
    %v425 = vunpack.c.h.b16 %v243
    %v426 = vunpack.c.l.b16 %v244
    %v427 = vunpack.c.h.b16 %v244
    %v428 = vunpack.c.l.b16 %v245
    %v429 = vunpack.c.h.b16 %v245
    %v430 = vunpack.c.l.b16 %v246
    %v431 = vunpack.c.h.b16 %v246
    %v432 = vunpack.c.l.b16 %v247
    %v433 = vunpack.c.h.b16 %v247
    %v434 = vunpack.c.l.b16 %v248
    %v435 = vunpack.c.h.b16 %v248
    %v436 = vunpack.c.l.b16 %v249
    %v437 = vunpack.c.h.b16 %v249
    %v438 = vunpack.c.l.b16 %v250
    %v439 = vunpack.c.h.b16 %v250
    %v440 = vunpack.c.l.b16 %v251
    %v441 = vunpack.c.h.b16 %v251
    %v442 = vunpack.c.l.b16 %v252
    %v443 = vunpack.c.h.b16 %v252
    %v444 = vunpack.c.l.b16 %v253
    %v445 = vunpack.c.h.b16 %v253
    %v446 = vunpack.c.l.b16 %v254
    %v447 = vunpack.c.h.b16 %v254
    %v448 = vunpack.c.l.b16 %v255
    %v449 = vunpack.c.h.b16 %v255
    %v450 = vunpack.c.l.b16 %v256
    %v451 = vunpack.c.h.b16 %v256
    %v452 = vunpack.c.l.b16 %v257
    %v453 = vunpack.c.h.b16 %v257
    %v454 = vunpack.c.l.b16 %v258
    %v455 = vunpack.c.h.b16 %v258
    %v456 = vunpack.c.l.b16 %v259
    %v457 = vunpack.c.h.b16 %v259
    %v458 = vunpack.c.l.b16 %v260
    %v459 = vunpack.c.h.b16 %v260
    %v460 = vunpack.c.l.b16 %v261
    %v461 = vunpack.c.h.b16 %v261
    %v462 = vunpack.c.l.b16 %v262
    %v463 = vunpack.c.h.b16 %v262
    %v464 = vunpack.c.l.b16 %v263
    %v465 = vunpack.c.h.b16 %v263
    %v466 = vunpack.c.l.b16 %v264
    %v467 = vunpack.c.h.b16 %v264
    %v468 = vunpack.c.l.b16 %v265
    %v469 = vunpack.c.h.b16 %v265
    %v470 = vunpack.c.l.b16 %v266
    %v471 = vunpack.c.h.b16 %v266
    %v472 = vunpack.c.l.b16 %v267
    %v473 = vunpack.c.h.b16 %v267
    %v474 = vunpack.c.l.b16 %v268
    %v475 = vunpack.c.h.b16 %v268
    %v476 = vunpack.c.l.b16 %v269
    %v477 = vunpack.c.h.b16 %v269
    %v478 = vunpack.c.l.b16 %v270
    %v479 = vunpack.c.h.b16 %v270
    %v480 = vunpack.c.l.b16 %v271
    %v481 = vunpack.c.h.b16 %v271
    %v482 = vunpack.c.l.b16 %v272
    %v483 = vunpack.c.h.b16 %v272
    %v484 = vunpack.c.l.b16 %v273
    %v485 = vunpack.c.h.b16 %v273
    %v486 = vunpack.c.l.b16 %v274
    %v487 = vunpack.c.h.b16 %v274
    %v488 = vunpack.c.l.b16 %v275
    %v489 = vunpack.c.h.b16 %v275
    %v490 = vpack.c.b16 %v366, %v362
    %v491 = vpack.c.b16 %v367, %v363
    %v492 = vpack.c.b16 %v368, %v364
    %v493 = vpack.c.b16 %v369, %v365
    %v494 = vpack.c.b16 %v374, %v370
    %v495 = vpack.c.b16 %v375, %v371
    %v496 = vpack.c.b16 %v376, %v372
    %v497 = vpack.c.b16 %v377, %v373
    %v498 = vpack.c.b16 %v382, %v378
    %v499 = vpack.c.b16 %v383, %v379
    %v500 = vpack.c.b16 %v384, %v380
    %v501 = vpack.c.b16 %v385, %v381
    %v502 = vpack.c.b16 %v390, %v386
    %v503 = vpack.c.b16 %v391, %v387
    %v504 = vpack.c.b16 %v392, %v388
    %v505 = vpack.c.b16 %v393, %v389
    %v506 = vpack.c.b16 %v398, %v394
    %v507 = vpack.c.b16 %v399, %v395
    %v508 = vpack.c.b16 %v400, %v396
    %v509 = vpack.c.b16 %v401, %v397
    %v510 = vpack.c.b16 %v406, %v402
    %v511 = vpack.c.b16 %v407, %v403
    %v512 = vpack.c.b16 %v408, %v404
    %v513 = vpack.c.b16 %v409, %v405
    %v514 = vpack.c.b16 %v414, %v410
    %v515 = vpack.c.b16 %v415, %v411
    %v516 = vpack.c.b16 %v416, %v412
    %v517 = vpack.c.b16 %v417, %v413
    %v518 = vpack.c.b16 %v422, %v418
    %v519 = vpack.c.b16 %v423, %v419
    %v520 = vpack.c.b16 %v424, %v420
    %v521 = vpack.c.b16 %v425, %v421
    %v522 = vpack.c.b16 %v430, %v426
    %v523 = vpack.c.b16 %v431, %v427
    %v524 = vpack.c.b16 %v432, %v428
    %v525 = vpack.c.b16 %v433, %v429
    %v526 = vpack.c.b16 %v438, %v434
    %v527 = vpack.c.b16 %v439, %v435
    %v528 = vpack.c.b16 %v440, %v436
    %v529 = vpack.c.b16 %v441, %v437
    %v530 = vpack.c.b16 %v446, %v442
    %v531 = vpack.c.b16 %v447, %v443
    %v532 = vpack.c.b16 %v448, %v444
    %v533 = vpack.c.b16 %v449, %v445
    %v534 = vpack.c.b16 %v454, %v450
    %v535 = vpack.c.b16 %v455, %v451
    %v536 = vpack.c.b16 %v456, %v452
    %v537 = vpack.c.b16 %v457, %v453
    %v538 = vpack.c.b16 %v462, %v458
    %v539 = vpack.c.b16 %v463, %v459
    %v540 = vpack.c.b16 %v464, %v460
    %v541 = vpack.c.b16 %v465, %v461
    %v542 = vpack.c.b16 %v470, %v466
    %v543 = vpack.c.b16 %v471, %v467
    %v544 = vpack.c.b16 %v472, %v468
    %v545 = vpack.c.b16 %v473, %v469
    %v546 = vpack.c.b16 %v478, %v474
    %v547 = vpack.c.b16 %v479, %v475
    %v548 = vpack.c.b16 %v480, %v476
    %v549 = vpack.c.b16 %v481, %v477
    %v550 = vpack.c.b16 %v486, %v482
    %v551 = vpack.c.b16 %v487, %v483
    %v552 = vpack.c.b16 %v488, %v484
    %v553 = vpack.c.b16 %v489, %v485
    %618 = vmatprep.subr.bf16.mxu0 %v519
    %619 = vmatpush1.bf16.msra.mxu0 %v518
    %620 = vmatprep.subr.bf16.mxu0 %v515
    %621 = vmatpush1.bf16.msra.mxu0 %v514
    %622 = vmatprep.subr.bf16.mxu0 %v511
    %623 = vmatpush1.bf16.msra.mxu0 %v510
    %624 = vmatprep.subr.bf16.mxu0 %v507
    %625 = vmatpush1.bf16.msra.mxu0 %v506
    %626 = vmatprep.subr.bf16.mxu0 %v503
    %627 = vmatpush1.bf16.msra.mxu0 %v502
    %628 = vmatprep.subr.bf16.mxu0 %v499
    %629 = vmatpush1.bf16.msra.mxu0 %v498
    %630 = vmatprep.subr.bf16.mxu0 %v495
    %631 = vmatpush1.bf16.msra.mxu0 %v494
    %632 = vmatprep.subr.bf16.mxu0 %v491
    %633 = vmatpush1.bf16.msra.mxu0 %v490
    %634 = vmatprep.subr.bf16.mxu0 %v551
    %635 = vmatpush2.bf16.msra.mxu0 %v550
    %636 = vmatprep.subr.bf16.mxu0 %v547
    %637 = vmatpush2.bf16.msra.mxu0 %v546
    %638 = vmatprep.subr.bf16.mxu0 %v543
    %639 = vmatpush2.bf16.msra.mxu0 %v542
    %640 = vmatprep.subr.bf16.mxu0 %v539
    %641 = vmatpush2.bf16.msra.mxu0 %v538
    %642 = vmatprep.subr.bf16.mxu0 %v535
    %643 = vmatpush2.bf16.msra.mxu0 %v534
    %644 = vmatprep.subr.bf16.mxu0 %v531
    %645 = vmatpush2.bf16.msra.mxu0 %v530
    %646 = vmatprep.subr.bf16.mxu0 %v527
    %647 = vmatpush2.bf16.msra.mxu0 %v526
    %648 = vmatprep.subr.bf16.mxu0 %v523
    %649 = vmatpush2.bf16.msra.mxu0 %v522
    %650 = vmatprep.mubr.bf16.mxu0 %v211
    %651 = vmatmul.mubr.bf16.gmra.mxu0 %v210
    %v652 = vpop.f32.mrf.mxu0
    %v653 = vadd.f32 %v281, %v652
    %v654 = vpop.f32.mrf.mxu0
    %v655 = vadd.f32 %v285, %v654
    %v656 = vpop.f32.mrf.mxu0
    %v657 = vpop.f32.mrf.mxu0
    %658 = vdwg.mxu0
    %659 = vmatprep.subr.bf16.mxu0 %v521
    %660 = vmatpush1.bf16.msra.mxu0 %v520
    %661 = vmatprep.subr.bf16.mxu0 %v517
    %662 = vmatpush1.bf16.msra.mxu0 %v516
    %663 = vmatprep.subr.bf16.mxu0 %v513
    %664 = vmatpush1.bf16.msra.mxu0 %v512
    %665 = vmatprep.subr.bf16.mxu0 %v509
    %666 = vmatpush1.bf16.msra.mxu0 %v508
    %667 = vmatprep.subr.bf16.mxu0 %v505
    %668 = vmatpush1.bf16.msra.mxu0 %v504
    %669 = vmatprep.subr.bf16.mxu0 %v501
    %670 = vmatpush1.bf16.msra.mxu0 %v500
    %671 = vmatprep.subr.bf16.mxu0 %v497
    %672 = vmatpush1.bf16.msra.mxu0 %v496
    %673 = vmatprep.subr.bf16.mxu0 %v493
    %674 = vmatpush1.bf16.msra.mxu0 %v492
    %675 = vmatprep.subr.bf16.mxu0 %v553
    %676 = vmatpush2.bf16.msra.mxu0 %v552
    %677 = vmatprep.subr.bf16.mxu0 %v549
    %678 = vmatpush2.bf16.msra.mxu0 %v548
    %679 = vmatprep.subr.bf16.mxu0 %v545
    %680 = vmatpush2.bf16.msra.mxu0 %v544
    %681 = vmatprep.subr.bf16.mxu0 %v541
    %682 = vmatpush2.bf16.msra.mxu0 %v540
    %683 = vmatprep.subr.bf16.mxu0 %v537
    %684 = vmatpush2.bf16.msra.mxu0 %v536
    %685 = vmatprep.subr.bf16.mxu0 %v533
    %686 = vmatpush2.bf16.msra.mxu0 %v532
    %687 = vmatprep.subr.bf16.mxu0 %v529
    %688 = vmatpush2.bf16.msra.mxu0 %v528
    %689 = vmatprep.subr.bf16.mxu0 %v525
    %690 = vmatpush2.bf16.msra.mxu0 %v524
    %691 = vmatprep.mubr.bf16.mxu0 %v211
    %692 = vmatmul.mubr.bf16.gmra.mxu0 %v210
    %v693 = vpop.f32.mrf.mxu0
    %v694 = vadd.f32 %v289, %v693
    %v695 = vpop.f32.mrf.mxu0
    %v696 = vadd.f32 %v293, %v695
    %v697 = vpop.f32.mrf.mxu0
    %v698 = vpop.f32.mrf.mxu0
    %699 = vdwg.mxu0
    %v700 = vmax.f32 %v653, 0.0
    %v701 = vmax.f32 %v655, 0.0
    %v702 = vmax.f32 %v694, 0.0
    %v703 = vmax.f32 %v696, 0.0
    %v704 = vpack.c.bf16 %v700, %v700
    %v705 = vpack.c.bf16 %v701, %v701
    %v706 = vpack.c.bf16 %v702, %v702
    %v707 = vpack.c.bf16 %v703, %v703
    %v708 = vld [vmem:[#allocation5] sm:$0xff]
    %v709 = vld [vmem:[#allocation5 + $0x8] sm:$0xff]
    %v710 = vld [vmem:[#allocation5 + $0x10] sm:$0xff]
    %v711 = vld [vmem:[#allocation5 + $0x18] sm:$0xff]
    %v712 = vld [vmem:[#allocation5 + $0x20] sm:$0xff]
    %v713 = vld [vmem:[#allocation5 + $0x28] sm:$0xff]
    %v714 = vld [vmem:[#allocation5 + $0x30] sm:$0xff]
    %v715 = vld [vmem:[#allocation5 + $0x38] sm:$0xff]
    %v716 = vld [vmem:[#allocation5 + $0x40] sm:$0xff]
    %v717 = vld [vmem:[#allocation5 + $0x48] sm:$0xff]
    %v718 = vld [vmem:[#allocation5 + $0x50] sm:$0xff]
    %v719 = vld [vmem:[#allocation5 + $0x58] sm:$0xff]
    %v720 = vld [vmem:[#allocation5 + $0x60] sm:$0xff]
    %v721 = vld [vmem:[#allocation5 + $0x68] sm:$0xff]
    %v722 = vld [vmem:[#allocation5 + $0x70] sm:$0xff]
    %v723 = vld [vmem:[#allocation5 + $0x78] sm:$0xff]
    %v724 = vld [vmem:[#allocation5 + $0x80] sm:$0xff]
    %v725 = vld [vmem:[#allocation5 + $0x88] sm:$0xff]
    %v726 = vld [vmem:[#allocation5 + $0x90] sm:$0xff]
    %v727 = vld [vmem:[#allocation5 + $0x98] sm:$0xff]
    %v728 = vld [vmem:[#allocation5 + $0xa0] sm:$0xff]
    %v729 = vld [vmem:[#allocation5 + $0xa8] sm:$0xff]
    %v730 = vld [vmem:[#allocation5 + $0xb0] sm:$0xff]
    %v731 = vld [vmem:[#allocation5 + $0xb8] sm:$0xff]
    %v732 = vld [vmem:[#allocation5 + $0xc0] sm:$0xff]
    %v733 = vld [vmem:[#allocation5 + $0xc8] sm:$0xff]
    %v734 = vld [vmem:[#allocation5 + $0xd0] sm:$0xff]
    %v735 = vld [vmem:[#allocation5 + $0xd8] sm:$0xff]
    %v736 = vld [vmem:[#allocation5 + $0xe0] sm:$0xff]
    %v737 = vld [vmem:[#allocation5 + $0xe8] sm:$0xff]
    %v738 = vld [vmem:[#allocation5 + $0xf0] sm:$0xff]
    %v739 = vld [vmem:[#allocation5 + $0xf8] sm:$0xff]
    %v740 = vld [vmem:[#allocation5 + $0x100] sm:$0xff]
    %v741 = vld [vmem:[#allocation5 + $0x108] sm:$0xff]
    %v742 = vld [vmem:[#allocation5 + $0x110] sm:$0xff]
    %v743 = vld [vmem:[#allocation5 + $0x118] sm:$0xff]
    %v744 = vld [vmem:[#allocation5 + $0x120] sm:$0xff]
    %v745 = vld [vmem:[#allocation5 + $0x128] sm:$0xff]
    %v746 = vld [vmem:[#allocation5 + $0x130] sm:$0xff]
    %v747 = vld [vmem:[#allocation5 + $0x138] sm:$0xff]
    %v748 = vld [vmem:[#allocation5 + $0x140] sm:$0xff]
    %v749 = vld [vmem:[#allocation5 + $0x148] sm:$0xff]
    %v750 = vld [vmem:[#allocation5 + $0x150] sm:$0xff]
    %v751 = vld [vmem:[#allocation5 + $0x158] sm:$0xff]
    %v752 = vld [vmem:[#allocation5 + $0x160] sm:$0xff]
    %v753 = vld [vmem:[#allocation5 + $0x168] sm:$0xff]
    %v754 = vld [vmem:[#allocation5 + $0x170] sm:$0xff]
    %v755 = vld [vmem:[#allocation5 + $0x178] sm:$0xff]
    %v756 = vld [vmem:[#allocation5 + $0x180] sm:$0xff]
    %v757 = vld [vmem:[#allocation5 + $0x188] sm:$0xff]
    %v758 = vld [vmem:[#allocation5 + $0x190] sm:$0xff]
    %v759 = vld [vmem:[#allocation5 + $0x198] sm:$0xff]
    %v760 = vld [vmem:[#allocation5 + $0x1a0] sm:$0xff]
    %v761 = vld [vmem:[#allocation5 + $0x1a8] sm:$0xff]
    %v762 = vld [vmem:[#allocation5 + $0x1b0] sm:$0xff]
    %v763 = vld [vmem:[#allocation5 + $0x1b8] sm:$0xff]
    %v764 = vld [vmem:[#allocation5 + $0x1c0] sm:$0xff]
    %v765 = vld [vmem:[#allocation5 + $0x1c8] sm:$0xff]
    %v766 = vld [vmem:[#allocation5 + $0x1d0] sm:$0xff]
    %v767 = vld [vmem:[#allocation5 + $0x1d8] sm:$0xff]
    %v768 = vld [vmem:[#allocation5 + $0x1e0] sm:$0xff]
    %v769 = vld [vmem:[#allocation5 + $0x1e8] sm:$0xff]
    %v770 = vld [vmem:[#allocation5 + $0x1f0] sm:$0xff]
    %v771 = vld [vmem:[#allocation5 + $0x1f8] sm:$0xff]
    %v772 = vld [vmem:[#allocation5 + $0x200] sm:$0xff]
    %v773 = vld [vmem:[#allocation5 + $0x208] sm:$0xff]
    %v774 = vld [vmem:[#allocation5 + $0x210] sm:$0xff]
    %v775 = vld [vmem:[#allocation5 + $0x218] sm:$0xff]
    %v776 = vld [vmem:[#allocation5 + $0x220] sm:$0xff]
    %v777 = vld [vmem:[#allocation5 + $0x228] sm:$0xff]
    %v778 = vld [vmem:[#allocation5 + $0x230] sm:$0xff]
    %v779 = vld [vmem:[#allocation5 + $0x238] sm:$0xff]
    %v780 = vld [vmem:[#allocation5 + $0x240] sm:$0xff]
    %v781 = vld [vmem:[#allocation5 + $0x248] sm:$0xff]
    %v782 = vld [vmem:[#allocation5 + $0x250] sm:$0xff]
    %v783 = vld [vmem:[#allocation5 + $0x258] sm:$0xff]
    %v784 = vld [vmem:[#allocation5 + $0x260] sm:$0xff]
    %v785 = vld [vmem:[#allocation5 + $0x268] sm:$0xff]
    %v786 = vld [vmem:[#allocation5 + $0x270] sm:$0xff]
    %v787 = vld [vmem:[#allocation5 + $0x278] sm:$0xff]
    %v788 = vld [vmem:[#allocation5 + $0x280] sm:$0xff]
    %v789 = vld [vmem:[#allocation5 + $0x288] sm:$0xff]
    %v790 = vld [vmem:[#allocation5 + $0x290] sm:$0xff]
    %v791 = vld [vmem:[#allocation5 + $0x298] sm:$0xff]
    %v792 = vld [vmem:[#allocation5 + $0x2a0] sm:$0xff]
    %v793 = vld [vmem:[#allocation5 + $0x2a8] sm:$0xff]
    %v794 = vld [vmem:[#allocation5 + $0x2b0] sm:$0xff]
    %v795 = vld [vmem:[#allocation5 + $0x2b8] sm:$0xff]
    %v796 = vld [vmem:[#allocation5 + $0x2c0] sm:$0xff]
    %v797 = vld [vmem:[#allocation5 + $0x2c8] sm:$0xff]
    %v798 = vld [vmem:[#allocation5 + $0x2d0] sm:$0xff]
    %v799 = vld [vmem:[#allocation5 + $0x2d8] sm:$0xff]
    %v800 = vld [vmem:[#allocation5 + $0x2e0] sm:$0xff]
    %v801 = vld [vmem:[#allocation5 + $0x2e8] sm:$0xff]
    %v802 = vld [vmem:[#allocation5 + $0x2f0] sm:$0xff]
    %v803 = vld [vmem:[#allocation5 + $0x2f8] sm:$0xff]
    %v804 = vld [vmem:[#allocation5 + $0x300] sm:$0xff]
    %v805 = vld [vmem:[#allocation5 + $0x308] sm:$0xff]
    %v806 = vld [vmem:[#allocation5 + $0x310] sm:$0xff]
    %v807 = vld [vmem:[#allocation5 + $0x318] sm:$0xff]
    %v808 = vld [vmem:[#allocation5 + $0x320] sm:$0xff]
    %v809 = vld [vmem:[#allocation5 + $0x328] sm:$0xff]
    %v810 = vld [vmem:[#allocation5 + $0x330] sm:$0xff]
    %v811 = vld [vmem:[#allocation5 + $0x338] sm:$0xff]
    %v812 = vld [vmem:[#allocation5 + $0x340] sm:$0xff]
    %v813 = vld [vmem:[#allocation5 + $0x348] sm:$0xff]
    %v814 = vld [vmem:[#allocation5 + $0x350] sm:$0xff]
    %v815 = vld [vmem:[#allocation5 + $0x358] sm:$0xff]
    %v816 = vld [vmem:[#allocation5 + $0x360] sm:$0xff]
    %v817 = vld [vmem:[#allocation5 + $0x368] sm:$0xff]
    %v818 = vld [vmem:[#allocation5 + $0x370] sm:$0xff]
    %v819 = vld [vmem:[#allocation5 + $0x378] sm:$0xff]
    %v820 = vld [vmem:[#allocation5 + $0x380] sm:$0xff]
    %v821 = vld [vmem:[#allocation5 + $0x388] sm:$0xff]
    %v822 = vld [vmem:[#allocation5 + $0x390] sm:$0xff]
    %v823 = vld [vmem:[#allocation5 + $0x398] sm:$0xff]
    %v824 = vld [vmem:[#allocation5 + $0x3a0] sm:$0xff]
    %v825 = vld [vmem:[#allocation5 + $0x3a8] sm:$0xff]
    %v826 = vld [vmem:[#allocation5 + $0x3b0] sm:$0xff]
    %v827 = vld [vmem:[#allocation5 + $0x3b8] sm:$0xff]
    %v828 = vld [vmem:[#allocation5 + $0x3c0] sm:$0xff]
    %v829 = vld [vmem:[#allocation5 + $0x3c8] sm:$0xff]
    %v830 = vld [vmem:[#allocation5 + $0x3d0] sm:$0xff]
    %v831 = vld [vmem:[#allocation5 + $0x3d8] sm:$0xff]
    %v832 = vld [vmem:[#allocation5 + $0x3e0] sm:$0xff]
    %v833 = vld [vmem:[#allocation5 + $0x3e8] sm:$0xff]
    %v834 = vld [vmem:[#allocation5 + $0x3f0] sm:$0xff]
    %v835 = vld [vmem:[#allocation5 + $0x3f8] sm:$0xff]
    %v836 = vld [vmem:[#allocation5 + $0x400] sm:$0xff]
    %v837 = vld [vmem:[#allocation5 + $0x408] sm:$0xff]
    %v838 = vld [vmem:[#allocation5 + $0x410] sm:$0xff]
    %v839 = vld [vmem:[#allocation5 + $0x418] sm:$0xff]
    %v840 = vld [vmem:[#allocation5 + $0x420] sm:$0xff]
    %v841 = vld [vmem:[#allocation5 + $0x428] sm:$0xff]
    %v842 = vld [vmem:[#allocation5 + $0x430] sm:$0xff]
    %v843 = vld [vmem:[#allocation5 + $0x438] sm:$0xff]
    %v844 = vld [vmem:[#allocation5 + $0x440] sm:$0xff]
    %v845 = vld [vmem:[#allocation5 + $0x448] sm:$0xff]
    %v846 = vld [vmem:[#allocation5 + $0x450] sm:$0xff]
    %v847 = vld [vmem:[#allocation5 + $0x458] sm:$0xff]
    %v848 = vld [vmem:[#allocation5 + $0x460] sm:$0xff]
    %v849 = vld [vmem:[#allocation5 + $0x468] sm:$0xff]
    %v850 = vld [vmem:[#allocation5 + $0x470] sm:$0xff]
    %v851 = vld [vmem:[#allocation5 + $0x478] sm:$0xff]
    %v852 = vld [vmem:[#allocation5 + $0x480] sm:$0xff]
    %v853 = vld [vmem:[#allocation5 + $0x488] sm:$0xff]
    %v854 = vld [vmem:[#allocation5 + $0x490] sm:$0xff]
    %v855 = vld [vmem:[#allocation5 + $0x498] sm:$0xff]
    %v856 = vld [vmem:[#allocation5 + $0x4a0] sm:$0xff]
    %v857 = vld [vmem:[#allocation5 + $0x4a8] sm:$0xff]
    %v858 = vld [vmem:[#allocation5 + $0x4b0] sm:$0xff]
    %v859 = vld [vmem:[#allocation5 + $0x4b8] sm:$0xff]
    %v860 = vld [vmem:[#allocation5 + $0x4c0] sm:$0xff]
    %v861 = vld [vmem:[#allocation5 + $0x4c8] sm:$0xff]
    %v862 = vld [vmem:[#allocation5 + $0x4d0] sm:$0xff]
    %v863 = vld [vmem:[#allocation5 + $0x4d8] sm:$0xff]
    %v864 = vld [vmem:[#allocation5 + $0x4e0] sm:$0xff]
    %v865 = vld [vmem:[#allocation5 + $0x4e8] sm:$0xff]
    %v866 = vld [vmem:[#allocation5 + $0x4f0] sm:$0xff]
    %v867 = vld [vmem:[#allocation5 + $0x4f8] sm:$0xff]
    %v868 = vld [vmem:[#allocation5 + $0x500] sm:$0xff]
    %v869 = vld [vmem:[#allocation5 + $0x508] sm:$0xff]
    %v870 = vld [vmem:[#allocation5 + $0x510] sm:$0xff]
    %v871 = vld [vmem:[#allocation5 + $0x518] sm:$0xff]
    %v872 = vld [vmem:[#allocation5 + $0x520] sm:$0xff]
    %v873 = vld [vmem:[#allocation5 + $0x528] sm:$0xff]
    %v874 = vld [vmem:[#allocation5 + $0x530] sm:$0xff]
    %v875 = vld [vmem:[#allocation5 + $0x538] sm:$0xff]
    %v876 = vld [vmem:[#allocation5 + $0x540] sm:$0xff]
    %v877 = vld [vmem:[#allocation5 + $0x548] sm:$0xff]
    %v878 = vld [vmem:[#allocation5 + $0x550] sm:$0xff]
    %v879 = vld [vmem:[#allocation5 + $0x558] sm:$0xff]
    %v880 = vld [vmem:[#allocation5 + $0x560] sm:$0xff]
    %v881 = vld [vmem:[#allocation5 + $0x568] sm:$0xff]
    %v882 = vld [vmem:[#allocation5 + $0x570] sm:$0xff]
    %v883 = vld [vmem:[#allocation5 + $0x578] sm:$0xff]
    %v884 = vld [vmem:[#allocation5 + $0x580] sm:$0xff]
    %v885 = vld [vmem:[#allocation5 + $0x588] sm:$0xff]
    %v886 = vld [vmem:[#allocation5 + $0x590] sm:$0xff]
    %v887 = vld [vmem:[#allocation5 + $0x598] sm:$0xff]
    %v888 = vld [vmem:[#allocation5 + $0x5a0] sm:$0xff]
    %v889 = vld [vmem:[#allocation5 + $0x5a8] sm:$0xff]
    %v890 = vld [vmem:[#allocation5 + $0x5b0] sm:$0xff]
    %v891 = vld [vmem:[#allocation5 + $0x5b8] sm:$0xff]
    %v892 = vld [vmem:[#allocation5 + $0x5c0] sm:$0xff]
    %v893 = vld [vmem:[#allocation5 + $0x5c8] sm:$0xff]
    %v894 = vld [vmem:[#allocation5 + $0x5d0] sm:$0xff]
    %v895 = vld [vmem:[#allocation5 + $0x5d8] sm:$0xff]
    %v896 = vld [vmem:[#allocation5 + $0x5e0] sm:$0xff]
    %v897 = vld [vmem:[#allocation5 + $0x5e8] sm:$0xff]
    %v898 = vld [vmem:[#allocation5 + $0x5f0] sm:$0xff]
    %v899 = vld [vmem:[#allocation5 + $0x5f8] sm:$0xff]
    %v900 = vld [vmem:[#allocation5 + $0x600] sm:$0xff]
    %v901 = vld [vmem:[#allocation5 + $0x608] sm:$0xff]
    %v902 = vld [vmem:[#allocation5 + $0x610] sm:$0xff]
    %v903 = vld [vmem:[#allocation5 + $0x618] sm:$0xff]
    %v904 = vld [vmem:[#allocation5 + $0x620] sm:$0xff]
    %v905 = vld [vmem:[#allocation5 + $0x628] sm:$0xff]
    %v906 = vld [vmem:[#allocation5 + $0x630] sm:$0xff]
    %v907 = vld [vmem:[#allocation5 + $0x638] sm:$0xff]
    %v908 = vld [vmem:[#allocation5 + $0x640] sm:$0xff]
    %v909 = vld [vmem:[#allocation5 + $0x648] sm:$0xff]
    %v910 = vld [vmem:[#allocation5 + $0x650] sm:$0xff]
    %v911 = vld [vmem:[#allocation5 + $0x658] sm:$0xff]
    %v912 = vld [vmem:[#allocation5 + $0x660] sm:$0xff]
    %v913 = vld [vmem:[#allocation5 + $0x668] sm:$0xff]
    %v914 = vld [vmem:[#allocation5 + $0x670] sm:$0xff]
    %v915 = vld [vmem:[#allocation5 + $0x678] sm:$0xff]
    %v916 = vld [vmem:[#allocation5 + $0x680] sm:$0xff]
    %v917 = vld [vmem:[#allocation5 + $0x688] sm:$0xff]
    %v918 = vld [vmem:[#allocation5 + $0x690] sm:$0xff]
    %v919 = vld [vmem:[#allocation5 + $0x698] sm:$0xff]
    %v920 = vld [vmem:[#allocation5 + $0x6a0] sm:$0xff]
    %v921 = vld [vmem:[#allocation5 + $0x6a8] sm:$0xff]
    %v922 = vld [vmem:[#allocation5 + $0x6b0] sm:$0xff]
    %v923 = vld [vmem:[#allocation5 + $0x6b8] sm:$0xff]
    %v924 = vld [vmem:[#allocation5 + $0x6c0] sm:$0xff]
    %v925 = vld [vmem:[#allocation5 + $0x6c8] sm:$0xff]
    %v926 = vld [vmem:[#allocation5 + $0x6d0] sm:$0xff]
    %v927 = vld [vmem:[#allocation5 + $0x6d8] sm:$0xff]
    %v928 = vld [vmem:[#allocation5 + $0x6e0] sm:$0xff]
    %v929 = vld [vmem:[#allocation5 + $0x6e8] sm:$0xff]
    %v930 = vld [vmem:[#allocation5 + $0x6f0] sm:$0xff]
    %v931 = vld [vmem:[#allocation5 + $0x6f8] sm:$0xff]
    %v932 = vld [vmem:[#allocation5 + $0x700] sm:$0xff]
    %v933 = vld [vmem:[#allocation5 + $0x708] sm:$0xff]
    %v934 = vld [vmem:[#allocation5 + $0x710] sm:$0xff]
    %v935 = vld [vmem:[#allocation5 + $0x718] sm:$0xff]
    %v936 = vld [vmem:[#allocation5 + $0x720] sm:$0xff]
    %v937 = vld [vmem:[#allocation5 + $0x728] sm:$0xff]
    %v938 = vld [vmem:[#allocation5 + $0x730] sm:$0xff]
    %v939 = vld [vmem:[#allocation5 + $0x738] sm:$0xff]
    %v940 = vld [vmem:[#allocation5 + $0x740] sm:$0xff]
    %v941 = vld [vmem:[#allocation5 + $0x748] sm:$0xff]
    %v942 = vld [vmem:[#allocation5 + $0x750] sm:$0xff]
    %v943 = vld [vmem:[#allocation5 + $0x758] sm:$0xff]
    %v944 = vld [vmem:[#allocation5 + $0x760] sm:$0xff]
    %v945 = vld [vmem:[#allocation5 + $0x768] sm:$0xff]
    %v946 = vld [vmem:[#allocation5 + $0x770] sm:$0xff]
    %v947 = vld [vmem:[#allocation5 + $0x778] sm:$0xff]
    %v948 = vld [vmem:[#allocation5 + $0x780] sm:$0xff]
    %v949 = vld [vmem:[#allocation5 + $0x788] sm:$0xff]
    %v950 = vld [vmem:[#allocation5 + $0x790] sm:$0xff]
    %v951 = vld [vmem:[#allocation5 + $0x798] sm:$0xff]
    %v952 = vld [vmem:[#allocation5 + $0x7a0] sm:$0xff]
    %v953 = vld [vmem:[#allocation5 + $0x7a8] sm:$0xff]
    %v954 = vld [vmem:[#allocation5 + $0x7b0] sm:$0xff]
    %v955 = vld [vmem:[#allocation5 + $0x7b8] sm:$0xff]
    %v956 = vld [vmem:[#allocation5 + $0x7c0] sm:$0xff]
    %v957 = vld [vmem:[#allocation5 + $0x7c8] sm:$0xff]
    %v958 = vld [vmem:[#allocation5 + $0x7d0] sm:$0xff]
    %v959 = vld [vmem:[#allocation5 + $0x7d8] sm:$0xff]
    %v960 = vld [vmem:[#allocation5 + $0x7e0] sm:$0xff]
    %v961 = vld [vmem:[#allocation5 + $0x7e8] sm:$0xff]
    %v962 = vld [vmem:[#allocation5 + $0x7f0] sm:$0xff]
    %v963 = vld [vmem:[#allocation5 + $0x7f8] sm:$0xff]
    %v964 = vld [vmem:[%s6] sm:$0xff]
    %v966 = vlaneseq
    %v967 = vshrl.u32 %v966, 7
    %v968 = vsub.s32 0, %v967
    %v969 = vrot.slane %v964, %v968
    %v970 = vlaneseq
    %v971 = vshrl.u32 %v970, 7
    %v972 = vsub.s32 1, %v971
    %v973 = vrot.slane %v964, %v972
    %v974 = vlaneseq
    %v975 = vshrl.u32 %v974, 7
    %v976 = vsub.s32 2, %v975
    %v977 = vrot.slane %v964, %v976
    %v978 = vlaneseq
    %v979 = vshrl.u32 %v978, 7
    %v980 = vsub.s32 3, %v979
    %v981 = vrot.slane %v964, %v980
    %v982 = vlaneseq
    %v983 = vshrl.u32 %v982, 7
    %v984 = vsub.s32 4, %v983
    %v985 = vrot.slane %v964, %v984
    %v986 = vlaneseq
    %v987 = vshrl.u32 %v986, 7
    %v988 = vsub.s32 5, %v987
    %v989 = vrot.slane %v964, %v988
    %v990 = vlaneseq
    %v991 = vshrl.u32 %v990, 7
    %v992 = vsub.s32 6, %v991
    %v993 = vrot.slane %v964, %v992
    %v994 = vlaneseq
    %v995 = vshrl.u32 %v994, 7
    %v996 = vsub.s32 7, %v995
    %v997 = vrot.slane %v964, %v996
    %v1262 = vunpack.c.l.b16 %v708
    %v1263 = vunpack.c.h.b16 %v708
    %v1264 = vunpack.c.l.b16 %v709
    %v1265 = vunpack.c.h.b16 %v709
    %v1266 = vunpack.c.l.b16 %v710
    %v1267 = vunpack.c.h.b16 %v710
    %v1268 = vunpack.c.l.b16 %v711
    %v1269 = vunpack.c.h.b16 %v711
    %v1270 = vunpack.c.l.b16 %v712
    %v1271 = vunpack.c.h.b16 %v712
    %v1272 = vunpack.c.l.b16 %v713
    %v1273 = vunpack.c.h.b16 %v713
    %v1274 = vunpack.c.l.b16 %v714
    %v1275 = vunpack.c.h.b16 %v714
    %v1276 = vunpack.c.l.b16 %v715
    %v1277 = vunpack.c.h.b16 %v715
    %v1278 = vunpack.c.l.b16 %v716
    %v1279 = vunpack.c.h.b16 %v716
    %v1280 = vunpack.c.l.b16 %v717
    %v1281 = vunpack.c.h.b16 %v717
    %v1282 = vunpack.c.l.b16 %v718
    %v1283 = vunpack.c.h.b16 %v718
    %v1284 = vunpack.c.l.b16 %v719
    %v1285 = vunpack.c.h.b16 %v719
    %v1286 = vunpack.c.l.b16 %v720
    %v1287 = vunpack.c.h.b16 %v720
    %v1288 = vunpack.c.l.b16 %v721
    %v1289 = vunpack.c.h.b16 %v721
    %v1290 = vunpack.c.l.b16 %v722
    %v1291 = vunpack.c.h.b16 %v722
    %v1292 = vunpack.c.l.b16 %v723
    %v1293 = vunpack.c.h.b16 %v723
    %v1294 = vunpack.c.l.b16 %v724
    %v1295 = vunpack.c.h.b16 %v724
    %v1296 = vunpack.c.l.b16 %v725
    %v1297 = vunpack.c.h.b16 %v725
    %v1298 = vunpack.c.l.b16 %v726
    %v1299 = vunpack.c.h.b16 %v726
    %v1300 = vunpack.c.l.b16 %v727
    %v1301 = vunpack.c.h.b16 %v727
    %v1302 = vunpack.c.l.b16 %v728
    %v1303 = vunpack.c.h.b16 %v728
    %v1304 = vunpack.c.l.b16 %v729
    %v1305 = vunpack.c.h.b16 %v729
    %v1306 = vunpack.c.l.b16 %v730
    %v1307 = vunpack.c.h.b16 %v730
    %v1308 = vunpack.c.l.b16 %v731
    %v1309 = vunpack.c.h.b16 %v731
    %v1310 = vunpack.c.l.b16 %v732
    %v1311 = vunpack.c.h.b16 %v732
    %v1312 = vunpack.c.l.b16 %v733
    %v1313 = vunpack.c.h.b16 %v733
    %v1314 = vunpack.c.l.b16 %v734
    %v1315 = vunpack.c.h.b16 %v734
    %v1316 = vunpack.c.l.b16 %v735
    %v1317 = vunpack.c.h.b16 %v735
    %v1318 = vunpack.c.l.b16 %v736
    %v1319 = vunpack.c.h.b16 %v736
    %v1320 = vunpack.c.l.b16 %v737
    %v1321 = vunpack.c.h.b16 %v737
    %v1322 = vunpack.c.l.b16 %v738
    %v1323 = vunpack.c.h.b16 %v738
    %v1324 = vunpack.c.l.b16 %v739
    %v1325 = vunpack.c.h.b16 %v739
    %v1326 = vunpack.c.l.b16 %v740
    %v1327 = vunpack.c.h.b16 %v740
    %v1328 = vunpack.c.l.b16 %v741
    %v1329 = vunpack.c.h.b16 %v741
    %v1330 = vunpack.c.l.b16 %v742
    %v1331 = vunpack.c.h.b16 %v742
    %v1332 = vunpack.c.l.b16 %v743
    %v1333 = vunpack.c.h.b16 %v743
    %v1334 = vunpack.c.l.b16 %v744
    %v1335 = vunpack.c.h.b16 %v744
    %v1336 = vunpack.c.l.b16 %v745
    %v1337 = vunpack.c.h.b16 %v745
    %v1338 = vunpack.c.l.b16 %v746
    %v1339 = vunpack.c.h.b16 %v746
    %v1340 = vunpack.c.l.b16 %v747
    %v1341 = vunpack.c.h.b16 %v747
    %v1342 = vunpack.c.l.b16 %v748
    %v1343 = vunpack.c.h.b16 %v748
    %v1344 = vunpack.c.l.b16 %v749
    %v1345 = vunpack.c.h.b16 %v749
    %v1346 = vunpack.c.l.b16 %v750
    %v1347 = vunpack.c.h.b16 %v750
    %v1348 = vunpack.c.l.b16 %v751
    %v1349 = vunpack.c.h.b16 %v751
    %v1350 = vunpack.c.l.b16 %v752
    %v1351 = vunpack.c.h.b16 %v752
    %v1352 = vunpack.c.l.b16 %v753
    %v1353 = vunpack.c.h.b16 %v753
    %v1354 = vunpack.c.l.b16 %v754
    %v1355 = vunpack.c.h.b16 %v754
    %v1356 = vunpack.c.l.b16 %v755
    %v1357 = vunpack.c.h.b16 %v755
    %v1358 = vunpack.c.l.b16 %v756
    %v1359 = vunpack.c.h.b16 %v756
    %v1360 = vunpack.c.l.b16 %v757
    %v1361 = vunpack.c.h.b16 %v757
    %v1362 = vunpack.c.l.b16 %v758
    %v1363 = vunpack.c.h.b16 %v758
    %v1364 = vunpack.c.l.b16 %v759
    %v1365 = vunpack.c.h.b16 %v759
    %v1366 = vunpack.c.l.b16 %v760
    %v1367 = vunpack.c.h.b16 %v760
    %v1368 = vunpack.c.l.b16 %v761
    %v1369 = vunpack.c.h.b16 %v761
    %v1370 = vunpack.c.l.b16 %v762
    %v1371 = vunpack.c.h.b16 %v762
    %v1372 = vunpack.c.l.b16 %v763
    %v1373 = vunpack.c.h.b16 %v763
    %v1374 = vunpack.c.l.b16 %v764
    %v1375 = vunpack.c.h.b16 %v764
    %v1376 = vunpack.c.l.b16 %v765
    %v1377 = vunpack.c.h.b16 %v765
    %v1378 = vunpack.c.l.b16 %v766
    %v1379 = vunpack.c.h.b16 %v766
    %v1380 = vunpack.c.l.b16 %v767
    %v1381 = vunpack.c.h.b16 %v767
    %v1382 = vunpack.c.l.b16 %v768
    %v1383 = vunpack.c.h.b16 %v768
    %v1384 = vunpack.c.l.b16 %v769
    %v1385 = vunpack.c.h.b16 %v769
    %v1386 = vunpack.c.l.b16 %v770
    %v1387 = vunpack.c.h.b16 %v770
    %v1388 = vunpack.c.l.b16 %v771
    %v1389 = vunpack.c.h.b16 %v771
    %v1390 = vunpack.c.l.b16 %v772
    %v1391 = vunpack.c.h.b16 %v772
    %v1392 = vunpack.c.l.b16 %v773
    %v1393 = vunpack.c.h.b16 %v773
    %v1394 = vunpack.c.l.b16 %v774
    %v1395 = vunpack.c.h.b16 %v774
    %v1396 = vunpack.c.l.b16 %v775
    %v1397 = vunpack.c.h.b16 %v775
    %v1398 = vunpack.c.l.b16 %v776
    %v1399 = vunpack.c.h.b16 %v776
    %v1400 = vunpack.c.l.b16 %v777
    %v1401 = vunpack.c.h.b16 %v777
    %v1402 = vunpack.c.l.b16 %v778
    %v1403 = vunpack.c.h.b16 %v778
    %v1404 = vunpack.c.l.b16 %v779
    %v1405 = vunpack.c.h.b16 %v779
    %v1406 = vunpack.c.l.b16 %v780
    %v1407 = vunpack.c.h.b16 %v780
    %v1408 = vunpack.c.l.b16 %v781
    %v1409 = vunpack.c.h.b16 %v781
    %v1410 = vunpack.c.l.b16 %v782
    %v1411 = vunpack.c.h.b16 %v782
    %v1412 = vunpack.c.l.b16 %v783
    %v1413 = vunpack.c.h.b16 %v783
    %v1414 = vunpack.c.l.b16 %v784
    %v1415 = vunpack.c.h.b16 %v784
    %v1416 = vunpack.c.l.b16 %v785
    %v1417 = vunpack.c.h.b16 %v785
    %v1418 = vunpack.c.l.b16 %v786
    %v1419 = vunpack.c.h.b16 %v786
    %v1420 = vunpack.c.l.b16 %v787
    %v1421 = vunpack.c.h.b16 %v787
    %v1422 = vunpack.c.l.b16 %v788
    %v1423 = vunpack.c.h.b16 %v788
    %v1424 = vunpack.c.l.b16 %v789
    %v1425 = vunpack.c.h.b16 %v789
    %v1426 = vunpack.c.l.b16 %v790
    %v1427 = vunpack.c.h.b16 %v790
    %v1428 = vunpack.c.l.b16 %v791
    %v1429 = vunpack.c.h.b16 %v791
    %v1430 = vunpack.c.l.b16 %v792
    %v1431 = vunpack.c.h.b16 %v792
    %v1432 = vunpack.c.l.b16 %v793
    %v1433 = vunpack.c.h.b16 %v793
    %v1434 = vunpack.c.l.b16 %v794
    %v1435 = vunpack.c.h.b16 %v794
    %v1436 = vunpack.c.l.b16 %v795
    %v1437 = vunpack.c.h.b16 %v795
    %v1438 = vunpack.c.l.b16 %v796
    %v1439 = vunpack.c.h.b16 %v796
    %v1440 = vunpack.c.l.b16 %v797
    %v1441 = vunpack.c.h.b16 %v797
    %v1442 = vunpack.c.l.b16 %v798
    %v1443 = vunpack.c.h.b16 %v798
    %v1444 = vunpack.c.l.b16 %v799
    %v1445 = vunpack.c.h.b16 %v799
    %v1446 = vunpack.c.l.b16 %v800
    %v1447 = vunpack.c.h.b16 %v800
    %v1448 = vunpack.c.l.b16 %v801
    %v1449 = vunpack.c.h.b16 %v801
    %v1450 = vunpack.c.l.b16 %v802
    %v1451 = vunpack.c.h.b16 %v802
    %v1452 = vunpack.c.l.b16 %v803
    %v1453 = vunpack.c.h.b16 %v803
    %v1454 = vunpack.c.l.b16 %v804
    %v1455 = vunpack.c.h.b16 %v804
    %v1456 = vunpack.c.l.b16 %v805
    %v1457 = vunpack.c.h.b16 %v805
    %v1458 = vunpack.c.l.b16 %v806
    %v1459 = vunpack.c.h.b16 %v806
    %v1460 = vunpack.c.l.b16 %v807
    %v1461 = vunpack.c.h.b16 %v807
    %v1462 = vunpack.c.l.b16 %v808
    %v1463 = vunpack.c.h.b16 %v808
    %v1464 = vunpack.c.l.b16 %v809
    %v1465 = vunpack.c.h.b16 %v809
    %v1466 = vunpack.c.l.b16 %v810
    %v1467 = vunpack.c.h.b16 %v810
    %v1468 = vunpack.c.l.b16 %v811
    %v1469 = vunpack.c.h.b16 %v811
    %v1470 = vunpack.c.l.b16 %v812
    %v1471 = vunpack.c.h.b16 %v812
    %v1472 = vunpack.c.l.b16 %v813
    %v1473 = vunpack.c.h.b16 %v813
    %v1474 = vunpack.c.l.b16 %v814
    %v1475 = vunpack.c.h.b16 %v814
    %v1476 = vunpack.c.l.b16 %v815
    %v1477 = vunpack.c.h.b16 %v815
    %v1478 = vunpack.c.l.b16 %v816
    %v1479 = vunpack.c.h.b16 %v816
    %v1480 = vunpack.c.l.b16 %v817
    %v1481 = vunpack.c.h.b16 %v817
    %v1482 = vunpack.c.l.b16 %v818
    %v1483 = vunpack.c.h.b16 %v818
    %v1484 = vunpack.c.l.b16 %v819
    %v1485 = vunpack.c.h.b16 %v819
    %v1486 = vunpack.c.l.b16 %v820
    %v1487 = vunpack.c.h.b16 %v820
    %v1488 = vunpack.c.l.b16 %v821
    %v1489 = vunpack.c.h.b16 %v821
    %v1490 = vunpack.c.l.b16 %v822
    %v1491 = vunpack.c.h.b16 %v822
    %v1492 = vunpack.c.l.b16 %v823
    %v1493 = vunpack.c.h.b16 %v823
    %v1494 = vunpack.c.l.b16 %v824
    %v1495 = vunpack.c.h.b16 %v824
    %v1496 = vunpack.c.l.b16 %v825
    %v1497 = vunpack.c.h.b16 %v825
    %v1498 = vunpack.c.l.b16 %v826
    %v1499 = vunpack.c.h.b16 %v826
    %v1500 = vunpack.c.l.b16 %v827
    %v1501 = vunpack.c.h.b16 %v827
    %v1502 = vunpack.c.l.b16 %v828
    %v1503 = vunpack.c.h.b16 %v828
    %v1504 = vunpack.c.l.b16 %v829
    %v1505 = vunpack.c.h.b16 %v829
    %v1506 = vunpack.c.l.b16 %v830
    %v1507 = vunpack.c.h.b16 %v830
    %v1508 = vunpack.c.l.b16 %v831
    %v1509 = vunpack.c.h.b16 %v831
    %v1510 = vunpack.c.l.b16 %v832
    %v1511 = vunpack.c.h.b16 %v832
    %v1512 = vunpack.c.l.b16 %v833
    %v1513 = vunpack.c.h.b16 %v833
    %v1514 = vunpack.c.l.b16 %v834
    %v1515 = vunpack.c.h.b16 %v834
    %v1516 = vunpack.c.l.b16 %v835
    %v1517 = vunpack.c.h.b16 %v835
    %v1518 = vunpack.c.l.b16 %v836
    %v1519 = vunpack.c.h.b16 %v836
    %v1520 = vunpack.c.l.b16 %v837
    %v1521 = vunpack.c.h.b16 %v837
    %v1522 = vunpack.c.l.b16 %v838
    %v1523 = vunpack.c.h.b16 %v838
    %v1524 = vunpack.c.l.b16 %v839
    %v1525 = vunpack.c.h.b16 %v839
    %v1526 = vunpack.c.l.b16 %v840
    %v1527 = vunpack.c.h.b16 %v840
    %v1528 = vunpack.c.l.b16 %v841
    %v1529 = vunpack.c.h.b16 %v841
    %v1530 = vunpack.c.l.b16 %v842
    %v1531 = vunpack.c.h.b16 %v842
    %v1532 = vunpack.c.l.b16 %v843
    %v1533 = vunpack.c.h.b16 %v843
    %v1534 = vunpack.c.l.b16 %v844
    %v1535 = vunpack.c.h.b16 %v844
    %v1536 = vunpack.c.l.b16 %v845
    %v1537 = vunpack.c.h.b16 %v845
    %v1538 = vunpack.c.l.b16 %v846
    %v1539 = vunpack.c.h.b16 %v846
    %v1540 = vunpack.c.l.b16 %v847
    %v1541 = vunpack.c.h.b16 %v847
    %v1542 = vunpack.c.l.b16 %v848
    %v1543 = vunpack.c.h.b16 %v848
    %v1544 = vunpack.c.l.b16 %v849
    %v1545 = vunpack.c.h.b16 %v849
    %v1546 = vunpack.c.l.b16 %v850
    %v1547 = vunpack.c.h.b16 %v850
    %v1548 = vunpack.c.l.b16 %v851
    %v1549 = vunpack.c.h.b16 %v851
    %v1550 = vunpack.c.l.b16 %v852
    %v1551 = vunpack.c.h.b16 %v852
    %v1552 = vunpack.c.l.b16 %v853
    %v1553 = vunpack.c.h.b16 %v853
    %v1554 = vunpack.c.l.b16 %v854
    %v1555 = vunpack.c.h.b16 %v854
    %v1556 = vunpack.c.l.b16 %v855
    %v1557 = vunpack.c.h.b16 %v855
    %v1558 = vunpack.c.l.b16 %v856
    %v1559 = vunpack.c.h.b16 %v856
    %v1560 = vunpack.c.l.b16 %v857
    %v1561 = vunpack.c.h.b16 %v857
    %v1562 = vunpack.c.l.b16 %v858
    %v1563 = vunpack.c.h.b16 %v858
    %v1564 = vunpack.c.l.b16 %v859
    %v1565 = vunpack.c.h.b16 %v859
    %v1566 = vunpack.c.l.b16 %v860
    %v1567 = vunpack.c.h.b16 %v860
    %v1568 = vunpack.c.l.b16 %v861
    %v1569 = vunpack.c.h.b16 %v861
    %v1570 = vunpack.c.l.b16 %v862
    %v1571 = vunpack.c.h.b16 %v862
    %v1572 = vunpack.c.l.b16 %v863
    %v1573 = vunpack.c.h.b16 %v863
    %v1574 = vunpack.c.l.b16 %v864
    %v1575 = vunpack.c.h.b16 %v864
    %v1576 = vunpack.c.l.b16 %v865
    %v1577 = vunpack.c.h.b16 %v865
    %v1578 = vunpack.c.l.b16 %v866
    %v1579 = vunpack.c.h.b16 %v866
    %v1580 = vunpack.c.l.b16 %v867
    %v1581 = vunpack.c.h.b16 %v867
    %v1582 = vunpack.c.l.b16 %v868
    %v1583 = vunpack.c.h.b16 %v868
    %v1584 = vunpack.c.l.b16 %v869
    %v1585 = vunpack.c.h.b16 %v869
    %v1586 = vunpack.c.l.b16 %v870
    %v1587 = vunpack.c.h.b16 %v870
    %v1588 = vunpack.c.l.b16 %v871
    %v1589 = vunpack.c.h.b16 %v871
    %v1590 = vunpack.c.l.b16 %v872
    %v1591 = vunpack.c.h.b16 %v872
    %v1592 = vunpack.c.l.b16 %v873
    %v1593 = vunpack.c.h.b16 %v873
    %v1594 = vunpack.c.l.b16 %v874
    %v1595 = vunpack.c.h.b16 %v874
    %v1596 = vunpack.c.l.b16 %v875
    %v1597 = vunpack.c.h.b16 %v875
    %v1598 = vunpack.c.l.b16 %v876
    %v1599 = vunpack.c.h.b16 %v876
    %v1600 = vunpack.c.l.b16 %v877
    %v1601 = vunpack.c.h.b16 %v877
    %v1602 = vunpack.c.l.b16 %v878
    %v1603 = vunpack.c.h.b16 %v878
    %v1604 = vunpack.c.l.b16 %v879
    %v1605 = vunpack.c.h.b16 %v879
    %v1606 = vunpack.c.l.b16 %v880
    %v1607 = vunpack.c.h.b16 %v880
    %v1608 = vunpack.c.l.b16 %v881
    %v1609 = vunpack.c.h.b16 %v881
    %v1610 = vunpack.c.l.b16 %v882
    %v1611 = vunpack.c.h.b16 %v882
    %v1612 = vunpack.c.l.b16 %v883
    %v1613 = vunpack.c.h.b16 %v883
    %v1614 = vunpack.c.l.b16 %v884
    %v1615 = vunpack.c.h.b16 %v884
    %v1616 = vunpack.c.l.b16 %v885
    %v1617 = vunpack.c.h.b16 %v885
    %v1618 = vunpack.c.l.b16 %v886
    %v1619 = vunpack.c.h.b16 %v886
    %v1620 = vunpack.c.l.b16 %v887
    %v1621 = vunpack.c.h.b16 %v887
    %v1622 = vunpack.c.l.b16 %v888
    %v1623 = vunpack.c.h.b16 %v888
    %v1624 = vunpack.c.l.b16 %v889
    %v1625 = vunpack.c.h.b16 %v889
    %v1626 = vunpack.c.l.b16 %v890
    %v1627 = vunpack.c.h.b16 %v890
    %v1628 = vunpack.c.l.b16 %v891
    %v1629 = vunpack.c.h.b16 %v891
    %v1630 = vunpack.c.l.b16 %v892
    %v1631 = vunpack.c.h.b16 %v892
    %v1632 = vunpack.c.l.b16 %v893
    %v1633 = vunpack.c.h.b16 %v893
    %v1634 = vunpack.c.l.b16 %v894
    %v1635 = vunpack.c.h.b16 %v894
    %v1636 = vunpack.c.l.b16 %v895
    %v1637 = vunpack.c.h.b16 %v895
    %v1638 = vunpack.c.l.b16 %v896
    %v1639 = vunpack.c.h.b16 %v896
    %v1640 = vunpack.c.l.b16 %v897
    %v1641 = vunpack.c.h.b16 %v897
    %v1642 = vunpack.c.l.b16 %v898
    %v1643 = vunpack.c.h.b16 %v898
    %v1644 = vunpack.c.l.b16 %v899
    %v1645 = vunpack.c.h.b16 %v899
    %v1646 = vunpack.c.l.b16 %v900
    %v1647 = vunpack.c.h.b16 %v900
    %v1648 = vunpack.c.l.b16 %v901
    %v1649 = vunpack.c.h.b16 %v901
    %v1650 = vunpack.c.l.b16 %v902
    %v1651 = vunpack.c.h.b16 %v902
    %v1652 = vunpack.c.l.b16 %v903
    %v1653 = vunpack.c.h.b16 %v903
    %v1654 = vunpack.c.l.b16 %v904
    %v1655 = vunpack.c.h.b16 %v904
    %v1656 = vunpack.c.l.b16 %v905
    %v1657 = vunpack.c.h.b16 %v905
    %v1658 = vunpack.c.l.b16 %v906
    %v1659 = vunpack.c.h.b16 %v906
    %v1660 = vunpack.c.l.b16 %v907
    %v1661 = vunpack.c.h.b16 %v907
    %v1662 = vunpack.c.l.b16 %v908
    %v1663 = vunpack.c.h.b16 %v908
    %v1664 = vunpack.c.l.b16 %v909
    %v1665 = vunpack.c.h.b16 %v909
    %v1666 = vunpack.c.l.b16 %v910
    %v1667 = vunpack.c.h.b16 %v910
    %v1668 = vunpack.c.l.b16 %v911
    %v1669 = vunpack.c.h.b16 %v911
    %v1670 = vunpack.c.l.b16 %v912
    %v1671 = vunpack.c.h.b16 %v912
    %v1672 = vunpack.c.l.b16 %v913
    %v1673 = vunpack.c.h.b16 %v913
    %v1674 = vunpack.c.l.b16 %v914
    %v1675 = vunpack.c.h.b16 %v914
    %v1676 = vunpack.c.l.b16 %v915
    %v1677 = vunpack.c.h.b16 %v915
    %v1678 = vunpack.c.l.b16 %v916
    %v1679 = vunpack.c.h.b16 %v916
    %v1680 = vunpack.c.l.b16 %v917
    %v1681 = vunpack.c.h.b16 %v917
    %v1682 = vunpack.c.l.b16 %v918
    %v1683 = vunpack.c.h.b16 %v918
    %v1684 = vunpack.c.l.b16 %v919
    %v1685 = vunpack.c.h.b16 %v919
    %v1686 = vunpack.c.l.b16 %v920
    %v1687 = vunpack.c.h.b16 %v920
    %v1688 = vunpack.c.l.b16 %v921
    %v1689 = vunpack.c.h.b16 %v921
    %v1690 = vunpack.c.l.b16 %v922
    %v1691 = vunpack.c.h.b16 %v922
    %v1692 = vunpack.c.l.b16 %v923
    %v1693 = vunpack.c.h.b16 %v923
    %v1694 = vunpack.c.l.b16 %v924
    %v1695 = vunpack.c.h.b16 %v924
    %v1696 = vunpack.c.l.b16 %v925
    %v1697 = vunpack.c.h.b16 %v925
    %v1698 = vunpack.c.l.b16 %v926
    %v1699 = vunpack.c.h.b16 %v926
    %v1700 = vunpack.c.l.b16 %v927
    %v1701 = vunpack.c.h.b16 %v927
    %v1702 = vunpack.c.l.b16 %v928
    %v1703 = vunpack.c.h.b16 %v928
    %v1704 = vunpack.c.l.b16 %v929
    %v1705 = vunpack.c.h.b16 %v929
    %v1706 = vunpack.c.l.b16 %v930
    %v1707 = vunpack.c.h.b16 %v930
    %v1708 = vunpack.c.l.b16 %v931
    %v1709 = vunpack.c.h.b16 %v931
    %v1710 = vunpack.c.l.b16 %v932
    %v1711 = vunpack.c.h.b16 %v932
    %v1712 = vunpack.c.l.b16 %v933
    %v1713 = vunpack.c.h.b16 %v933
    %v1714 = vunpack.c.l.b16 %v934
    %v1715 = vunpack.c.h.b16 %v934
    %v1716 = vunpack.c.l.b16 %v935
    %v1717 = vunpack.c.h.b16 %v935
    %v1718 = vunpack.c.l.b16 %v936
    %v1719 = vunpack.c.h.b16 %v936
    %v1720 = vunpack.c.l.b16 %v937
    %v1721 = vunpack.c.h.b16 %v937
    %v1722 = vunpack.c.l.b16 %v938
    %v1723 = vunpack.c.h.b16 %v938
    %v1724 = vunpack.c.l.b16 %v939
    %v1725 = vunpack.c.h.b16 %v939
    %v1726 = vunpack.c.l.b16 %v940
    %v1727 = vunpack.c.h.b16 %v940
    %v1728 = vunpack.c.l.b16 %v941
    %v1729 = vunpack.c.h.b16 %v941
    %v1730 = vunpack.c.l.b16 %v942
    %v1731 = vunpack.c.h.b16 %v942
    %v1732 = vunpack.c.l.b16 %v943
    %v1733 = vunpack.c.h.b16 %v943
    %v1734 = vunpack.c.l.b16 %v944
    %v1735 = vunpack.c.h.b16 %v944
    %v1736 = vunpack.c.l.b16 %v945
    %v1737 = vunpack.c.h.b16 %v945
    %v1738 = vunpack.c.l.b16 %v946
    %v1739 = vunpack.c.h.b16 %v946
    %v1740 = vunpack.c.l.b16 %v947
    %v1741 = vunpack.c.h.b16 %v947
    %v1742 = vunpack.c.l.b16 %v948
    %v1743 = vunpack.c.h.b16 %v948
    %v1744 = vunpack.c.l.b16 %v949
    %v1745 = vunpack.c.h.b16 %v949
    %v1746 = vunpack.c.l.b16 %v950
    %v1747 = vunpack.c.h.b16 %v950
    %v1748 = vunpack.c.l.b16 %v951
    %v1749 = vunpack.c.h.b16 %v951
    %v1750 = vunpack.c.l.b16 %v952
    %v1751 = vunpack.c.h.b16 %v952
    %v1752 = vunpack.c.l.b16 %v953
    %v1753 = vunpack.c.h.b16 %v953
    %v1754 = vunpack.c.l.b16 %v954
    %v1755 = vunpack.c.h.b16 %v954
    %v1756 = vunpack.c.l.b16 %v955
    %v1757 = vunpack.c.h.b16 %v955
    %v1758 = vunpack.c.l.b16 %v956
    %v1759 = vunpack.c.h.b16 %v956
    %v1760 = vunpack.c.l.b16 %v957
    %v1761 = vunpack.c.h.b16 %v957
    %v1762 = vunpack.c.l.b16 %v958
    %v1763 = vunpack.c.h.b16 %v958
    %v1764 = vunpack.c.l.b16 %v959
    %v1765 = vunpack.c.h.b16 %v959
    %v1766 = vunpack.c.l.b16 %v960
    %v1767 = vunpack.c.h.b16 %v960
    %v1768 = vunpack.c.l.b16 %v961
    %v1769 = vunpack.c.h.b16 %v961
    %v1770 = vunpack.c.l.b16 %v962
    %v1771 = vunpack.c.h.b16 %v962
    %v1772 = vunpack.c.l.b16 %v963
    %v1773 = vunpack.c.h.b16 %v963
    %v1774 = vpack.c.b16 %v1270, %v1262
    %v1775 = vpack.c.b16 %v1271, %v1263
    %v1776 = vpack.c.b16 %v1272, %v1264
    %v1777 = vpack.c.b16 %v1273, %v1265
    %v1778 = vpack.c.b16 %v1274, %v1266
    %v1779 = vpack.c.b16 %v1275, %v1267
    %v1780 = vpack.c.b16 %v1276, %v1268
    %v1781 = vpack.c.b16 %v1277, %v1269
    %v1782 = vpack.c.b16 %v1286, %v1278
    %v1783 = vpack.c.b16 %v1287, %v1279
    %v1784 = vpack.c.b16 %v1288, %v1280
    %v1785 = vpack.c.b16 %v1289, %v1281
    %v1786 = vpack.c.b16 %v1290, %v1282
    %v1787 = vpack.c.b16 %v1291, %v1283
    %v1788 = vpack.c.b16 %v1292, %v1284
    %v1789 = vpack.c.b16 %v1293, %v1285
    %v1790 = vpack.c.b16 %v1302, %v1294
    %v1791 = vpack.c.b16 %v1303, %v1295
    %v1792 = vpack.c.b16 %v1304, %v1296
    %v1793 = vpack.c.b16 %v1305, %v1297
    %v1794 = vpack.c.b16 %v1306, %v1298
    %v1795 = vpack.c.b16 %v1307, %v1299
    %v1796 = vpack.c.b16 %v1308, %v1300
    %v1797 = vpack.c.b16 %v1309, %v1301
    %v1798 = vpack.c.b16 %v1318, %v1310
    %v1799 = vpack.c.b16 %v1319, %v1311
    %v1800 = vpack.c.b16 %v1320, %v1312
    %v1801 = vpack.c.b16 %v1321, %v1313
    %v1802 = vpack.c.b16 %v1322, %v1314
    %v1803 = vpack.c.b16 %v1323, %v1315
    %v1804 = vpack.c.b16 %v1324, %v1316
    %v1805 = vpack.c.b16 %v1325, %v1317
    %v1806 = vpack.c.b16 %v1334, %v1326
    %v1807 = vpack.c.b16 %v1335, %v1327
    %v1808 = vpack.c.b16 %v1336, %v1328
    %v1809 = vpack.c.b16 %v1337, %v1329
    %v1810 = vpack.c.b16 %v1338, %v1330
    %v1811 = vpack.c.b16 %v1339, %v1331
    %v1812 = vpack.c.b16 %v1340, %v1332
    %v1813 = vpack.c.b16 %v1341, %v1333
    %v1814 = vpack.c.b16 %v1350, %v1342
    %v1815 = vpack.c.b16 %v1351, %v1343
    %v1816 = vpack.c.b16 %v1352, %v1344
    %v1817 = vpack.c.b16 %v1353, %v1345
    %v1818 = vpack.c.b16 %v1354, %v1346
    %v1819 = vpack.c.b16 %v1355, %v1347
    %v1820 = vpack.c.b16 %v1356, %v1348
    %v1821 = vpack.c.b16 %v1357, %v1349
    %v1822 = vpack.c.b16 %v1366, %v1358
    %v1823 = vpack.c.b16 %v1367, %v1359
    %v1824 = vpack.c.b16 %v1368, %v1360
    %v1825 = vpack.c.b16 %v1369, %v1361
    %v1826 = vpack.c.b16 %v1370, %v1362
    %v1827 = vpack.c.b16 %v1371, %v1363
    %v1828 = vpack.c.b16 %v1372, %v1364
    %v1829 = vpack.c.b16 %v1373, %v1365
    %v1830 = vpack.c.b16 %v1382, %v1374
    %v1831 = vpack.c.b16 %v1383, %v1375
    %v1832 = vpack.c.b16 %v1384, %v1376
    %v1833 = vpack.c.b16 %v1385, %v1377
    %v1834 = vpack.c.b16 %v1386, %v1378
    %v1835 = vpack.c.b16 %v1387, %v1379
    %v1836 = vpack.c.b16 %v1388, %v1380
    %v1837 = vpack.c.b16 %v1389, %v1381
    %v1838 = vpack.c.b16 %v1398, %v1390
    %v1839 = vpack.c.b16 %v1399, %v1391
    %v1840 = vpack.c.b16 %v1400, %v1392
    %v1841 = vpack.c.b16 %v1401, %v1393
    %v1842 = vpack.c.b16 %v1402, %v1394
    %v1843 = vpack.c.b16 %v1403, %v1395
    %v1844 = vpack.c.b16 %v1404, %v1396
    %v1845 = vpack.c.b16 %v1405, %v1397
    %v1846 = vpack.c.b16 %v1414, %v1406
    %v1847 = vpack.c.b16 %v1415, %v1407
    %v1848 = vpack.c.b16 %v1416, %v1408
    %v1849 = vpack.c.b16 %v1417, %v1409
    %v1850 = vpack.c.b16 %v1418, %v1410
    %v1851 = vpack.c.b16 %v1419, %v1411
    %v1852 = vpack.c.b16 %v1420, %v1412
    %v1853 = vpack.c.b16 %v1421, %v1413
    %v1854 = vpack.c.b16 %v1430, %v1422
    %v1855 = vpack.c.b16 %v1431, %v1423
    %v1856 = vpack.c.b16 %v1432, %v1424
    %v1857 = vpack.c.b16 %v1433, %v1425
    %v1858 = vpack.c.b16 %v1434, %v1426
    %v1859 = vpack.c.b16 %v1435, %v1427
    %v1860 = vpack.c.b16 %v1436, %v1428
    %v1861 = vpack.c.b16 %v1437, %v1429
    %v1862 = vpack.c.b16 %v1446, %v1438
    %v1863 = vpack.c.b16 %v1447, %v1439
    %v1864 = vpack.c.b16 %v1448, %v1440
    %v1865 = vpack.c.b16 %v1449, %v1441
    %v1866 = vpack.c.b16 %v1450, %v1442
    %v1867 = vpack.c.b16 %v1451, %v1443
    %v1868 = vpack.c.b16 %v1452, %v1444
    %v1869 = vpack.c.b16 %v1453, %v1445
    %v1870 = vpack.c.b16 %v1462, %v1454
    %v1871 = vpack.c.b16 %v1463, %v1455
    %v1872 = vpack.c.b16 %v1464, %v1456
    %v1873 = vpack.c.b16 %v1465, %v1457
    %v1874 = vpack.c.b16 %v1466, %v1458
    %v1875 = vpack.c.b16 %v1467, %v1459
    %v1876 = vpack.c.b16 %v1468, %v1460
    %v1877 = vpack.c.b16 %v1469, %v1461
    %v1878 = vpack.c.b16 %v1478, %v1470
    %v1879 = vpack.c.b16 %v1479, %v1471
    %v1880 = vpack.c.b16 %v1480, %v1472
    %v1881 = vpack.c.b16 %v1481, %v1473
    %v1882 = vpack.c.b16 %v1482, %v1474
    %v1883 = vpack.c.b16 %v1483, %v1475
    %v1884 = vpack.c.b16 %v1484, %v1476
    %v1885 = vpack.c.b16 %v1485, %v1477
    %v1886 = vpack.c.b16 %v1494, %v1486
    %v1887 = vpack.c.b16 %v1495, %v1487
    %v1888 = vpack.c.b16 %v1496, %v1488
    %v1889 = vpack.c.b16 %v1497, %v1489
    %v1890 = vpack.c.b16 %v1498, %v1490
    %v1891 = vpack.c.b16 %v1499, %v1491
    %v1892 = vpack.c.b16 %v1500, %v1492
    %v1893 = vpack.c.b16 %v1501, %v1493
    %v1894 = vpack.c.b16 %v1510, %v1502
    %v1895 = vpack.c.b16 %v1511, %v1503
    %v1896 = vpack.c.b16 %v1512, %v1504
    %v1897 = vpack.c.b16 %v1513, %v1505
    %v1898 = vpack.c.b16 %v1514, %v1506
    %v1899 = vpack.c.b16 %v1515, %v1507
    %v1900 = vpack.c.b16 %v1516, %v1508
    %v1901 = vpack.c.b16 %v1517, %v1509
    %v1902 = vpack.c.b16 %v1526, %v1518
    %v1903 = vpack.c.b16 %v1527, %v1519
    %v1904 = vpack.c.b16 %v1528, %v1520
    %v1905 = vpack.c.b16 %v1529, %v1521
    %v1906 = vpack.c.b16 %v1530, %v1522
    %v1907 = vpack.c.b16 %v1531, %v1523
    %v1908 = vpack.c.b16 %v1532, %v1524
    %v1909 = vpack.c.b16 %v1533, %v1525
    %v1910 = vpack.c.b16 %v1542, %v1534
    %v1911 = vpack.c.b16 %v1543, %v1535
    %v1912 = vpack.c.b16 %v1544, %v1536
    %v1913 = vpack.c.b16 %v1545, %v1537
    %v1914 = vpack.c.b16 %v1546, %v1538
    %v1915 = vpack.c.b16 %v1547, %v1539
    %v1916 = vpack.c.b16 %v1548, %v1540
    %v1917 = vpack.c.b16 %v1549, %v1541
    %v1918 = vpack.c.b16 %v1558, %v1550
    %v1919 = vpack.c.b16 %v1559, %v1551
    %v1920 = vpack.c.b16 %v1560, %v1552
    %v1921 = vpack.c.b16 %v1561, %v1553
    %v1922 = vpack.c.b16 %v1562, %v1554
    %v1923 = vpack.c.b16 %v1563, %v1555
    %v1924 = vpack.c.b16 %v1564, %v1556
    %v1925 = vpack.c.b16 %v1565, %v1557
    %v1926 = vpack.c.b16 %v1574, %v1566
    %v1927 = vpack.c.b16 %v1575, %v1567
    %v1928 = vpack.c.b16 %v1576, %v1568
    %v1929 = vpack.c.b16 %v1577, %v1569
    %v1930 = vpack.c.b16 %v1578, %v1570
    %v1931 = vpack.c.b16 %v1579, %v1571
    %v1932 = vpack.c.b16 %v1580, %v1572
    %v1933 = vpack.c.b16 %v1581, %v1573
    %v1934 = vpack.c.b16 %v1590, %v1582
    %v1935 = vpack.c.b16 %v1591, %v1583
    %v1936 = vpack.c.b16 %v1592, %v1584
    %v1937 = vpack.c.b16 %v1593, %v1585
    %v1938 = vpack.c.b16 %v1594, %v1586
    %v1939 = vpack.c.b16 %v1595, %v1587
    %v1940 = vpack.c.b16 %v1596, %v1588
    %v1941 = vpack.c.b16 %v1597, %v1589
    %v1942 = vpack.c.b16 %v1606, %v1598
    %v1943 = vpack.c.b16 %v1607, %v1599
    %v1944 = vpack.c.b16 %v1608, %v1600
    %v1945 = vpack.c.b16 %v1609, %v1601
    %v1946 = vpack.c.b16 %v1610, %v1602
    %v1947 = vpack.c.b16 %v1611, %v1603
    %v1948 = vpack.c.b16 %v1612, %v1604
    %v1949 = vpack.c.b16 %v1613, %v1605
    %v1950 = vpack.c.b16 %v1622, %v1614
    %v1951 = vpack.c.b16 %v1623, %v1615
    %v1952 = vpack.c.b16 %v1624, %v1616
    %v1953 = vpack.c.b16 %v1625, %v1617
    %v1954 = vpack.c.b16 %v1626, %v1618
    %v1955 = vpack.c.b16 %v1627, %v1619
    %v1956 = vpack.c.b16 %v1628, %v1620
    %v1957 = vpack.c.b16 %v1629, %v1621
    %v1958 = vpack.c.b16 %v1638, %v1630
    %v1959 = vpack.c.b16 %v1639, %v1631
    %v1960 = vpack.c.b16 %v1640, %v1632
    %v1961 = vpack.c.b16 %v1641, %v1633
    %v1962 = vpack.c.b16 %v1642, %v1634
    %v1963 = vpack.c.b16 %v1643, %v1635
    %v1964 = vpack.c.b16 %v1644, %v1636
    %v1965 = vpack.c.b16 %v1645, %v1637
    %v1966 = vpack.c.b16 %v1654, %v1646
    %v1967 = vpack.c.b16 %v1655, %v1647
    %v1968 = vpack.c.b16 %v1656, %v1648
    %v1969 = vpack.c.b16 %v1657, %v1649
    %v1970 = vpack.c.b16 %v1658, %v1650
    %v1971 = vpack.c.b16 %v1659, %v1651
    %v1972 = vpack.c.b16 %v1660, %v1652
    %v1973 = vpack.c.b16 %v1661, %v1653
    %v1974 = vpack.c.b16 %v1670, %v1662
    %v1975 = vpack.c.b16 %v1671, %v1663
    %v1976 = vpack.c.b16 %v1672, %v1664
    %v1977 = vpack.c.b16 %v1673, %v1665
    %v1978 = vpack.c.b16 %v1674, %v1666
    %v1979 = vpack.c.b16 %v1675, %v1667
    %v1980 = vpack.c.b16 %v1676, %v1668
    %v1981 = vpack.c.b16 %v1677, %v1669
    %v1982 = vpack.c.b16 %v1686, %v1678
    %v1983 = vpack.c.b16 %v1687, %v1679
    %v1984 = vpack.c.b16 %v1688, %v1680
    %v1985 = vpack.c.b16 %v1689, %v1681
    %v1986 = vpack.c.b16 %v1690, %v1682
    %v1987 = vpack.c.b16 %v1691, %v1683
    %v1988 = vpack.c.b16 %v1692, %v1684
    %v1989 = vpack.c.b16 %v1693, %v1685
    %v1990 = vpack.c.b16 %v1702, %v1694
    %v1991 = vpack.c.b16 %v1703, %v1695
    %v1992 = vpack.c.b16 %v1704, %v1696
    %v1993 = vpack.c.b16 %v1705, %v1697
    %v1994 = vpack.c.b16 %v1706, %v1698
    %v1995 = vpack.c.b16 %v1707, %v1699
    %v1996 = vpack.c.b16 %v1708, %v1700
    %v1997 = vpack.c.b16 %v1709, %v1701
    %v1998 = vpack.c.b16 %v1718, %v1710
    %v1999 = vpack.c.b16 %v1719, %v1711
    %v2000 = vpack.c.b16 %v1720, %v1712
    %v2001 = vpack.c.b16 %v1721, %v1713
    %v2002 = vpack.c.b16 %v1722, %v1714
    %v2003 = vpack.c.b16 %v1723, %v1715
    %v2004 = vpack.c.b16 %v1724, %v1716
    %v2005 = vpack.c.b16 %v1725, %v1717
    %v2006 = vpack.c.b16 %v1734, %v1726
    %v2007 = vpack.c.b16 %v1735, %v1727
    %v2008 = vpack.c.b16 %v1736, %v1728
    %v2009 = vpack.c.b16 %v1737, %v1729
    %v2010 = vpack.c.b16 %v1738, %v1730
    %v2011 = vpack.c.b16 %v1739, %v1731
    %v2012 = vpack.c.b16 %v1740, %v1732
    %v2013 = vpack.c.b16 %v1741, %v1733
    %v2014 = vpack.c.b16 %v1750, %v1742
    %v2015 = vpack.c.b16 %v1751, %v1743
    %v2016 = vpack.c.b16 %v1752, %v1744
    %v2017 = vpack.c.b16 %v1753, %v1745
    %v2018 = vpack.c.b16 %v1754, %v1746
    %v2019 = vpack.c.b16 %v1755, %v1747
    %v2020 = vpack.c.b16 %v1756, %v1748
    %v2021 = vpack.c.b16 %v1757, %v1749
    %v2022 = vpack.c.b16 %v1766, %v1758
    %v2023 = vpack.c.b16 %v1767, %v1759
    %v2024 = vpack.c.b16 %v1768, %v1760
    %v2025 = vpack.c.b16 %v1769, %v1761
    %v2026 = vpack.c.b16 %v1770, %v1762
    %v2027 = vpack.c.b16 %v1771, %v1763
    %v2028 = vpack.c.b16 %v1772, %v1764
    %v2029 = vpack.c.b16 %v1773, %v1765
    %2286 = vmatprep.subr.bf16.mxu0 %v1831
    %2287 = vmatpush1.bf16.msra.mxu0 %v1830
    %2288 = vmatprep.subr.bf16.mxu0 %v1823
    %2289 = vmatpush1.bf16.msra.mxu0 %v1822
    %2290 = vmatprep.subr.bf16.mxu0 %v1815
    %2291 = vmatpush1.bf16.msra.mxu0 %v1814
    %2292 = vmatprep.subr.bf16.mxu0 %v1807
    %2293 = vmatpush1.bf16.msra.mxu0 %v1806
    %2294 = vmatprep.subr.bf16.mxu0 %v1799
    %2295 = vmatpush1.bf16.msra.mxu0 %v1798
    %2296 = vmatprep.subr.bf16.mxu0 %v1791
    %2297 = vmatpush1.bf16.msra.mxu0 %v1790
    %2298 = vmatprep.subr.bf16.mxu0 %v1783
    %2299 = vmatpush1.bf16.msra.mxu0 %v1782
    %2300 = vmatprep.subr.bf16.mxu0 %v1775
    %2301 = vmatpush1.bf16.msra.mxu0 %v1774
    %2302 = vmatprep.subr.bf16.mxu0 %v1895
    %2303 = vmatpush2.bf16.msra.mxu0 %v1894
    %2304 = vmatprep.subr.bf16.mxu0 %v1887
    %2305 = vmatpush2.bf16.msra.mxu0 %v1886
    %2306 = vmatprep.subr.bf16.mxu0 %v1879
    %2307 = vmatpush2.bf16.msra.mxu0 %v1878
    %2308 = vmatprep.subr.bf16.mxu0 %v1871
    %2309 = vmatpush2.bf16.msra.mxu0 %v1870
    %2310 = vmatprep.subr.bf16.mxu0 %v1863
    %2311 = vmatpush2.bf16.msra.mxu0 %v1862
    %2312 = vmatprep.subr.bf16.mxu0 %v1855
    %2313 = vmatpush2.bf16.msra.mxu0 %v1854
    %2314 = vmatprep.subr.bf16.mxu0 %v1847
    %2315 = vmatpush2.bf16.msra.mxu0 %v1846
    %2316 = vmatprep.subr.bf16.mxu0 %v1839
    %2317 = vmatpush2.bf16.msra.mxu0 %v1838
    %2318 = vmatprep.mubr.bf16.mxu0 %v705
    %2319 = vmatmul.mubr.bf16.gmra.mxu0 %v704
    %v2320 = vpop.f32.mrf.mxu0
    %v2321 = vadd.f32 %v969, %v2320
    %v2322 = vpop.f32.mrf.mxu0
    %v2323 = vadd.f32 %v973, %v2322
    %v2324 = vpop.f32.mrf.mxu0
    %v2325 = vpop.f32.mrf.mxu0
    %2326 = vdwg.mxu0
    %2327 = vmatprep.subr.bf16.mxu0 %v1959
    %2328 = vmatpush1.bf16.msra.mxu0 %v1958
    %2329 = vmatprep.subr.bf16.mxu0 %v1951
    %2330 = vmatpush1.bf16.msra.mxu0 %v1950
    %2331 = vmatprep.subr.bf16.mxu0 %v1943
    %2332 = vmatpush1.bf16.msra.mxu0 %v1942
    %2333 = vmatprep.subr.bf16.mxu0 %v1935
    %2334 = vmatpush1.bf16.msra.mxu0 %v1934
    %2335 = vmatprep.subr.bf16.mxu0 %v1927
    %2336 = vmatpush1.bf16.msra.mxu0 %v1926
    %2337 = vmatprep.subr.bf16.mxu0 %v1919
    %2338 = vmatpush1.bf16.msra.mxu0 %v1918
    %2339 = vmatprep.subr.bf16.mxu0 %v1911
    %2340 = vmatpush1.bf16.msra.mxu0 %v1910
    %2341 = vmatprep.subr.bf16.mxu0 %v1903
    %2342 = vmatpush1.bf16.msra.mxu0 %v1902
    %2343 = vmatprep.subr.bf16.mxu0 %v2023
    %2344 = vmatpush2.bf16.msra.mxu0 %v2022
    %2345 = vmatprep.subr.bf16.mxu0 %v2015
    %2346 = vmatpush2.bf16.msra.mxu0 %v2014
    %2347 = vmatprep.subr.bf16.mxu0 %v2007
    %2348 = vmatpush2.bf16.msra.mxu0 %v2006
    %2349 = vmatprep.subr.bf16.mxu0 %v1999
    %2350 = vmatpush2.bf16.msra.mxu0 %v1998
    %2351 = vmatprep.subr.bf16.mxu0 %v1991
    %2352 = vmatpush2.bf16.msra.mxu0 %v1990
    %2353 = vmatprep.subr.bf16.mxu0 %v1983
    %2354 = vmatpush2.bf16.msra.mxu0 %v1982
    %2355 = vmatprep.subr.bf16.mxu0 %v1975
    %2356 = vmatpush2.bf16.msra.mxu0 %v1974
    %2357 = vmatprep.subr.bf16.mxu0 %v1967
    %2358 = vmatpush2.bf16.msra.mxu0 %v1966
    %2359 = vmatprep.mubr.bf16.mxu0 %v707
    %2360 = vmatmul.mubr.bf16.gmra.mxu0 %v706
    %v2361 = vpop.f32.mrf.mxu0
    %v2362 = vadd.f32 %v2321, %v2361
    %v2363 = vpop.f32.mrf.mxu0
    %v2364 = vadd.f32 %v2323, %v2363
    %v2365 = vpop.f32.mrf.mxu0
    %v2366 = vpop.f32.mrf.mxu0
    %2367 = vdwg.mxu0
    %2368 = vmatprep.subr.bf16.mxu0 %v1833
    %2369 = vmatpush1.bf16.msra.mxu0 %v1832
    %2370 = vmatprep.subr.bf16.mxu0 %v1825
    %2371 = vmatpush1.bf16.msra.mxu0 %v1824
    %2372 = vmatprep.subr.bf16.mxu0 %v1817
    %2373 = vmatpush1.bf16.msra.mxu0 %v1816
    %2374 = vmatprep.subr.bf16.mxu0 %v1809
    %2375 = vmatpush1.bf16.msra.mxu0 %v1808
    %2376 = vmatprep.subr.bf16.mxu0 %v1801
    %2377 = vmatpush1.bf16.msra.mxu0 %v1800
    %2378 = vmatprep.subr.bf16.mxu0 %v1793
    %2379 = vmatpush1.bf16.msra.mxu0 %v1792
    %2380 = vmatprep.subr.bf16.mxu0 %v1785
    %2381 = vmatpush1.bf16.msra.mxu0 %v1784
    %2382 = vmatprep.subr.bf16.mxu0 %v1777
    %2383 = vmatpush1.bf16.msra.mxu0 %v1776
    %2384 = vmatprep.subr.bf16.mxu0 %v1897
    %2385 = vmatpush2.bf16.msra.mxu0 %v1896
    %2386 = vmatprep.subr.bf16.mxu0 %v1889
    %2387 = vmatpush2.bf16.msra.mxu0 %v1888
    %2388 = vmatprep.subr.bf16.mxu0 %v1881
    %2389 = vmatpush2.bf16.msra.mxu0 %v1880
    %2390 = vmatprep.subr.bf16.mxu0 %v1873
    %2391 = vmatpush2.bf16.msra.mxu0 %v1872
    %2392 = vmatprep.subr.bf16.mxu0 %v1865
    %2393 = vmatpush2.bf16.msra.mxu0 %v1864
    %2394 = vmatprep.subr.bf16.mxu0 %v1857
    %2395 = vmatpush2.bf16.msra.mxu0 %v1856
    %2396 = vmatprep.subr.bf16.mxu0 %v1849
    %2397 = vmatpush2.bf16.msra.mxu0 %v1848
    %2398 = vmatprep.subr.bf16.mxu0 %v1841
    %2399 = vmatpush2.bf16.msra.mxu0 %v1840
    %2400 = vmatprep.mubr.bf16.mxu0 %v705
    %2401 = vmatmul.mubr.bf16.gmra.mxu0 %v704
    %v2402 = vpop.f32.mrf.mxu0
    %v2403 = vadd.f32 %v977, %v2402
    %v2404 = vpop.f32.mrf.mxu0
    %v2405 = vadd.f32 %v981, %v2404
    %v2406 = vpop.f32.mrf.mxu0
    %v2407 = vpop.f32.mrf.mxu0
    %2408 = vdwg.mxu0
    %2409 = vmatprep.subr.bf16.mxu0 %v1961
    %2410 = vmatpush1.bf16.msra.mxu0 %v1960
    %2411 = vmatprep.subr.bf16.mxu0 %v1953
    %2412 = vmatpush1.bf16.msra.mxu0 %v1952
    %2413 = vmatprep.subr.bf16.mxu0 %v1945
    %2414 = vmatpush1.bf16.msra.mxu0 %v1944
    %2415 = vmatprep.subr.bf16.mxu0 %v1937
    %2416 = vmatpush1.bf16.msra.mxu0 %v1936
    %2417 = vmatprep.subr.bf16.mxu0 %v1929
    %2418 = vmatpush1.bf16.msra.mxu0 %v1928
    %2419 = vmatprep.subr.bf16.mxu0 %v1921
    %2420 = vmatpush1.bf16.msra.mxu0 %v1920
    %2421 = vmatprep.subr.bf16.mxu0 %v1913
    %2422 = vmatpush1.bf16.msra.mxu0 %v1912
    %2423 = vmatprep.subr.bf16.mxu0 %v1905
    %2424 = vmatpush1.bf16.msra.mxu0 %v1904
    %2425 = vmatprep.subr.bf16.mxu0 %v2025
    %2426 = vmatpush2.bf16.msra.mxu0 %v2024
    %2427 = vmatprep.subr.bf16.mxu0 %v2017
    %2428 = vmatpush2.bf16.msra.mxu0 %v2016
    %2429 = vmatprep.subr.bf16.mxu0 %v2009
    %2430 = vmatpush2.bf16.msra.mxu0 %v2008
    %2431 = vmatprep.subr.bf16.mxu0 %v2001
    %2432 = vmatpush2.bf16.msra.mxu0 %v2000
    %2433 = vmatprep.subr.bf16.mxu0 %v1993
    %2434 = vmatpush2.bf16.msra.mxu0 %v1992
    %2435 = vmatprep.subr.bf16.mxu0 %v1985
    %2436 = vmatpush2.bf16.msra.mxu0 %v1984
    %2437 = vmatprep.subr.bf16.mxu0 %v1977
    %2438 = vmatpush2.bf16.msra.mxu0 %v1976
    %2439 = vmatprep.subr.bf16.mxu0 %v1969
    %2440 = vmatpush2.bf16.msra.mxu0 %v1968
    %2441 = vmatprep.mubr.bf16.mxu0 %v707
    %2442 = vmatmul.mubr.bf16.gmra.mxu0 %v706
    %v2443 = vpop.f32.mrf.mxu0
    %v2444 = vadd.f32 %v2403, %v2443
    %v2445 = vpop.f32.mrf.mxu0
    %v2446 = vadd.f32 %v2405, %v2445
    %v2447 = vpop.f32.mrf.mxu0
    %v2448 = vpop.f32.mrf.mxu0
    %2449 = vdwg.mxu0
    %2450 = vmatprep.subr.bf16.mxu0 %v1835
    %2451 = vmatpush1.bf16.msra.mxu0 %v1834
    %2452 = vmatprep.subr.bf16.mxu0 %v1827
    %2453 = vmatpush1.bf16.msra.mxu0 %v1826
    %2454 = vmatprep.subr.bf16.mxu0 %v1819
    %2455 = vmatpush1.bf16.msra.mxu0 %v1818
    %2456 = vmatprep.subr.bf16.mxu0 %v1811
    %2457 = vmatpush1.bf16.msra.mxu0 %v1810
    %2458 = vmatprep.subr.bf16.mxu0 %v1803
    %2459 = vmatpush1.bf16.msra.mxu0 %v1802
    %2460 = vmatprep.subr.bf16.mxu0 %v1795
    %2461 = vmatpush1.bf16.msra.mxu0 %v1794
    %2462 = vmatprep.subr.bf16.mxu0 %v1787
    %2463 = vmatpush1.bf16.msra.mxu0 %v1786
    %2464 = vmatprep.subr.bf16.mxu0 %v1779
    %2465 = vmatpush1.bf16.msra.mxu0 %v1778
    %2466 = vmatprep.subr.bf16.mxu0 %v1899
    %2467 = vmatpush2.bf16.msra.mxu0 %v1898
    %2468 = vmatprep.subr.bf16.mxu0 %v1891
    %2469 = vmatpush2.bf16.msra.mxu0 %v1890
    %2470 = vmatprep.subr.bf16.mxu0 %v1883
    %2471 = vmatpush2.bf16.msra.mxu0 %v1882
    %2472 = vmatprep.subr.bf16.mxu0 %v1875
    %2473 = vmatpush2.bf16.msra.mxu0 %v1874
    %2474 = vmatprep.subr.bf16.mxu0 %v1867
    %2475 = vmatpush2.bf16.msra.mxu0 %v1866
    %2476 = vmatprep.subr.bf16.mxu0 %v1859
    %2477 = vmatpush2.bf16.msra.mxu0 %v1858
    %2478 = vmatprep.subr.bf16.mxu0 %v1851
    %2479 = vmatpush2.bf16.msra.mxu0 %v1850
    %2480 = vmatprep.subr.bf16.mxu0 %v1843
    %2481 = vmatpush2.bf16.msra.mxu0 %v1842
    %2482 = vmatprep.mubr.bf16.mxu0 %v705
    %2483 = vmatmul.mubr.bf16.gmra.mxu0 %v704
    %v2484 = vpop.f32.mrf.mxu0
    %v2485 = vadd.f32 %v985, %v2484
    %v2486 = vpop.f32.mrf.mxu0
    %v2487 = vadd.f32 %v989, %v2486
    %v2488 = vpop.f32.mrf.mxu0
    %v2489 = vpop.f32.mrf.mxu0
    %2490 = vdwg.mxu0
    %2491 = vmatprep.subr.bf16.mxu0 %v1963
    %2492 = vmatpush1.bf16.msra.mxu0 %v1962
    %2493 = vmatprep.subr.bf16.mxu0 %v1955
    %2494 = vmatpush1.bf16.msra.mxu0 %v1954
    %2495 = vmatprep.subr.bf16.mxu0 %v1947
    %2496 = vmatpush1.bf16.msra.mxu0 %v1946
    %2497 = vmatprep.subr.bf16.mxu0 %v1939
    %2498 = vmatpush1.bf16.msra.mxu0 %v1938
    %2499 = vmatprep.subr.bf16.mxu0 %v1931
    %2500 = vmatpush1.bf16.msra.mxu0 %v1930
    %2501 = vmatprep.subr.bf16.mxu0 %v1923
    %2502 = vmatpush1.bf16.msra.mxu0 %v1922
    %2503 = vmatprep.subr.bf16.mxu0 %v1915
    %2504 = vmatpush1.bf16.msra.mxu0 %v1914
    %2505 = vmatprep.subr.bf16.mxu0 %v1907
    %2506 = vmatpush1.bf16.msra.mxu0 %v1906
    %2507 = vmatprep.subr.bf16.mxu0 %v2027
    %2508 = vmatpush2.bf16.msra.mxu0 %v2026
    %2509 = vmatprep.subr.bf16.mxu0 %v2019
    %2510 = vmatpush2.bf16.msra.mxu0 %v2018
    %2511 = vmatprep.subr.bf16.mxu0 %v2011
    %2512 = vmatpush2.bf16.msra.mxu0 %v2010
    %2513 = vmatprep.subr.bf16.mxu0 %v2003
    %2514 = vmatpush2.bf16.msra.mxu0 %v2002
    %2515 = vmatprep.subr.bf16.mxu0 %v1995
    %2516 = vmatpush2.bf16.msra.mxu0 %v1994
    %2517 = vmatprep.subr.bf16.mxu0 %v1987
    %2518 = vmatpush2.bf16.msra.mxu0 %v1986
    %2519 = vmatprep.subr.bf16.mxu0 %v1979
    %2520 = vmatpush2.bf16.msra.mxu0 %v1978
    %2521 = vmatprep.subr.bf16.mxu0 %v1971
    %2522 = vmatpush2.bf16.msra.mxu0 %v1970
    %2523 = vmatprep.mubr.bf16.mxu0 %v707
    %2524 = vmatmul.mubr.bf16.gmra.mxu0 %v706
    %v2525 = vpop.f32.mrf.mxu0
    %v2526 = vadd.f32 %v2485, %v2525
    %v2527 = vpop.f32.mrf.mxu0
    %v2528 = vadd.f32 %v2487, %v2527
    %v2529 = vpop.f32.mrf.mxu0
    %v2530 = vpop.f32.mrf.mxu0
    %2531 = vdwg.mxu0
    %2532 = vmatprep.subr.bf16.mxu0 %v1837
    %2533 = vmatpush1.bf16.msra.mxu0 %v1836
    %2534 = vmatprep.subr.bf16.mxu0 %v1829
    %2535 = vmatpush1.bf16.msra.mxu0 %v1828
    %2536 = vmatprep.subr.bf16.mxu0 %v1821
    %2537 = vmatpush1.bf16.msra.mxu0 %v1820
    %2538 = vmatprep.subr.bf16.mxu0 %v1813
    %2539 = vmatpush1.bf16.msra.mxu0 %v1812
    %2540 = vmatprep.subr.bf16.mxu0 %v1805
    %2541 = vmatpush1.bf16.msra.mxu0 %v1804
    %2542 = vmatprep.subr.bf16.mxu0 %v1797
    %2543 = vmatpush1.bf16.msra.mxu0 %v1796
    %2544 = vmatprep.subr.bf16.mxu0 %v1789
    %2545 = vmatpush1.bf16.msra.mxu0 %v1788
    %2546 = vmatprep.subr.bf16.mxu0 %v1781
    %2547 = vmatpush1.bf16.msra.mxu0 %v1780
    %2548 = vmatprep.subr.bf16.mxu0 %v1901
    %2549 = vmatpush2.bf16.msra.mxu0 %v1900
    %2550 = vmatprep.subr.bf16.mxu0 %v1893
    %2551 = vmatpush2.bf16.msra.mxu0 %v1892
    %2552 = vmatprep.subr.bf16.mxu0 %v1885
    %2553 = vmatpush2.bf16.msra.mxu0 %v1884
    %2554 = vmatprep.subr.bf16.mxu0 %v1877
    %2555 = vmatpush2.bf16.msra.mxu0 %v1876
    %2556 = vmatprep.subr.bf16.mxu0 %v1869
    %2557 = vmatpush2.bf16.msra.mxu0 %v1868
    %2558 = vmatprep.subr.bf16.mxu0 %v1861
    %2559 = vmatpush2.bf16.msra.mxu0 %v1860
    %2560 = vmatprep.subr.bf16.mxu0 %v1853
    %2561 = vmatpush2.bf16.msra.mxu0 %v1852
    %2562 = vmatprep.subr.bf16.mxu0 %v1845
    %2563 = vmatpush2.bf16.msra.mxu0 %v1844
    %2564 = vmatprep.mubr.bf16.mxu0 %v705
    %2565 = vmatmul.mubr.bf16.gmra.mxu0 %v704
    %v2566 = vpop.f32.mrf.mxu0
    %v2567 = vadd.f32 %v993, %v2566
    %v2568 = vpop.f32.mrf.mxu0
    %v2569 = vadd.f32 %v997, %v2568
    %v2570 = vpop.f32.mrf.mxu0
    %v2571 = vpop.f32.mrf.mxu0
    %2572 = vdwg.mxu0
    %2573 = vmatprep.subr.bf16.mxu0 %v1965
    %2574 = vmatpush1.bf16.msra.mxu0 %v1964
    %2575 = vmatprep.subr.bf16.mxu0 %v1957
    %2576 = vmatpush1.bf16.msra.mxu0 %v1956
    %2577 = vmatprep.subr.bf16.mxu0 %v1949
    %2578 = vmatpush1.bf16.msra.mxu0 %v1948
    %2579 = vmatprep.subr.bf16.mxu0 %v1941
    %2580 = vmatpush1.bf16.msra.mxu0 %v1940
    %2581 = vmatprep.subr.bf16.mxu0 %v1933
    %2582 = vmatpush1.bf16.msra.mxu0 %v1932
    %2583 = vmatprep.subr.bf16.mxu0 %v1925
    %2584 = vmatpush1.bf16.msra.mxu0 %v1924
    %2585 = vmatprep.subr.bf16.mxu0 %v1917
    %2586 = vmatpush1.bf16.msra.mxu0 %v1916
    %2587 = vmatprep.subr.bf16.mxu0 %v1909
    %2588 = vmatpush1.bf16.msra.mxu0 %v1908
    %2589 = vmatprep.subr.bf16.mxu0 %v2029
    %2590 = vmatpush2.bf16.msra.mxu0 %v2028
    %2591 = vmatprep.subr.bf16.mxu0 %v2021
    %2592 = vmatpush2.bf16.msra.mxu0 %v2020
    %2593 = vmatprep.subr.bf16.mxu0 %v2013
    %2594 = vmatpush2.bf16.msra.mxu0 %v2012
    %2595 = vmatprep.subr.bf16.mxu0 %v2005
    %2596 = vmatpush2.bf16.msra.mxu0 %v2004
    %2597 = vmatprep.subr.bf16.mxu0 %v1997
    %2598 = vmatpush2.bf16.msra.mxu0 %v1996
    %2599 = vmatprep.subr.bf16.mxu0 %v1989
    %2600 = vmatpush2.bf16.msra.mxu0 %v1988
    %2601 = vmatprep.subr.bf16.mxu0 %v1981
    %2602 = vmatpush2.bf16.msra.mxu0 %v1980
    %2603 = vmatprep.subr.bf16.mxu0 %v1973
    %2604 = vmatpush2.bf16.msra.mxu0 %v1972
    %2605 = vmatprep.mubr.bf16.mxu0 %v707
    %2606 = vmatmul.mubr.bf16.gmra.mxu0 %v706
    %v2607 = vpop.f32.mrf.mxu0
    %v2608 = vadd.f32 %v2567, %v2607
    %v2609 = vpop.f32.mrf.mxu0
    %v2610 = vadd.f32 %v2569, %v2609
    %v2611 = vpop.f32.mrf.mxu0
    %v2612 = vpop.f32.mrf.mxu0
    %2613 = vdwg.mxu0
    %v2614 = vmax.f32 %v2362, 0.0
    %v2615 = vmax.f32 %v2364, 0.0
    %v2616 = vmax.f32 %v2444, 0.0
    %v2617 = vmax.f32 %v2446, 0.0
    %v2618 = vmax.f32 %v2526, 0.0
    %v2619 = vmax.f32 %v2528, 0.0
    %v2620 = vmax.f32 %v2608, 0.0
    %v2621 = vmax.f32 %v2610, 0.0
    %v2622 = vpack.c.bf16 %v2614, %v2614
    %v2623 = vpack.c.bf16 %v2615, %v2615
    %v2624 = vpack.c.bf16 %v2616, %v2616
    %v2625 = vpack.c.bf16 %v2617, %v2617
    %v2626 = vpack.c.bf16 %v2618, %v2618
    %v2627 = vpack.c.bf16 %v2619, %v2619
    %v2628 = vpack.c.bf16 %v2620, %v2620
    %v2629 = vpack.c.bf16 %v2621, %v2621
    %v2630 = vld [vmem:[#allocation7] sm:$0xff]
    %v2631 = vld [vmem:[#allocation7 + $0x8] sm:$0xff]
    %v2632 = vld [vmem:[#allocation7 + $0x10] sm:$0xff]
    %v2633 = vld [vmem:[#allocation7 + $0x18] sm:$0xff]
    %v2634 = vld [vmem:[#allocation7 + $0x20] sm:$0xff]
    %v2635 = vld [vmem:[#allocation7 + $0x28] sm:$0xff]
    %v2636 = vld [vmem:[#allocation7 + $0x30] sm:$0xff]
    %v2637 = vld [vmem:[#allocation7 + $0x38] sm:$0xff]
    %v2638 = vld [vmem:[#allocation7 + $0x40] sm:$0xff]
    %v2639 = vld [vmem:[#allocation7 + $0x48] sm:$0xff]
    %v2640 = vld [vmem:[#allocation7 + $0x50] sm:$0xff]
    %v2641 = vld [vmem:[#allocation7 + $0x58] sm:$0xff]
    %v2642 = vld [vmem:[#allocation7 + $0x60] sm:$0xff]
    %v2643 = vld [vmem:[#allocation7 + $0x68] sm:$0xff]
    %v2644 = vld [vmem:[#allocation7 + $0x70] sm:$0xff]
    %v2645 = vld [vmem:[#allocation7 + $0x78] sm:$0xff]
    %v2646 = vld [vmem:[#allocation7 + $0x80] sm:$0xff]
    %v2647 = vld [vmem:[#allocation7 + $0x88] sm:$0xff]
    %v2648 = vld [vmem:[#allocation7 + $0x90] sm:$0xff]
    %v2649 = vld [vmem:[#allocation7 + $0x98] sm:$0xff]
    %v2650 = vld [vmem:[#allocation7 + $0xa0] sm:$0xff]
    %v2651 = vld [vmem:[#allocation7 + $0xa8] sm:$0xff]
    %v2652 = vld [vmem:[#allocation7 + $0xb0] sm:$0xff]
    %v2653 = vld [vmem:[#allocation7 + $0xb8] sm:$0xff]
    %v2654 = vld [vmem:[#allocation7 + $0xc0] sm:$0xff]
    %v2655 = vld [vmem:[#allocation7 + $0xc8] sm:$0xff]
    %v2656 = vld [vmem:[#allocation7 + $0xd0] sm:$0xff]
    %v2657 = vld [vmem:[#allocation7 + $0xd8] sm:$0xff]
    %v2658 = vld [vmem:[#allocation7 + $0xe0] sm:$0xff]
    %v2659 = vld [vmem:[#allocation7 + $0xe8] sm:$0xff]
    %v2660 = vld [vmem:[#allocation7 + $0xf0] sm:$0xff]
    %v2661 = vld [vmem:[#allocation7 + $0xf8] sm:$0xff]
    %v2662 = vld [vmem:[#allocation7 + $0x100] sm:$0xff]
    %v2663 = vld [vmem:[#allocation7 + $0x108] sm:$0xff]
    %v2664 = vld [vmem:[#allocation7 + $0x110] sm:$0xff]
    %v2665 = vld [vmem:[#allocation7 + $0x118] sm:$0xff]
    %v2666 = vld [vmem:[#allocation7 + $0x120] sm:$0xff]
    %v2667 = vld [vmem:[#allocation7 + $0x128] sm:$0xff]
    %v2668 = vld [vmem:[#allocation7 + $0x130] sm:$0xff]
    %v2669 = vld [vmem:[#allocation7 + $0x138] sm:$0xff]
    %v2670 = vld [vmem:[#allocation7 + $0x140] sm:$0xff]
    %v2671 = vld [vmem:[#allocation7 + $0x148] sm:$0xff]
    %v2672 = vld [vmem:[#allocation7 + $0x150] sm:$0xff]
    %v2673 = vld [vmem:[#allocation7 + $0x158] sm:$0xff]
    %v2674 = vld [vmem:[#allocation7 + $0x160] sm:$0xff]
    %v2675 = vld [vmem:[#allocation7 + $0x168] sm:$0xff]
    %v2676 = vld [vmem:[#allocation7 + $0x170] sm:$0xff]
    %v2677 = vld [vmem:[#allocation7 + $0x178] sm:$0xff]
    %v2678 = vld [vmem:[#allocation7 + $0x180] sm:$0xff]
    %v2679 = vld [vmem:[#allocation7 + $0x188] sm:$0xff]
    %v2680 = vld [vmem:[#allocation7 + $0x190] sm:$0xff]
    %v2681 = vld [vmem:[#allocation7 + $0x198] sm:$0xff]
    %v2682 = vld [vmem:[#allocation7 + $0x1a0] sm:$0xff]
    %v2683 = vld [vmem:[#allocation7 + $0x1a8] sm:$0xff]
    %v2684 = vld [vmem:[#allocation7 + $0x1b0] sm:$0xff]
    %v2685 = vld [vmem:[#allocation7 + $0x1b8] sm:$0xff]
    %v2686 = vld [vmem:[#allocation7 + $0x1c0] sm:$0xff]
    %v2687 = vld [vmem:[#allocation7 + $0x1c8] sm:$0xff]
    %v2688 = vld [vmem:[#allocation7 + $0x1d0] sm:$0xff]
    %v2689 = vld [vmem:[#allocation7 + $0x1d8] sm:$0xff]
    %v2690 = vld [vmem:[#allocation7 + $0x1e0] sm:$0xff]
    %v2691 = vld [vmem:[#allocation7 + $0x1e8] sm:$0xff]
    %v2692 = vld [vmem:[#allocation7 + $0x1f0] sm:$0xff]
    %v2693 = vld [vmem:[#allocation7 + $0x1f8] sm:$0xff]
    %v2694 = vld [vmem:[#allocation7 + $0x200] sm:$0xff]
    %v2695 = vld [vmem:[#allocation7 + $0x208] sm:$0xff]
    %v2696 = vld [vmem:[#allocation7 + $0x210] sm:$0xff]
    %v2697 = vld [vmem:[#allocation7 + $0x218] sm:$0xff]
    %v2698 = vld [vmem:[#allocation7 + $0x220] sm:$0xff]
    %v2699 = vld [vmem:[#allocation7 + $0x228] sm:$0xff]
    %v2700 = vld [vmem:[#allocation7 + $0x230] sm:$0xff]
    %v2701 = vld [vmem:[#allocation7 + $0x238] sm:$0xff]
    %v2702 = vld [vmem:[#allocation7 + $0x240] sm:$0xff]
    %v2703 = vld [vmem:[#allocation7 + $0x248] sm:$0xff]
    %v2704 = vld [vmem:[#allocation7 + $0x250] sm:$0xff]
    %v2705 = vld [vmem:[#allocation7 + $0x258] sm:$0xff]
    %v2706 = vld [vmem:[#allocation7 + $0x260] sm:$0xff]
    %v2707 = vld [vmem:[#allocation7 + $0x268] sm:$0xff]
    %v2708 = vld [vmem:[#allocation7 + $0x270] sm:$0xff]
    %v2709 = vld [vmem:[#allocation7 + $0x278] sm:$0xff]
    %v2710 = vld [vmem:[#allocation7 + $0x280] sm:$0xff]
    %v2711 = vld [vmem:[#allocation7 + $0x288] sm:$0xff]
    %v2712 = vld [vmem:[#allocation7 + $0x290] sm:$0xff]
    %v2713 = vld [vmem:[#allocation7 + $0x298] sm:$0xff]
    %v2714 = vld [vmem:[#allocation7 + $0x2a0] sm:$0xff]
    %v2715 = vld [vmem:[#allocation7 + $0x2a8] sm:$0xff]
    %v2716 = vld [vmem:[#allocation7 + $0x2b0] sm:$0xff]
    %v2717 = vld [vmem:[#allocation7 + $0x2b8] sm:$0xff]
    %v2718 = vld [vmem:[#allocation7 + $0x2c0] sm:$0xff]
    %v2719 = vld [vmem:[#allocation7 + $0x2c8] sm:$0xff]
    %v2720 = vld [vmem:[#allocation7 + $0x2d0] sm:$0xff]
    %v2721 = vld [vmem:[#allocation7 + $0x2d8] sm:$0xff]
    %v2722 = vld [vmem:[#allocation7 + $0x2e0] sm:$0xff]
    %v2723 = vld [vmem:[#allocation7 + $0x2e8] sm:$0xff]
    %v2724 = vld [vmem:[#allocation7 + $0x2f0] sm:$0xff]
    %v2725 = vld [vmem:[#allocation7 + $0x2f8] sm:$0xff]
    %v2726 = vld [vmem:[#allocation7 + $0x300] sm:$0xff]
    %v2727 = vld [vmem:[#allocation7 + $0x308] sm:$0xff]
    %v2728 = vld [vmem:[#allocation7 + $0x310] sm:$0xff]
    %v2729 = vld [vmem:[#allocation7 + $0x318] sm:$0xff]
    %v2730 = vld [vmem:[#allocation7 + $0x320] sm:$0xff]
    %v2731 = vld [vmem:[#allocation7 + $0x328] sm:$0xff]
    %v2732 = vld [vmem:[#allocation7 + $0x330] sm:$0xff]
    %v2733 = vld [vmem:[#allocation7 + $0x338] sm:$0xff]
    %v2734 = vld [vmem:[#allocation7 + $0x340] sm:$0xff]
    %v2735 = vld [vmem:[#allocation7 + $0x348] sm:$0xff]
    %v2736 = vld [vmem:[#allocation7 + $0x350] sm:$0xff]
    %v2737 = vld [vmem:[#allocation7 + $0x358] sm:$0xff]
    %v2738 = vld [vmem:[#allocation7 + $0x360] sm:$0xff]
    %v2739 = vld [vmem:[#allocation7 + $0x368] sm:$0xff]
    %v2740 = vld [vmem:[#allocation7 + $0x370] sm:$0xff]
    %v2741 = vld [vmem:[#allocation7 + $0x378] sm:$0xff]
    %v2742 = vld [vmem:[#allocation7 + $0x380] sm:$0xff]
    %v2743 = vld [vmem:[#allocation7 + $0x388] sm:$0xff]
    %v2744 = vld [vmem:[#allocation7 + $0x390] sm:$0xff]
    %v2745 = vld [vmem:[#allocation7 + $0x398] sm:$0xff]
    %v2746 = vld [vmem:[#allocation7 + $0x3a0] sm:$0xff]
    %v2747 = vld [vmem:[#allocation7 + $0x3a8] sm:$0xff]
    %v2748 = vld [vmem:[#allocation7 + $0x3b0] sm:$0xff]
    %v2749 = vld [vmem:[#allocation7 + $0x3b8] sm:$0xff]
    %v2750 = vld [vmem:[#allocation7 + $0x3c0] sm:$0xff]
    %v2751 = vld [vmem:[#allocation7 + $0x3c8] sm:$0xff]
    %v2752 = vld [vmem:[#allocation7 + $0x3d0] sm:$0xff]
    %v2753 = vld [vmem:[#allocation7 + $0x3d8] sm:$0xff]
    %v2754 = vld [vmem:[#allocation7 + $0x3e0] sm:$0xff]
    %v2755 = vld [vmem:[#allocation7 + $0x3e8] sm:$0xff]
    %v2756 = vld [vmem:[#allocation7 + $0x3f0] sm:$0xff]
    %v2757 = vld [vmem:[#allocation7 + $0x3f8] sm:$0xff]
    %v2758 = vld [vmem:[#allocation7 + $0x400] sm:$0xff]
    %v2759 = vld [vmem:[#allocation7 + $0x408] sm:$0xff]
    %v2760 = vld [vmem:[#allocation7 + $0x410] sm:$0xff]
    %v2761 = vld [vmem:[#allocation7 + $0x418] sm:$0xff]
    %v2762 = vld [vmem:[#allocation7 + $0x420] sm:$0xff]
    %v2763 = vld [vmem:[#allocation7 + $0x428] sm:$0xff]
    %v2764 = vld [vmem:[#allocation7 + $0x430] sm:$0xff]
    %v2765 = vld [vmem:[#allocation7 + $0x438] sm:$0xff]
    %v2766 = vld [vmem:[#allocation7 + $0x440] sm:$0xff]
    %v2767 = vld [vmem:[#allocation7 + $0x448] sm:$0xff]
    %v2768 = vld [vmem:[#allocation7 + $0x450] sm:$0xff]
    %v2769 = vld [vmem:[#allocation7 + $0x458] sm:$0xff]
    %v2770 = vld [vmem:[#allocation7 + $0x460] sm:$0xff]
    %v2771 = vld [vmem:[#allocation7 + $0x468] sm:$0xff]
    %v2772 = vld [vmem:[#allocation7 + $0x470] sm:$0xff]
    %v2773 = vld [vmem:[#allocation7 + $0x478] sm:$0xff]
    %v2774 = vld [vmem:[#allocation7 + $0x480] sm:$0xff]
    %v2775 = vld [vmem:[#allocation7 + $0x488] sm:$0xff]
    %v2776 = vld [vmem:[#allocation7 + $0x490] sm:$0xff]
    %v2777 = vld [vmem:[#allocation7 + $0x498] sm:$0xff]
    %v2778 = vld [vmem:[#allocation7 + $0x4a0] sm:$0xff]
    %v2779 = vld [vmem:[#allocation7 + $0x4a8] sm:$0xff]
    %v2780 = vld [vmem:[#allocation7 + $0x4b0] sm:$0xff]
    %v2781 = vld [vmem:[#allocation7 + $0x4b8] sm:$0xff]
    %v2782 = vld [vmem:[#allocation7 + $0x4c0] sm:$0xff]
    %v2783 = vld [vmem:[#allocation7 + $0x4c8] sm:$0xff]
    %v2784 = vld [vmem:[#allocation7 + $0x4d0] sm:$0xff]
    %v2785 = vld [vmem:[#allocation7 + $0x4d8] sm:$0xff]
    %v2786 = vld [vmem:[#allocation7 + $0x4e0] sm:$0xff]
    %v2787 = vld [vmem:[#allocation7 + $0x4e8] sm:$0xff]
    %v2788 = vld [vmem:[#allocation7 + $0x4f0] sm:$0xff]
    %v2789 = vld [vmem:[#allocation7 + $0x4f8] sm:$0xff]
    %v2790 = vld [vmem:[#allocation7 + $0x500] sm:$0xff]
    %v2791 = vld [vmem:[#allocation7 + $0x508] sm:$0xff]
    %v2792 = vld [vmem:[#allocation7 + $0x510] sm:$0xff]
    %v2793 = vld [vmem:[#allocation7 + $0x518] sm:$0xff]
    %v2794 = vld [vmem:[#allocation7 + $0x520] sm:$0xff]
    %v2795 = vld [vmem:[#allocation7 + $0x528] sm:$0xff]
    %v2796 = vld [vmem:[#allocation7 + $0x530] sm:$0xff]
    %v2797 = vld [vmem:[#allocation7 + $0x538] sm:$0xff]
    %v2798 = vld [vmem:[#allocation7 + $0x540] sm:$0xff]
    %v2799 = vld [vmem:[#allocation7 + $0x548] sm:$0xff]
    %v2800 = vld [vmem:[#allocation7 + $0x550] sm:$0xff]
    %v2801 = vld [vmem:[#allocation7 + $0x558] sm:$0xff]
    %v2802 = vld [vmem:[#allocation7 + $0x560] sm:$0xff]
    %v2803 = vld [vmem:[#allocation7 + $0x568] sm:$0xff]
    %v2804 = vld [vmem:[#allocation7 + $0x570] sm:$0xff]
    %v2805 = vld [vmem:[#allocation7 + $0x578] sm:$0xff]
    %v2806 = vld [vmem:[#allocation7 + $0x580] sm:$0xff]
    %v2807 = vld [vmem:[#allocation7 + $0x588] sm:$0xff]
    %v2808 = vld [vmem:[#allocation7 + $0x590] sm:$0xff]
    %v2809 = vld [vmem:[#allocation7 + $0x598] sm:$0xff]
    %v2810 = vld [vmem:[#allocation7 + $0x5a0] sm:$0xff]
    %v2811 = vld [vmem:[#allocation7 + $0x5a8] sm:$0xff]
    %v2812 = vld [vmem:[#allocation7 + $0x5b0] sm:$0xff]
    %v2813 = vld [vmem:[#allocation7 + $0x5b8] sm:$0xff]
    %v2814 = vld [vmem:[#allocation7 + $0x5c0] sm:$0xff]
    %v2815 = vld [vmem:[#allocation7 + $0x5c8] sm:$0xff]
    %v2816 = vld [vmem:[#allocation7 + $0x5d0] sm:$0xff]
    %v2817 = vld [vmem:[#allocation7 + $0x5d8] sm:$0xff]
    %v2818 = vld [vmem:[#allocation7 + $0x5e0] sm:$0xff]
    %v2819 = vld [vmem:[#allocation7 + $0x5e8] sm:$0xff]
    %v2820 = vld [vmem:[#allocation7 + $0x5f0] sm:$0xff]
    %v2821 = vld [vmem:[#allocation7 + $0x5f8] sm:$0xff]
    %v2822 = vld [vmem:[#allocation7 + $0x600] sm:$0xff]
    %v2823 = vld [vmem:[#allocation7 + $0x608] sm:$0xff]
    %v2824 = vld [vmem:[#allocation7 + $0x610] sm:$0xff]
    %v2825 = vld [vmem:[#allocation7 + $0x618] sm:$0xff]
    %v2826 = vld [vmem:[#allocation7 + $0x620] sm:$0xff]
    %v2827 = vld [vmem:[#allocation7 + $0x628] sm:$0xff]
    %v2828 = vld [vmem:[#allocation7 + $0x630] sm:$0xff]
    %v2829 = vld [vmem:[#allocation7 + $0x638] sm:$0xff]
    %v2830 = vld [vmem:[#allocation7 + $0x640] sm:$0xff]
    %v2831 = vld [vmem:[#allocation7 + $0x648] sm:$0xff]
    %v2832 = vld [vmem:[#allocation7 + $0x650] sm:$0xff]
    %v2833 = vld [vmem:[#allocation7 + $0x658] sm:$0xff]
    %v2834 = vld [vmem:[#allocation7 + $0x660] sm:$0xff]
    %v2835 = vld [vmem:[#allocation7 + $0x668] sm:$0xff]
    %v2836 = vld [vmem:[#allocation7 + $0x670] sm:$0xff]
    %v2837 = vld [vmem:[#allocation7 + $0x678] sm:$0xff]
    %v2838 = vld [vmem:[#allocation7 + $0x680] sm:$0xff]
    %v2839 = vld [vmem:[#allocation7 + $0x688] sm:$0xff]
    %v2840 = vld [vmem:[#allocation7 + $0x690] sm:$0xff]
    %v2841 = vld [vmem:[#allocation7 + $0x698] sm:$0xff]
    %v2842 = vld [vmem:[#allocation7 + $0x6a0] sm:$0xff]
    %v2843 = vld [vmem:[#allocation7 + $0x6a8] sm:$0xff]
    %v2844 = vld [vmem:[#allocation7 + $0x6b0] sm:$0xff]
    %v2845 = vld [vmem:[#allocation7 + $0x6b8] sm:$0xff]
    %v2846 = vld [vmem:[#allocation7 + $0x6c0] sm:$0xff]
    %v2847 = vld [vmem:[#allocation7 + $0x6c8] sm:$0xff]
    %v2848 = vld [vmem:[#allocation7 + $0x6d0] sm:$0xff]
    %v2849 = vld [vmem:[#allocation7 + $0x6d8] sm:$0xff]
    %v2850 = vld [vmem:[#allocation7 + $0x6e0] sm:$0xff]
    %v2851 = vld [vmem:[#allocation7 + $0x6e8] sm:$0xff]
    %v2852 = vld [vmem:[#allocation7 + $0x6f0] sm:$0xff]
    %v2853 = vld [vmem:[#allocation7 + $0x6f8] sm:$0xff]
    %v2854 = vld [vmem:[#allocation7 + $0x700] sm:$0xff]
    %v2855 = vld [vmem:[#allocation7 + $0x708] sm:$0xff]
    %v2856 = vld [vmem:[#allocation7 + $0x710] sm:$0xff]
    %v2857 = vld [vmem:[#allocation7 + $0x718] sm:$0xff]
    %v2858 = vld [vmem:[#allocation7 + $0x720] sm:$0xff]
    %v2859 = vld [vmem:[#allocation7 + $0x728] sm:$0xff]
    %v2860 = vld [vmem:[#allocation7 + $0x730] sm:$0xff]
    %v2861 = vld [vmem:[#allocation7 + $0x738] sm:$0xff]
    %v2862 = vld [vmem:[#allocation7 + $0x740] sm:$0xff]
    %v2863 = vld [vmem:[#allocation7 + $0x748] sm:$0xff]
    %v2864 = vld [vmem:[#allocation7 + $0x750] sm:$0xff]
    %v2865 = vld [vmem:[#allocation7 + $0x758] sm:$0xff]
    %v2866 = vld [vmem:[#allocation7 + $0x760] sm:$0xff]
    %v2867 = vld [vmem:[#allocation7 + $0x768] sm:$0xff]
    %v2868 = vld [vmem:[#allocation7 + $0x770] sm:$0xff]
    %v2869 = vld [vmem:[#allocation7 + $0x778] sm:$0xff]
    %v2870 = vld [vmem:[#allocation7 + $0x780] sm:$0xff]
    %v2871 = vld [vmem:[#allocation7 + $0x788] sm:$0xff]
    %v2872 = vld [vmem:[#allocation7 + $0x790] sm:$0xff]
    %v2873 = vld [vmem:[#allocation7 + $0x798] sm:$0xff]
    %v2874 = vld [vmem:[#allocation7 + $0x7a0] sm:$0xff]
    %v2875 = vld [vmem:[#allocation7 + $0x7a8] sm:$0xff]
    %v2876 = vld [vmem:[#allocation7 + $0x7b0] sm:$0xff]
    %v2877 = vld [vmem:[#allocation7 + $0x7b8] sm:$0xff]
    %v2878 = vld [vmem:[#allocation7 + $0x7c0] sm:$0xff]
    %v2879 = vld [vmem:[#allocation7 + $0x7c8] sm:$0xff]
    %v2880 = vld [vmem:[#allocation7 + $0x7d0] sm:$0xff]
    %v2881 = vld [vmem:[#allocation7 + $0x7d8] sm:$0xff]
    %v2882 = vld [vmem:[#allocation7 + $0x7e0] sm:$0xff]
    %v2883 = vld [vmem:[#allocation7 + $0x7e8] sm:$0xff]
    %v2884 = vld [vmem:[#allocation7 + $0x7f0] sm:$0xff]
    %v2885 = vld [vmem:[#allocation7 + $0x7f8] sm:$0xff]
    %v2886 = vld [vmem:[%s8] sm:$0xf]
    %v2888 = vlaneseq
    %v2889 = vshrl.u32 %v2888, 7
    %v2890 = vsub.s32 0, %v2889
    %v2891 = vrot.slane %v2886, %v2890
    %v2892 = vlaneseq
    %v2893 = vshrl.u32 %v2892, 7
    %v2894 = vsub.s32 1, %v2893
    %v2895 = vrot.slane %v2886, %v2894
    %v2896 = vlaneseq
    %v2897 = vshrl.u32 %v2896, 7
    %v2898 = vsub.s32 2, %v2897
    %v2899 = vrot.slane %v2886, %v2898
    %v2900 = vlaneseq
    %v2901 = vshrl.u32 %v2900, 7
    %v2902 = vsub.s32 3, %v2901
    %v2903 = vrot.slane %v2886, %v2902
    %v3164 = vunpack.c.l.b16 %v2630
    %v3165 = vunpack.c.h.b16 %v2630
    %v3166 = vunpack.c.l.b16 %v2631
    %v3167 = vunpack.c.h.b16 %v2631
    %v3168 = vunpack.c.l.b16 %v2632
    %v3169 = vunpack.c.h.b16 %v2632
    %v3170 = vunpack.c.l.b16 %v2633
    %v3171 = vunpack.c.h.b16 %v2633
    %v3172 = vunpack.c.l.b16 %v2634
    %v3173 = vunpack.c.h.b16 %v2634
    %v3174 = vunpack.c.l.b16 %v2635
    %v3175 = vunpack.c.h.b16 %v2635
    %v3176 = vunpack.c.l.b16 %v2636
    %v3177 = vunpack.c.h.b16 %v2636
    %v3178 = vunpack.c.l.b16 %v2637
    %v3179 = vunpack.c.h.b16 %v2637
    %v3180 = vunpack.c.l.b16 %v2638
    %v3181 = vunpack.c.h.b16 %v2638
    %v3182 = vunpack.c.l.b16 %v2639
    %v3183 = vunpack.c.h.b16 %v2639
    %v3184 = vunpack.c.l.b16 %v2640
    %v3185 = vunpack.c.h.b16 %v2640
    %v3186 = vunpack.c.l.b16 %v2641
    %v3187 = vunpack.c.h.b16 %v2641
    %v3188 = vunpack.c.l.b16 %v2642
    %v3189 = vunpack.c.h.b16 %v2642
    %v3190 = vunpack.c.l.b16 %v2643
    %v3191 = vunpack.c.h.b16 %v2643
    %v3192 = vunpack.c.l.b16 %v2644
    %v3193 = vunpack.c.h.b16 %v2644
    %v3194 = vunpack.c.l.b16 %v2645
    %v3195 = vunpack.c.h.b16 %v2645
    %v3196 = vunpack.c.l.b16 %v2646
    %v3197 = vunpack.c.h.b16 %v2646
    %v3198 = vunpack.c.l.b16 %v2647
    %v3199 = vunpack.c.h.b16 %v2647
    %v3200 = vunpack.c.l.b16 %v2648
    %v3201 = vunpack.c.h.b16 %v2648
    %v3202 = vunpack.c.l.b16 %v2649
    %v3203 = vunpack.c.h.b16 %v2649
    %v3204 = vunpack.c.l.b16 %v2650
    %v3205 = vunpack.c.h.b16 %v2650
    %v3206 = vunpack.c.l.b16 %v2651
    %v3207 = vunpack.c.h.b16 %v2651
    %v3208 = vunpack.c.l.b16 %v2652
    %v3209 = vunpack.c.h.b16 %v2652
    %v3210 = vunpack.c.l.b16 %v2653
    %v3211 = vunpack.c.h.b16 %v2653
    %v3212 = vunpack.c.l.b16 %v2654
    %v3213 = vunpack.c.h.b16 %v2654
    %v3214 = vunpack.c.l.b16 %v2655
    %v3215 = vunpack.c.h.b16 %v2655
    %v3216 = vunpack.c.l.b16 %v2656
    %v3217 = vunpack.c.h.b16 %v2656
    %v3218 = vunpack.c.l.b16 %v2657
    %v3219 = vunpack.c.h.b16 %v2657
    %v3220 = vunpack.c.l.b16 %v2658
    %v3221 = vunpack.c.h.b16 %v2658
    %v3222 = vunpack.c.l.b16 %v2659
    %v3223 = vunpack.c.h.b16 %v2659
    %v3224 = vunpack.c.l.b16 %v2660
    %v3225 = vunpack.c.h.b16 %v2660
    %v3226 = vunpack.c.l.b16 %v2661
    %v3227 = vunpack.c.h.b16 %v2661
    %v3228 = vunpack.c.l.b16 %v2662
    %v3229 = vunpack.c.h.b16 %v2662
    %v3230 = vunpack.c.l.b16 %v2663
    %v3231 = vunpack.c.h.b16 %v2663
    %v3232 = vunpack.c.l.b16 %v2664
    %v3233 = vunpack.c.h.b16 %v2664
    %v3234 = vunpack.c.l.b16 %v2665
    %v3235 = vunpack.c.h.b16 %v2665
    %v3236 = vunpack.c.l.b16 %v2666
    %v3237 = vunpack.c.h.b16 %v2666
    %v3238 = vunpack.c.l.b16 %v2667
    %v3239 = vunpack.c.h.b16 %v2667
    %v3240 = vunpack.c.l.b16 %v2668
    %v3241 = vunpack.c.h.b16 %v2668
    %v3242 = vunpack.c.l.b16 %v2669
    %v3243 = vunpack.c.h.b16 %v2669
    %v3244 = vunpack.c.l.b16 %v2670
    %v3245 = vunpack.c.h.b16 %v2670
    %v3246 = vunpack.c.l.b16 %v2671
    %v3247 = vunpack.c.h.b16 %v2671
    %v3248 = vunpack.c.l.b16 %v2672
    %v3249 = vunpack.c.h.b16 %v2672
    %v3250 = vunpack.c.l.b16 %v2673
    %v3251 = vunpack.c.h.b16 %v2673
    %v3252 = vunpack.c.l.b16 %v2674
    %v3253 = vunpack.c.h.b16 %v2674
    %v3254 = vunpack.c.l.b16 %v2675
    %v3255 = vunpack.c.h.b16 %v2675
    %v3256 = vunpack.c.l.b16 %v2676
    %v3257 = vunpack.c.h.b16 %v2676
    %v3258 = vunpack.c.l.b16 %v2677
    %v3259 = vunpack.c.h.b16 %v2677
    %v3260 = vunpack.c.l.b16 %v2678
    %v3261 = vunpack.c.h.b16 %v2678
    %v3262 = vunpack.c.l.b16 %v2679
    %v3263 = vunpack.c.h.b16 %v2679
    %v3264 = vunpack.c.l.b16 %v2680
    %v3265 = vunpack.c.h.b16 %v2680
    %v3266 = vunpack.c.l.b16 %v2681
    %v3267 = vunpack.c.h.b16 %v2681
    %v3268 = vunpack.c.l.b16 %v2682
    %v3269 = vunpack.c.h.b16 %v2682
    %v3270 = vunpack.c.l.b16 %v2683
    %v3271 = vunpack.c.h.b16 %v2683
    %v3272 = vunpack.c.l.b16 %v2684
    %v3273 = vunpack.c.h.b16 %v2684
    %v3274 = vunpack.c.l.b16 %v2685
    %v3275 = vunpack.c.h.b16 %v2685
    %v3276 = vunpack.c.l.b16 %v2686
    %v3277 = vunpack.c.h.b16 %v2686
    %v3278 = vunpack.c.l.b16 %v2687
    %v3279 = vunpack.c.h.b16 %v2687
    %v3280 = vunpack.c.l.b16 %v2688
    %v3281 = vunpack.c.h.b16 %v2688
    %v3282 = vunpack.c.l.b16 %v2689
    %v3283 = vunpack.c.h.b16 %v2689
    %v3284 = vunpack.c.l.b16 %v2690
    %v3285 = vunpack.c.h.b16 %v2690
    %v3286 = vunpack.c.l.b16 %v2691
    %v3287 = vunpack.c.h.b16 %v2691
    %v3288 = vunpack.c.l.b16 %v2692
    %v3289 = vunpack.c.h.b16 %v2692
    %v3290 = vunpack.c.l.b16 %v2693
    %v3291 = vunpack.c.h.b16 %v2693
    %v3292 = vunpack.c.l.b16 %v2694
    %v3293 = vunpack.c.h.b16 %v2694
    %v3294 = vunpack.c.l.b16 %v2695
    %v3295 = vunpack.c.h.b16 %v2695
    %v3296 = vunpack.c.l.b16 %v2696
    %v3297 = vunpack.c.h.b16 %v2696
    %v3298 = vunpack.c.l.b16 %v2697
    %v3299 = vunpack.c.h.b16 %v2697
    %v3300 = vunpack.c.l.b16 %v2698
    %v3301 = vunpack.c.h.b16 %v2698
    %v3302 = vunpack.c.l.b16 %v2699
    %v3303 = vunpack.c.h.b16 %v2699
    %v3304 = vunpack.c.l.b16 %v2700
    %v3305 = vunpack.c.h.b16 %v2700
    %v3306 = vunpack.c.l.b16 %v2701
    %v3307 = vunpack.c.h.b16 %v2701
    %v3308 = vunpack.c.l.b16 %v2702
    %v3309 = vunpack.c.h.b16 %v2702
    %v3310 = vunpack.c.l.b16 %v2703
    %v3311 = vunpack.c.h.b16 %v2703
    %v3312 = vunpack.c.l.b16 %v2704
    %v3313 = vunpack.c.h.b16 %v2704
    %v3314 = vunpack.c.l.b16 %v2705
    %v3315 = vunpack.c.h.b16 %v2705
    %v3316 = vunpack.c.l.b16 %v2706
    %v3317 = vunpack.c.h.b16 %v2706
    %v3318 = vunpack.c.l.b16 %v2707
    %v3319 = vunpack.c.h.b16 %v2707
    %v3320 = vunpack.c.l.b16 %v2708
    %v3321 = vunpack.c.h.b16 %v2708
    %v3322 = vunpack.c.l.b16 %v2709
    %v3323 = vunpack.c.h.b16 %v2709
    %v3324 = vunpack.c.l.b16 %v2710
    %v3325 = vunpack.c.h.b16 %v2710
    %v3326 = vunpack.c.l.b16 %v2711
    %v3327 = vunpack.c.h.b16 %v2711
    %v3328 = vunpack.c.l.b16 %v2712
    %v3329 = vunpack.c.h.b16 %v2712
    %v3330 = vunpack.c.l.b16 %v2713
    %v3331 = vunpack.c.h.b16 %v2713
    %v3332 = vunpack.c.l.b16 %v2714
    %v3333 = vunpack.c.h.b16 %v2714
    %v3334 = vunpack.c.l.b16 %v2715
    %v3335 = vunpack.c.h.b16 %v2715
    %v3336 = vunpack.c.l.b16 %v2716
    %v3337 = vunpack.c.h.b16 %v2716
    %v3338 = vunpack.c.l.b16 %v2717
    %v3339 = vunpack.c.h.b16 %v2717
    %v3340 = vunpack.c.l.b16 %v2718
    %v3341 = vunpack.c.h.b16 %v2718
    %v3342 = vunpack.c.l.b16 %v2719
    %v3343 = vunpack.c.h.b16 %v2719
    %v3344 = vunpack.c.l.b16 %v2720
    %v3345 = vunpack.c.h.b16 %v2720
    %v3346 = vunpack.c.l.b16 %v2721
    %v3347 = vunpack.c.h.b16 %v2721
    %v3348 = vunpack.c.l.b16 %v2722
    %v3349 = vunpack.c.h.b16 %v2722
    %v3350 = vunpack.c.l.b16 %v2723
    %v3351 = vunpack.c.h.b16 %v2723
    %v3352 = vunpack.c.l.b16 %v2724
    %v3353 = vunpack.c.h.b16 %v2724
    %v3354 = vunpack.c.l.b16 %v2725
    %v3355 = vunpack.c.h.b16 %v2725
    %v3356 = vunpack.c.l.b16 %v2726
    %v3357 = vunpack.c.h.b16 %v2726
    %v3358 = vunpack.c.l.b16 %v2727
    %v3359 = vunpack.c.h.b16 %v2727
    %v3360 = vunpack.c.l.b16 %v2728
    %v3361 = vunpack.c.h.b16 %v2728
    %v3362 = vunpack.c.l.b16 %v2729
    %v3363 = vunpack.c.h.b16 %v2729
    %v3364 = vunpack.c.l.b16 %v2730
    %v3365 = vunpack.c.h.b16 %v2730
    %v3366 = vunpack.c.l.b16 %v2731
    %v3367 = vunpack.c.h.b16 %v2731
    %v3368 = vunpack.c.l.b16 %v2732
    %v3369 = vunpack.c.h.b16 %v2732
    %v3370 = vunpack.c.l.b16 %v2733
    %v3371 = vunpack.c.h.b16 %v2733
    %v3372 = vunpack.c.l.b16 %v2734
    %v3373 = vunpack.c.h.b16 %v2734
    %v3374 = vunpack.c.l.b16 %v2735
    %v3375 = vunpack.c.h.b16 %v2735
    %v3376 = vunpack.c.l.b16 %v2736
    %v3377 = vunpack.c.h.b16 %v2736
    %v3378 = vunpack.c.l.b16 %v2737
    %v3379 = vunpack.c.h.b16 %v2737
    %v3380 = vunpack.c.l.b16 %v2738
    %v3381 = vunpack.c.h.b16 %v2738
    %v3382 = vunpack.c.l.b16 %v2739
    %v3383 = vunpack.c.h.b16 %v2739
    %v3384 = vunpack.c.l.b16 %v2740
    %v3385 = vunpack.c.h.b16 %v2740
    %v3386 = vunpack.c.l.b16 %v2741
    %v3387 = vunpack.c.h.b16 %v2741
    %v3388 = vunpack.c.l.b16 %v2742
    %v3389 = vunpack.c.h.b16 %v2742
    %v3390 = vunpack.c.l.b16 %v2743
    %v3391 = vunpack.c.h.b16 %v2743
    %v3392 = vunpack.c.l.b16 %v2744
    %v3393 = vunpack.c.h.b16 %v2744
    %v3394 = vunpack.c.l.b16 %v2745
    %v3395 = vunpack.c.h.b16 %v2745
    %v3396 = vunpack.c.l.b16 %v2746
    %v3397 = vunpack.c.h.b16 %v2746
    %v3398 = vunpack.c.l.b16 %v2747
    %v3399 = vunpack.c.h.b16 %v2747
    %v3400 = vunpack.c.l.b16 %v2748
    %v3401 = vunpack.c.h.b16 %v2748
    %v3402 = vunpack.c.l.b16 %v2749
    %v3403 = vunpack.c.h.b16 %v2749
    %v3404 = vunpack.c.l.b16 %v2750
    %v3405 = vunpack.c.h.b16 %v2750
    %v3406 = vunpack.c.l.b16 %v2751
    %v3407 = vunpack.c.h.b16 %v2751
    %v3408 = vunpack.c.l.b16 %v2752
    %v3409 = vunpack.c.h.b16 %v2752
    %v3410 = vunpack.c.l.b16 %v2753
    %v3411 = vunpack.c.h.b16 %v2753
    %v3412 = vunpack.c.l.b16 %v2754
    %v3413 = vunpack.c.h.b16 %v2754
    %v3414 = vunpack.c.l.b16 %v2755
    %v3415 = vunpack.c.h.b16 %v2755
    %v3416 = vunpack.c.l.b16 %v2756
    %v3417 = vunpack.c.h.b16 %v2756
    %v3418 = vunpack.c.l.b16 %v2757
    %v3419 = vunpack.c.h.b16 %v2757
    %v3420 = vunpack.c.l.b16 %v2758
    %v3421 = vunpack.c.h.b16 %v2758
    %v3422 = vunpack.c.l.b16 %v2759
    %v3423 = vunpack.c.h.b16 %v2759
    %v3424 = vunpack.c.l.b16 %v2760
    %v3425 = vunpack.c.h.b16 %v2760
    %v3426 = vunpack.c.l.b16 %v2761
    %v3427 = vunpack.c.h.b16 %v2761
    %v3428 = vunpack.c.l.b16 %v2762
    %v3429 = vunpack.c.h.b16 %v2762
    %v3430 = vunpack.c.l.b16 %v2763
    %v3431 = vunpack.c.h.b16 %v2763
    %v3432 = vunpack.c.l.b16 %v2764
    %v3433 = vunpack.c.h.b16 %v2764
    %v3434 = vunpack.c.l.b16 %v2765
    %v3435 = vunpack.c.h.b16 %v2765
    %v3436 = vunpack.c.l.b16 %v2766
    %v3437 = vunpack.c.h.b16 %v2766
    %v3438 = vunpack.c.l.b16 %v2767
    %v3439 = vunpack.c.h.b16 %v2767
    %v3440 = vunpack.c.l.b16 %v2768
    %v3441 = vunpack.c.h.b16 %v2768
    %v3442 = vunpack.c.l.b16 %v2769
    %v3443 = vunpack.c.h.b16 %v2769
    %v3444 = vunpack.c.l.b16 %v2770
    %v3445 = vunpack.c.h.b16 %v2770
    %v3446 = vunpack.c.l.b16 %v2771
    %v3447 = vunpack.c.h.b16 %v2771
    %v3448 = vunpack.c.l.b16 %v2772
    %v3449 = vunpack.c.h.b16 %v2772
    %v3450 = vunpack.c.l.b16 %v2773
    %v3451 = vunpack.c.h.b16 %v2773
    %v3452 = vunpack.c.l.b16 %v2774
    %v3453 = vunpack.c.h.b16 %v2774
    %v3454 = vunpack.c.l.b16 %v2775
    %v3455 = vunpack.c.h.b16 %v2775
    %v3456 = vunpack.c.l.b16 %v2776
    %v3457 = vunpack.c.h.b16 %v2776
    %v3458 = vunpack.c.l.b16 %v2777
    %v3459 = vunpack.c.h.b16 %v2777
    %v3460 = vunpack.c.l.b16 %v2778
    %v3461 = vunpack.c.h.b16 %v2778
    %v3462 = vunpack.c.l.b16 %v2779
    %v3463 = vunpack.c.h.b16 %v2779
    %v3464 = vunpack.c.l.b16 %v2780
    %v3465 = vunpack.c.h.b16 %v2780
    %v3466 = vunpack.c.l.b16 %v2781
    %v3467 = vunpack.c.h.b16 %v2781
    %v3468 = vunpack.c.l.b16 %v2782
    %v3469 = vunpack.c.h.b16 %v2782
    %v3470 = vunpack.c.l.b16 %v2783
    %v3471 = vunpack.c.h.b16 %v2783
    %v3472 = vunpack.c.l.b16 %v2784
    %v3473 = vunpack.c.h.b16 %v2784
    %v3474 = vunpack.c.l.b16 %v2785
    %v3475 = vunpack.c.h.b16 %v2785
    %v3476 = vunpack.c.l.b16 %v2786
    %v3477 = vunpack.c.h.b16 %v2786
    %v3478 = vunpack.c.l.b16 %v2787
    %v3479 = vunpack.c.h.b16 %v2787
    %v3480 = vunpack.c.l.b16 %v2788
    %v3481 = vunpack.c.h.b16 %v2788
    %v3482 = vunpack.c.l.b16 %v2789
    %v3483 = vunpack.c.h.b16 %v2789
    %v3484 = vunpack.c.l.b16 %v2790
    %v3485 = vunpack.c.h.b16 %v2790
    %v3486 = vunpack.c.l.b16 %v2791
    %v3487 = vunpack.c.h.b16 %v2791
    %v3488 = vunpack.c.l.b16 %v2792
    %v3489 = vunpack.c.h.b16 %v2792
    %v3490 = vunpack.c.l.b16 %v2793
    %v3491 = vunpack.c.h.b16 %v2793
    %v3492 = vunpack.c.l.b16 %v2794
    %v3493 = vunpack.c.h.b16 %v2794
    %v3494 = vunpack.c.l.b16 %v2795
    %v3495 = vunpack.c.h.b16 %v2795
    %v3496 = vunpack.c.l.b16 %v2796
    %v3497 = vunpack.c.h.b16 %v2796
    %v3498 = vunpack.c.l.b16 %v2797
    %v3499 = vunpack.c.h.b16 %v2797
    %v3500 = vunpack.c.l.b16 %v2798
    %v3501 = vunpack.c.h.b16 %v2798
    %v3502 = vunpack.c.l.b16 %v2799
    %v3503 = vunpack.c.h.b16 %v2799
    %v3504 = vunpack.c.l.b16 %v2800
    %v3505 = vunpack.c.h.b16 %v2800
    %v3506 = vunpack.c.l.b16 %v2801
    %v3507 = vunpack.c.h.b16 %v2801
    %v3508 = vunpack.c.l.b16 %v2802
    %v3509 = vunpack.c.h.b16 %v2802
    %v3510 = vunpack.c.l.b16 %v2803
    %v3511 = vunpack.c.h.b16 %v2803
    %v3512 = vunpack.c.l.b16 %v2804
    %v3513 = vunpack.c.h.b16 %v2804
    %v3514 = vunpack.c.l.b16 %v2805
    %v3515 = vunpack.c.h.b16 %v2805
    %v3516 = vunpack.c.l.b16 %v2806
    %v3517 = vunpack.c.h.b16 %v2806
    %v3518 = vunpack.c.l.b16 %v2807
    %v3519 = vunpack.c.h.b16 %v2807
    %v3520 = vunpack.c.l.b16 %v2808
    %v3521 = vunpack.c.h.b16 %v2808
    %v3522 = vunpack.c.l.b16 %v2809
    %v3523 = vunpack.c.h.b16 %v2809
    %v3524 = vunpack.c.l.b16 %v2810
    %v3525 = vunpack.c.h.b16 %v2810
    %v3526 = vunpack.c.l.b16 %v2811
    %v3527 = vunpack.c.h.b16 %v2811
    %v3528 = vunpack.c.l.b16 %v2812
    %v3529 = vunpack.c.h.b16 %v2812
    %v3530 = vunpack.c.l.b16 %v2813
    %v3531 = vunpack.c.h.b16 %v2813
    %v3532 = vunpack.c.l.b16 %v2814
    %v3533 = vunpack.c.h.b16 %v2814
    %v3534 = vunpack.c.l.b16 %v2815
    %v3535 = vunpack.c.h.b16 %v2815
    %v3536 = vunpack.c.l.b16 %v2816
    %v3537 = vunpack.c.h.b16 %v2816
    %v3538 = vunpack.c.l.b16 %v2817
    %v3539 = vunpack.c.h.b16 %v2817
    %v3540 = vunpack.c.l.b16 %v2818
    %v3541 = vunpack.c.h.b16 %v2818
    %v3542 = vunpack.c.l.b16 %v2819
    %v3543 = vunpack.c.h.b16 %v2819
    %v3544 = vunpack.c.l.b16 %v2820
    %v3545 = vunpack.c.h.b16 %v2820
    %v3546 = vunpack.c.l.b16 %v2821
    %v3547 = vunpack.c.h.b16 %v2821
    %v3548 = vunpack.c.l.b16 %v2822
    %v3549 = vunpack.c.h.b16 %v2822
    %v3550 = vunpack.c.l.b16 %v2823
    %v3551 = vunpack.c.h.b16 %v2823
    %v3552 = vunpack.c.l.b16 %v2824
    %v3553 = vunpack.c.h.b16 %v2824
    %v3554 = vunpack.c.l.b16 %v2825
    %v3555 = vunpack.c.h.b16 %v2825
    %v3556 = vunpack.c.l.b16 %v2826
    %v3557 = vunpack.c.h.b16 %v2826
    %v3558 = vunpack.c.l.b16 %v2827
    %v3559 = vunpack.c.h.b16 %v2827
    %v3560 = vunpack.c.l.b16 %v2828
    %v3561 = vunpack.c.h.b16 %v2828
    %v3562 = vunpack.c.l.b16 %v2829
    %v3563 = vunpack.c.h.b16 %v2829
    %v3564 = vunpack.c.l.b16 %v2830
    %v3565 = vunpack.c.h.b16 %v2830
    %v3566 = vunpack.c.l.b16 %v2831
    %v3567 = vunpack.c.h.b16 %v2831
    %v3568 = vunpack.c.l.b16 %v2832
    %v3569 = vunpack.c.h.b16 %v2832
    %v3570 = vunpack.c.l.b16 %v2833
    %v3571 = vunpack.c.h.b16 %v2833
    %v3572 = vunpack.c.l.b16 %v2834
    %v3573 = vunpack.c.h.b16 %v2834
    %v3574 = vunpack.c.l.b16 %v2835
    %v3575 = vunpack.c.h.b16 %v2835
    %v3576 = vunpack.c.l.b16 %v2836
    %v3577 = vunpack.c.h.b16 %v2836
    %v3578 = vunpack.c.l.b16 %v2837
    %v3579 = vunpack.c.h.b16 %v2837
    %v3580 = vunpack.c.l.b16 %v2838
    %v3581 = vunpack.c.h.b16 %v2838
    %v3582 = vunpack.c.l.b16 %v2839
    %v3583 = vunpack.c.h.b16 %v2839
    %v3584 = vunpack.c.l.b16 %v2840
    %v3585 = vunpack.c.h.b16 %v2840
    %v3586 = vunpack.c.l.b16 %v2841
    %v3587 = vunpack.c.h.b16 %v2841
    %v3588 = vunpack.c.l.b16 %v2842
    %v3589 = vunpack.c.h.b16 %v2842
    %v3590 = vunpack.c.l.b16 %v2843
    %v3591 = vunpack.c.h.b16 %v2843
    %v3592 = vunpack.c.l.b16 %v2844
    %v3593 = vunpack.c.h.b16 %v2844
    %v3594 = vunpack.c.l.b16 %v2845
    %v3595 = vunpack.c.h.b16 %v2845
    %v3596 = vunpack.c.l.b16 %v2846
    %v3597 = vunpack.c.h.b16 %v2846
    %v3598 = vunpack.c.l.b16 %v2847
    %v3599 = vunpack.c.h.b16 %v2847
    %v3600 = vunpack.c.l.b16 %v2848
    %v3601 = vunpack.c.h.b16 %v2848
    %v3602 = vunpack.c.l.b16 %v2849
    %v3603 = vunpack.c.h.b16 %v2849
    %v3604 = vunpack.c.l.b16 %v2850
    %v3605 = vunpack.c.h.b16 %v2850
    %v3606 = vunpack.c.l.b16 %v2851
    %v3607 = vunpack.c.h.b16 %v2851
    %v3608 = vunpack.c.l.b16 %v2852
    %v3609 = vunpack.c.h.b16 %v2852
    %v3610 = vunpack.c.l.b16 %v2853
    %v3611 = vunpack.c.h.b16 %v2853
    %v3612 = vunpack.c.l.b16 %v2854
    %v3613 = vunpack.c.h.b16 %v2854
    %v3614 = vunpack.c.l.b16 %v2855
    %v3615 = vunpack.c.h.b16 %v2855
    %v3616 = vunpack.c.l.b16 %v2856
    %v3617 = vunpack.c.h.b16 %v2856
    %v3618 = vunpack.c.l.b16 %v2857
    %v3619 = vunpack.c.h.b16 %v2857
    %v3620 = vunpack.c.l.b16 %v2858
    %v3621 = vunpack.c.h.b16 %v2858
    %v3622 = vunpack.c.l.b16 %v2859
    %v3623 = vunpack.c.h.b16 %v2859
    %v3624 = vunpack.c.l.b16 %v2860
    %v3625 = vunpack.c.h.b16 %v2860
    %v3626 = vunpack.c.l.b16 %v2861
    %v3627 = vunpack.c.h.b16 %v2861
    %v3628 = vunpack.c.l.b16 %v2862
    %v3629 = vunpack.c.h.b16 %v2862
    %v3630 = vunpack.c.l.b16 %v2863
    %v3631 = vunpack.c.h.b16 %v2863
    %v3632 = vunpack.c.l.b16 %v2864
    %v3633 = vunpack.c.h.b16 %v2864
    %v3634 = vunpack.c.l.b16 %v2865
    %v3635 = vunpack.c.h.b16 %v2865
    %v3636 = vunpack.c.l.b16 %v2866
    %v3637 = vunpack.c.h.b16 %v2866
    %v3638 = vunpack.c.l.b16 %v2867
    %v3639 = vunpack.c.h.b16 %v2867
    %v3640 = vunpack.c.l.b16 %v2868
    %v3641 = vunpack.c.h.b16 %v2868
    %v3642 = vunpack.c.l.b16 %v2869
    %v3643 = vunpack.c.h.b16 %v2869
    %v3644 = vunpack.c.l.b16 %v2870
    %v3645 = vunpack.c.h.b16 %v2870
    %v3646 = vunpack.c.l.b16 %v2871
    %v3647 = vunpack.c.h.b16 %v2871
    %v3648 = vunpack.c.l.b16 %v2872
    %v3649 = vunpack.c.h.b16 %v2872
    %v3650 = vunpack.c.l.b16 %v2873
    %v3651 = vunpack.c.h.b16 %v2873
    %v3652 = vunpack.c.l.b16 %v2874
    %v3653 = vunpack.c.h.b16 %v2874
    %v3654 = vunpack.c.l.b16 %v2875
    %v3655 = vunpack.c.h.b16 %v2875
    %v3656 = vunpack.c.l.b16 %v2876
    %v3657 = vunpack.c.h.b16 %v2876
    %v3658 = vunpack.c.l.b16 %v2877
    %v3659 = vunpack.c.h.b16 %v2877
    %v3660 = vunpack.c.l.b16 %v2878
    %v3661 = vunpack.c.h.b16 %v2878
    %v3662 = vunpack.c.l.b16 %v2879
    %v3663 = vunpack.c.h.b16 %v2879
    %v3664 = vunpack.c.l.b16 %v2880
    %v3665 = vunpack.c.h.b16 %v2880
    %v3666 = vunpack.c.l.b16 %v2881
    %v3667 = vunpack.c.h.b16 %v2881
    %v3668 = vunpack.c.l.b16 %v2882
    %v3669 = vunpack.c.h.b16 %v2882
    %v3670 = vunpack.c.l.b16 %v2883
    %v3671 = vunpack.c.h.b16 %v2883
    %v3672 = vunpack.c.l.b16 %v2884
    %v3673 = vunpack.c.h.b16 %v2884
    %v3674 = vunpack.c.l.b16 %v2885
    %v3675 = vunpack.c.h.b16 %v2885
    %v3676 = vpack.c.b16 %v3168, %v3164
    %v3677 = vpack.c.b16 %v3169, %v3165
    %v3678 = vpack.c.b16 %v3170, %v3166
    %v3679 = vpack.c.b16 %v3171, %v3167
    %v3680 = vpack.c.b16 %v3176, %v3172
    %v3681 = vpack.c.b16 %v3177, %v3173
    %v3682 = vpack.c.b16 %v3178, %v3174
    %v3683 = vpack.c.b16 %v3179, %v3175
    %v3684 = vpack.c.b16 %v3184, %v3180
    %v3685 = vpack.c.b16 %v3185, %v3181
    %v3686 = vpack.c.b16 %v3186, %v3182
    %v3687 = vpack.c.b16 %v3187, %v3183
    %v3688 = vpack.c.b16 %v3192, %v3188
    %v3689 = vpack.c.b16 %v3193, %v3189
    %v3690 = vpack.c.b16 %v3194, %v3190
    %v3691 = vpack.c.b16 %v3195, %v3191
    %v3692 = vpack.c.b16 %v3200, %v3196
    %v3693 = vpack.c.b16 %v3201, %v3197
    %v3694 = vpack.c.b16 %v3202, %v3198
    %v3695 = vpack.c.b16 %v3203, %v3199
    %v3696 = vpack.c.b16 %v3208, %v3204
    %v3697 = vpack.c.b16 %v3209, %v3205
    %v3698 = vpack.c.b16 %v3210, %v3206
    %v3699 = vpack.c.b16 %v3211, %v3207
    %v3700 = vpack.c.b16 %v3216, %v3212
    %v3701 = vpack.c.b16 %v3217, %v3213
    %v3702 = vpack.c.b16 %v3218, %v3214
    %v3703 = vpack.c.b16 %v3219, %v3215
    %v3704 = vpack.c.b16 %v3224, %v3220
    %v3705 = vpack.c.b16 %v3225, %v3221
    %v3706 = vpack.c.b16 %v3226, %v3222
    %v3707 = vpack.c.b16 %v3227, %v3223
    %v3708 = vpack.c.b16 %v3232, %v3228
    %v3709 = vpack.c.b16 %v3233, %v3229
    %v3710 = vpack.c.b16 %v3234, %v3230
    %v3711 = vpack.c.b16 %v3235, %v3231
    %v3712 = vpack.c.b16 %v3240, %v3236
    %v3713 = vpack.c.b16 %v3241, %v3237
    %v3714 = vpack.c.b16 %v3242, %v3238
    %v3715 = vpack.c.b16 %v3243, %v3239
    %v3716 = vpack.c.b16 %v3248, %v3244
    %v3717 = vpack.c.b16 %v3249, %v3245
    %v3718 = vpack.c.b16 %v3250, %v3246
    %v3719 = vpack.c.b16 %v3251, %v3247
    %v3720 = vpack.c.b16 %v3256, %v3252
    %v3721 = vpack.c.b16 %v3257, %v3253
    %v3722 = vpack.c.b16 %v3258, %v3254
    %v3723 = vpack.c.b16 %v3259, %v3255
    %v3724 = vpack.c.b16 %v3264, %v3260
    %v3725 = vpack.c.b16 %v3265, %v3261
    %v3726 = vpack.c.b16 %v3266, %v3262
    %v3727 = vpack.c.b16 %v3267, %v3263
    %v3728 = vpack.c.b16 %v3272, %v3268
    %v3729 = vpack.c.b16 %v3273, %v3269
    %v3730 = vpack.c.b16 %v3274, %v3270
    %v3731 = vpack.c.b16 %v3275, %v3271
    %v3732 = vpack.c.b16 %v3280, %v3276
    %v3733 = vpack.c.b16 %v3281, %v3277
    %v3734 = vpack.c.b16 %v3282, %v3278
    %v3735 = vpack.c.b16 %v3283, %v3279
    %v3736 = vpack.c.b16 %v3288, %v3284
    %v3737 = vpack.c.b16 %v3289, %v3285
    %v3738 = vpack.c.b16 %v3290, %v3286
    %v3739 = vpack.c.b16 %v3291, %v3287
    %v3740 = vpack.c.b16 %v3296, %v3292
    %v3741 = vpack.c.b16 %v3297, %v3293
    %v3742 = vpack.c.b16 %v3298, %v3294
    %v3743 = vpack.c.b16 %v3299, %v3295
    %v3744 = vpack.c.b16 %v3304, %v3300
    %v3745 = vpack.c.b16 %v3305, %v3301
    %v3746 = vpack.c.b16 %v3306, %v3302
    %v3747 = vpack.c.b16 %v3307, %v3303
    %v3748 = vpack.c.b16 %v3312, %v3308
    %v3749 = vpack.c.b16 %v3313, %v3309
    %v3750 = vpack.c.b16 %v3314, %v3310
    %v3751 = vpack.c.b16 %v3315, %v3311
    %v3752 = vpack.c.b16 %v3320, %v3316
    %v3753 = vpack.c.b16 %v3321, %v3317
    %v3754 = vpack.c.b16 %v3322, %v3318
    %v3755 = vpack.c.b16 %v3323, %v3319
    %v3756 = vpack.c.b16 %v3328, %v3324
    %v3757 = vpack.c.b16 %v3329, %v3325
    %v3758 = vpack.c.b16 %v3330, %v3326
    %v3759 = vpack.c.b16 %v3331, %v3327
    %v3760 = vpack.c.b16 %v3336, %v3332
    %v3761 = vpack.c.b16 %v3337, %v3333
    %v3762 = vpack.c.b16 %v3338, %v3334
    %v3763 = vpack.c.b16 %v3339, %v3335
    %v3764 = vpack.c.b16 %v3344, %v3340
    %v3765 = vpack.c.b16 %v3345, %v3341
    %v3766 = vpack.c.b16 %v3346, %v3342
    %v3767 = vpack.c.b16 %v3347, %v3343
    %v3768 = vpack.c.b16 %v3352, %v3348
    %v3769 = vpack.c.b16 %v3353, %v3349
    %v3770 = vpack.c.b16 %v3354, %v3350
    %v3771 = vpack.c.b16 %v3355, %v3351
    %v3772 = vpack.c.b16 %v3360, %v3356
    %v3773 = vpack.c.b16 %v3361, %v3357
    %v3774 = vpack.c.b16 %v3362, %v3358
    %v3775 = vpack.c.b16 %v3363, %v3359
    %v3776 = vpack.c.b16 %v3368, %v3364
    %v3777 = vpack.c.b16 %v3369, %v3365
    %v3778 = vpack.c.b16 %v3370, %v3366
    %v3779 = vpack.c.b16 %v3371, %v3367
    %v3780 = vpack.c.b16 %v3376, %v3372
    %v3781 = vpack.c.b16 %v3377, %v3373
    %v3782 = vpack.c.b16 %v3378, %v3374
    %v3783 = vpack.c.b16 %v3379, %v3375
    %v3784 = vpack.c.b16 %v3384, %v3380
    %v3785 = vpack.c.b16 %v3385, %v3381
    %v3786 = vpack.c.b16 %v3386, %v3382
    %v3787 = vpack.c.b16 %v3387, %v3383
    %v3788 = vpack.c.b16 %v3392, %v3388
    %v3789 = vpack.c.b16 %v3393, %v3389
    %v3790 = vpack.c.b16 %v3394, %v3390
    %v3791 = vpack.c.b16 %v3395, %v3391
    %v3792 = vpack.c.b16 %v3400, %v3396
    %v3793 = vpack.c.b16 %v3401, %v3397
    %v3794 = vpack.c.b16 %v3402, %v3398
    %v3795 = vpack.c.b16 %v3403, %v3399
    %v3796 = vpack.c.b16 %v3408, %v3404
    %v3797 = vpack.c.b16 %v3409, %v3405
    %v3798 = vpack.c.b16 %v3410, %v3406
    %v3799 = vpack.c.b16 %v3411, %v3407
    %v3800 = vpack.c.b16 %v3416, %v3412
    %v3801 = vpack.c.b16 %v3417, %v3413
    %v3802 = vpack.c.b16 %v3418, %v3414
    %v3803 = vpack.c.b16 %v3419, %v3415
    %v3804 = vpack.c.b16 %v3424, %v3420
    %v3805 = vpack.c.b16 %v3425, %v3421
    %v3806 = vpack.c.b16 %v3426, %v3422
    %v3807 = vpack.c.b16 %v3427, %v3423
    %v3808 = vpack.c.b16 %v3432, %v3428
    %v3809 = vpack.c.b16 %v3433, %v3429
    %v3810 = vpack.c.b16 %v3434, %v3430
    %v3811 = vpack.c.b16 %v3435, %v3431
    %v3812 = vpack.c.b16 %v3440, %v3436
    %v3813 = vpack.c.b16 %v3441, %v3437
    %v3814 = vpack.c.b16 %v3442, %v3438
    %v3815 = vpack.c.b16 %v3443, %v3439
    %v3816 = vpack.c.b16 %v3448, %v3444
    %v3817 = vpack.c.b16 %v3449, %v3445
    %v3818 = vpack.c.b16 %v3450, %v3446
    %v3819 = vpack.c.b16 %v3451, %v3447
    %v3820 = vpack.c.b16 %v3456, %v3452
    %v3821 = vpack.c.b16 %v3457, %v3453
    %v3822 = vpack.c.b16 %v3458, %v3454
    %v3823 = vpack.c.b16 %v3459, %v3455
    %v3824 = vpack.c.b16 %v3464, %v3460
    %v3825 = vpack.c.b16 %v3465, %v3461
    %v3826 = vpack.c.b16 %v3466, %v3462
    %v3827 = vpack.c.b16 %v3467, %v3463
    %v3828 = vpack.c.b16 %v3472, %v3468
    %v3829 = vpack.c.b16 %v3473, %v3469
    %v3830 = vpack.c.b16 %v3474, %v3470
    %v3831 = vpack.c.b16 %v3475, %v3471
    %v3832 = vpack.c.b16 %v3480, %v3476
    %v3833 = vpack.c.b16 %v3481, %v3477
    %v3834 = vpack.c.b16 %v3482, %v3478
    %v3835 = vpack.c.b16 %v3483, %v3479
    %v3836 = vpack.c.b16 %v3488, %v3484
    %v3837 = vpack.c.b16 %v3489, %v3485
    %v3838 = vpack.c.b16 %v3490, %v3486
    %v3839 = vpack.c.b16 %v3491, %v3487
    %v3840 = vpack.c.b16 %v3496, %v3492
    %v3841 = vpack.c.b16 %v3497, %v3493
    %v3842 = vpack.c.b16 %v3498, %v3494
    %v3843 = vpack.c.b16 %v3499, %v3495
    %v3844 = vpack.c.b16 %v3504, %v3500
    %v3845 = vpack.c.b16 %v3505, %v3501
    %v3846 = vpack.c.b16 %v3506, %v3502
    %v3847 = vpack.c.b16 %v3507, %v3503
    %v3848 = vpack.c.b16 %v3512, %v3508
    %v3849 = vpack.c.b16 %v3513, %v3509
    %v3850 = vpack.c.b16 %v3514, %v3510
    %v3851 = vpack.c.b16 %v3515, %v3511
    %v3852 = vpack.c.b16 %v3520, %v3516
    %v3853 = vpack.c.b16 %v3521, %v3517
    %v3854 = vpack.c.b16 %v3522, %v3518
    %v3855 = vpack.c.b16 %v3523, %v3519
    %v3856 = vpack.c.b16 %v3528, %v3524
    %v3857 = vpack.c.b16 %v3529, %v3525
    %v3858 = vpack.c.b16 %v3530, %v3526
    %v3859 = vpack.c.b16 %v3531, %v3527
    %v3860 = vpack.c.b16 %v3536, %v3532
    %v3861 = vpack.c.b16 %v3537, %v3533
    %v3862 = vpack.c.b16 %v3538, %v3534
    %v3863 = vpack.c.b16 %v3539, %v3535
    %v3864 = vpack.c.b16 %v3544, %v3540
    %v3865 = vpack.c.b16 %v3545, %v3541
    %v3866 = vpack.c.b16 %v3546, %v3542
    %v3867 = vpack.c.b16 %v3547, %v3543
    %v3868 = vpack.c.b16 %v3552, %v3548
    %v3869 = vpack.c.b16 %v3553, %v3549
    %v3870 = vpack.c.b16 %v3554, %v3550
    %v3871 = vpack.c.b16 %v3555, %v3551
    %v3872 = vpack.c.b16 %v3560, %v3556
    %v3873 = vpack.c.b16 %v3561, %v3557
    %v3874 = vpack.c.b16 %v3562, %v3558
    %v3875 = vpack.c.b16 %v3563, %v3559
    %v3876 = vpack.c.b16 %v3568, %v3564
    %v3877 = vpack.c.b16 %v3569, %v3565
    %v3878 = vpack.c.b16 %v3570, %v3566
    %v3879 = vpack.c.b16 %v3571, %v3567
    %v3880 = vpack.c.b16 %v3576, %v3572
    %v3881 = vpack.c.b16 %v3577, %v3573
    %v3882 = vpack.c.b16 %v3578, %v3574
    %v3883 = vpack.c.b16 %v3579, %v3575
    %v3884 = vpack.c.b16 %v3584, %v3580
    %v3885 = vpack.c.b16 %v3585, %v3581
    %v3886 = vpack.c.b16 %v3586, %v3582
    %v3887 = vpack.c.b16 %v3587, %v3583
    %v3888 = vpack.c.b16 %v3592, %v3588
    %v3889 = vpack.c.b16 %v3593, %v3589
    %v3890 = vpack.c.b16 %v3594, %v3590
    %v3891 = vpack.c.b16 %v3595, %v3591
    %v3892 = vpack.c.b16 %v3600, %v3596
    %v3893 = vpack.c.b16 %v3601, %v3597
    %v3894 = vpack.c.b16 %v3602, %v3598
    %v3895 = vpack.c.b16 %v3603, %v3599
    %v3896 = vpack.c.b16 %v3608, %v3604
    %v3897 = vpack.c.b16 %v3609, %v3605
    %v3898 = vpack.c.b16 %v3610, %v3606
    %v3899 = vpack.c.b16 %v3611, %v3607
    %v3900 = vpack.c.b16 %v3616, %v3612
    %v3901 = vpack.c.b16 %v3617, %v3613
    %v3902 = vpack.c.b16 %v3618, %v3614
    %v3903 = vpack.c.b16 %v3619, %v3615
    %v3904 = vpack.c.b16 %v3624, %v3620
    %v3905 = vpack.c.b16 %v3625, %v3621
    %v3906 = vpack.c.b16 %v3626, %v3622
    %v3907 = vpack.c.b16 %v3627, %v3623
    %v3908 = vpack.c.b16 %v3632, %v3628
    %v3909 = vpack.c.b16 %v3633, %v3629
    %v3910 = vpack.c.b16 %v3634, %v3630
    %v3911 = vpack.c.b16 %v3635, %v3631
    %v3912 = vpack.c.b16 %v3640, %v3636
    %v3913 = vpack.c.b16 %v3641, %v3637
    %v3914 = vpack.c.b16 %v3642, %v3638
    %v3915 = vpack.c.b16 %v3643, %v3639
    %v3916 = vpack.c.b16 %v3648, %v3644
    %v3917 = vpack.c.b16 %v3649, %v3645
    %v3918 = vpack.c.b16 %v3650, %v3646
    %v3919 = vpack.c.b16 %v3651, %v3647
    %v3920 = vpack.c.b16 %v3656, %v3652
    %v3921 = vpack.c.b16 %v3657, %v3653
    %v3922 = vpack.c.b16 %v3658, %v3654
    %v3923 = vpack.c.b16 %v3659, %v3655
    %v3924 = vpack.c.b16 %v3664, %v3660
    %v3925 = vpack.c.b16 %v3665, %v3661
    %v3926 = vpack.c.b16 %v3666, %v3662
    %v3927 = vpack.c.b16 %v3667, %v3663
    %v3928 = vpack.c.b16 %v3672, %v3668
    %v3929 = vpack.c.b16 %v3673, %v3669
    %v3930 = vpack.c.b16 %v3674, %v3670
    %v3931 = vpack.c.b16 %v3675, %v3671
    %4188 = vmatprep.subr.bf16.mxu0 %v3705
    %4189 = vmatpush1.bf16.msra.mxu0 %v3704
    %4190 = vmatprep.subr.bf16.mxu0 %v3701
    %4191 = vmatpush1.bf16.msra.mxu0 %v3700
    %4192 = vmatprep.subr.bf16.mxu0 %v3697
    %4193 = vmatpush1.bf16.msra.mxu0 %v3696
    %4194 = vmatprep.subr.bf16.mxu0 %v3693
    %4195 = vmatpush1.bf16.msra.mxu0 %v3692
    %4196 = vmatprep.subr.bf16.mxu0 %v3689
    %4197 = vmatpush1.bf16.msra.mxu0 %v3688
    %4198 = vmatprep.subr.bf16.mxu0 %v3685
    %4199 = vmatpush1.bf16.msra.mxu0 %v3684
    %4200 = vmatprep.subr.bf16.mxu0 %v3681
    %4201 = vmatpush1.bf16.msra.mxu0 %v3680
    %4202 = vmatprep.subr.bf16.mxu0 %v3677
    %4203 = vmatpush1.bf16.msra.mxu0 %v3676
    %4204 = vmatprep.subr.bf16.mxu0 %v3737
    %4205 = vmatpush2.bf16.msra.mxu0 %v3736
    %4206 = vmatprep.subr.bf16.mxu0 %v3733
    %4207 = vmatpush2.bf16.msra.mxu0 %v3732
    %4208 = vmatprep.subr.bf16.mxu0 %v3729
    %4209 = vmatpush2.bf16.msra.mxu0 %v3728
    %4210 = vmatprep.subr.bf16.mxu0 %v3725
    %4211 = vmatpush2.bf16.msra.mxu0 %v3724
    %4212 = vmatprep.subr.bf16.mxu0 %v3721
    %4213 = vmatpush2.bf16.msra.mxu0 %v3720
    %4214 = vmatprep.subr.bf16.mxu0 %v3717
    %4215 = vmatpush2.bf16.msra.mxu0 %v3716
    %4216 = vmatprep.subr.bf16.mxu0 %v3713
    %4217 = vmatpush2.bf16.msra.mxu0 %v3712
    %4218 = vmatprep.subr.bf16.mxu0 %v3709
    %4219 = vmatpush2.bf16.msra.mxu0 %v3708
    %4220 = vmatprep.mubr.bf16.mxu0 %v2623
    %4221 = vmatmul.mubr.bf16.gmra.mxu0 %v2622
    %v4222 = vpop.f32.mrf.mxu0
    %v4223 = vadd.f32 %v2891, %v4222
    %v4224 = vpop.f32.mrf.mxu0
    %v4225 = vadd.f32 %v2895, %v4224
    %v4226 = vpop.f32.mrf.mxu0
    %v4227 = vpop.f32.mrf.mxu0
    %4228 = vdwg.mxu0
    %4229 = vmatprep.subr.bf16.mxu0 %v3769
    %4230 = vmatpush1.bf16.msra.mxu0 %v3768
    %4231 = vmatprep.subr.bf16.mxu0 %v3765
    %4232 = vmatpush1.bf16.msra.mxu0 %v3764
    %4233 = vmatprep.subr.bf16.mxu0 %v3761
    %4234 = vmatpush1.bf16.msra.mxu0 %v3760
    %4235 = vmatprep.subr.bf16.mxu0 %v3757
    %4236 = vmatpush1.bf16.msra.mxu0 %v3756
    %4237 = vmatprep.subr.bf16.mxu0 %v3753
    %4238 = vmatpush1.bf16.msra.mxu0 %v3752
    %4239 = vmatprep.subr.bf16.mxu0 %v3749
    %4240 = vmatpush1.bf16.msra.mxu0 %v3748
    %4241 = vmatprep.subr.bf16.mxu0 %v3745
    %4242 = vmatpush1.bf16.msra.mxu0 %v3744
    %4243 = vmatprep.subr.bf16.mxu0 %v3741
    %4244 = vmatpush1.bf16.msra.mxu0 %v3740
    %4245 = vmatprep.subr.bf16.mxu0 %v3801
    %4246 = vmatpush2.bf16.msra.mxu0 %v3800
    %4247 = vmatprep.subr.bf16.mxu0 %v3797
    %4248 = vmatpush2.bf16.msra.mxu0 %v3796
    %4249 = vmatprep.subr.bf16.mxu0 %v3793
    %4250 = vmatpush2.bf16.msra.mxu0 %v3792
    %4251 = vmatprep.subr.bf16.mxu0 %v3789
    %4252 = vmatpush2.bf16.msra.mxu0 %v3788
    %4253 = vmatprep.subr.bf16.mxu0 %v3785
    %4254 = vmatpush2.bf16.msra.mxu0 %v3784
    %4255 = vmatprep.subr.bf16.mxu0 %v3781
    %4256 = vmatpush2.bf16.msra.mxu0 %v3780
    %4257 = vmatprep.subr.bf16.mxu0 %v3777
    %4258 = vmatpush2.bf16.msra.mxu0 %v3776
    %4259 = vmatprep.subr.bf16.mxu0 %v3773
    %4260 = vmatpush2.bf16.msra.mxu0 %v3772
    %4261 = vmatprep.mubr.bf16.mxu0 %v2625
    %4262 = vmatmul.mubr.bf16.gmra.mxu0 %v2624
    %v4263 = vpop.f32.mrf.mxu0
    %v4264 = vadd.f32 %v4223, %v4263
    %v4265 = vpop.f32.mrf.mxu0
    %v4266 = vadd.f32 %v4225, %v4265
    %v4267 = vpop.f32.mrf.mxu0
    %v4268 = vpop.f32.mrf.mxu0
    %4269 = vdwg.mxu0
    %4270 = vmatprep.subr.bf16.mxu0 %v3833
    %4271 = vmatpush1.bf16.msra.mxu0 %v3832
    %4272 = vmatprep.subr.bf16.mxu0 %v3829
    %4273 = vmatpush1.bf16.msra.mxu0 %v3828
    %4274 = vmatprep.subr.bf16.mxu0 %v3825
    %4275 = vmatpush1.bf16.msra.mxu0 %v3824
    %4276 = vmatprep.subr.bf16.mxu0 %v3821
    %4277 = vmatpush1.bf16.msra.mxu0 %v3820
    %4278 = vmatprep.subr.bf16.mxu0 %v3817
    %4279 = vmatpush1.bf16.msra.mxu0 %v3816
    %4280 = vmatprep.subr.bf16.mxu0 %v3813
    %4281 = vmatpush1.bf16.msra.mxu0 %v3812
    %4282 = vmatprep.subr.bf16.mxu0 %v3809
    %4283 = vmatpush1.bf16.msra.mxu0 %v3808
    %4284 = vmatprep.subr.bf16.mxu0 %v3805
    %4285 = vmatpush1.bf16.msra.mxu0 %v3804
    %4286 = vmatprep.subr.bf16.mxu0 %v3865
    %4287 = vmatpush2.bf16.msra.mxu0 %v3864
    %4288 = vmatprep.subr.bf16.mxu0 %v3861
    %4289 = vmatpush2.bf16.msra.mxu0 %v3860
    %4290 = vmatprep.subr.bf16.mxu0 %v3857
    %4291 = vmatpush2.bf16.msra.mxu0 %v3856
    %4292 = vmatprep.subr.bf16.mxu0 %v3853
    %4293 = vmatpush2.bf16.msra.mxu0 %v3852
    %4294 = vmatprep.subr.bf16.mxu0 %v3849
    %4295 = vmatpush2.bf16.msra.mxu0 %v3848
    %4296 = vmatprep.subr.bf16.mxu0 %v3845
    %4297 = vmatpush2.bf16.msra.mxu0 %v3844
    %4298 = vmatprep.subr.bf16.mxu0 %v3841
    %4299 = vmatpush2.bf16.msra.mxu0 %v3840
    %4300 = vmatprep.subr.bf16.mxu0 %v3837
    %4301 = vmatpush2.bf16.msra.mxu0 %v3836
    %4302 = vmatprep.mubr.bf16.mxu0 %v2627
    %4303 = vmatmul.mubr.bf16.gmra.mxu0 %v2626
    %v4304 = vpop.f32.mrf.mxu0
    %v4305 = vadd.f32 %v4264, %v4304
    %v4306 = vpop.f32.mrf.mxu0
    %v4307 = vadd.f32 %v4266, %v4306
    %v4308 = vpop.f32.mrf.mxu0
    %v4309 = vpop.f32.mrf.mxu0
    %4310 = vdwg.mxu0
    %4311 = vmatprep.subr.bf16.mxu0 %v3897
    %4312 = vmatpush1.bf16.msra.mxu0 %v3896
    %4313 = vmatprep.subr.bf16.mxu0 %v3893
    %4314 = vmatpush1.bf16.msra.mxu0 %v3892
    %4315 = vmatprep.subr.bf16.mxu0 %v3889
    %4316 = vmatpush1.bf16.msra.mxu0 %v3888
    %4317 = vmatprep.subr.bf16.mxu0 %v3885
    %4318 = vmatpush1.bf16.msra.mxu0 %v3884
    %4319 = vmatprep.subr.bf16.mxu0 %v3881
    %4320 = vmatpush1.bf16.msra.mxu0 %v3880
    %4321 = vmatprep.subr.bf16.mxu0 %v3877
    %4322 = vmatpush1.bf16.msra.mxu0 %v3876
    %4323 = vmatprep.subr.bf16.mxu0 %v3873
    %4324 = vmatpush1.bf16.msra.mxu0 %v3872
    %4325 = vmatprep.subr.bf16.mxu0 %v3869
    %4326 = vmatpush1.bf16.msra.mxu0 %v3868
    %4327 = vmatprep.subr.bf16.mxu0 %v3929
    %4328 = vmatpush2.bf16.msra.mxu0 %v3928
    %4329 = vmatprep.subr.bf16.mxu0 %v3925
    %4330 = vmatpush2.bf16.msra.mxu0 %v3924
    %4331 = vmatprep.subr.bf16.mxu0 %v3921
    %4332 = vmatpush2.bf16.msra.mxu0 %v3920
    %4333 = vmatprep.subr.bf16.mxu0 %v3917
    %4334 = vmatpush2.bf16.msra.mxu0 %v3916
    %4335 = vmatprep.subr.bf16.mxu0 %v3913
    %4336 = vmatpush2.bf16.msra.mxu0 %v3912
    %4337 = vmatprep.subr.bf16.mxu0 %v3909
    %4338 = vmatpush2.bf16.msra.mxu0 %v3908
    %4339 = vmatprep.subr.bf16.mxu0 %v3905
    %4340 = vmatpush2.bf16.msra.mxu0 %v3904
    %4341 = vmatprep.subr.bf16.mxu0 %v3901
    %4342 = vmatpush2.bf16.msra.mxu0 %v3900
    %4343 = vmatprep.mubr.bf16.mxu0 %v2629
    %4344 = vmatmul.mubr.bf16.gmra.mxu0 %v2628
    %v4345 = vpop.f32.mrf.mxu0
    %v4346 = vadd.f32 %v4305, %v4345
    %v4347 = vpop.f32.mrf.mxu0
    %v4348 = vadd.f32 %v4307, %v4347
    %v4349 = vpop.f32.mrf.mxu0
    %v4350 = vpop.f32.mrf.mxu0
    %4351 = vdwg.mxu0
    %4352 = vmatprep.subr.bf16.mxu0 %v3707
    %4353 = vmatpush1.bf16.msra.mxu0 %v3706
    %4354 = vmatprep.subr.bf16.mxu0 %v3703
    %4355 = vmatpush1.bf16.msra.mxu0 %v3702
    %4356 = vmatprep.subr.bf16.mxu0 %v3699
    %4357 = vmatpush1.bf16.msra.mxu0 %v3698
    %4358 = vmatprep.subr.bf16.mxu0 %v3695
    %4359 = vmatpush1.bf16.msra.mxu0 %v3694
    %4360 = vmatprep.subr.bf16.mxu0 %v3691
    %4361 = vmatpush1.bf16.msra.mxu0 %v3690
    %4362 = vmatprep.subr.bf16.mxu0 %v3687
    %4363 = vmatpush1.bf16.msra.mxu0 %v3686
    %4364 = vmatprep.subr.bf16.mxu0 %v3683
    %4365 = vmatpush1.bf16.msra.mxu0 %v3682
    %4366 = vmatprep.subr.bf16.mxu0 %v3679
    %4367 = vmatpush1.bf16.msra.mxu0 %v3678
    %4368 = vmatprep.subr.bf16.mxu0 %v3739
    %4369 = vmatpush2.bf16.msra.mxu0 %v3738
    %4370 = vmatprep.subr.bf16.mxu0 %v3735
    %4371 = vmatpush2.bf16.msra.mxu0 %v3734
    %4372 = vmatprep.subr.bf16.mxu0 %v3731
    %4373 = vmatpush2.bf16.msra.mxu0 %v3730
    %4374 = vmatprep.subr.bf16.mxu0 %v3727
    %4375 = vmatpush2.bf16.msra.mxu0 %v3726
    %4376 = vmatprep.subr.bf16.mxu0 %v3723
    %4377 = vmatpush2.bf16.msra.mxu0 %v3722
    %4378 = vmatprep.subr.bf16.mxu0 %v3719
    %4379 = vmatpush2.bf16.msra.mxu0 %v3718
    %4380 = vmatprep.subr.bf16.mxu0 %v3715
    %4381 = vmatpush2.bf16.msra.mxu0 %v3714
    %4382 = vmatprep.subr.bf16.mxu0 %v3711
    %4383 = vmatpush2.bf16.msra.mxu0 %v3710
    %4384 = vmatprep.mubr.bf16.mxu0 %v2623
    %4385 = vmatmul.mubr.bf16.gmra.mxu0 %v2622
    %v4386 = vpop.f32.mrf.mxu0
    %v4387 = vadd.f32 %v2899, %v4386
    %v4388 = vpop.f32.mrf.mxu0
    %v4389 = vadd.f32 %v2903, %v4388
    %v4390 = vpop.f32.mrf.mxu0
    %v4391 = vpop.f32.mrf.mxu0
    %4392 = vdwg.mxu0
    %4393 = vmatprep.subr.bf16.mxu0 %v3771
    %4394 = vmatpush1.bf16.msra.mxu0 %v3770
    %4395 = vmatprep.subr.bf16.mxu0 %v3767
    %4396 = vmatpush1.bf16.msra.mxu0 %v3766
    %4397 = vmatprep.subr.bf16.mxu0 %v3763
    %4398 = vmatpush1.bf16.msra.mxu0 %v3762
    %4399 = vmatprep.subr.bf16.mxu0 %v3759
    %4400 = vmatpush1.bf16.msra.mxu0 %v3758
    %4401 = vmatprep.subr.bf16.mxu0 %v3755
    %4402 = vmatpush1.bf16.msra.mxu0 %v3754
    %4403 = vmatprep.subr.bf16.mxu0 %v3751
    %4404 = vmatpush1.bf16.msra.mxu0 %v3750
    %4405 = vmatprep.subr.bf16.mxu0 %v3747
    %4406 = vmatpush1.bf16.msra.mxu0 %v3746
    %4407 = vmatprep.subr.bf16.mxu0 %v3743
    %4408 = vmatpush1.bf16.msra.mxu0 %v3742
    %4409 = vmatprep.subr.bf16.mxu0 %v3803
    %4410 = vmatpush2.bf16.msra.mxu0 %v3802
    %4411 = vmatprep.subr.bf16.mxu0 %v3799
    %4412 = vmatpush2.bf16.msra.mxu0 %v3798
    %4413 = vmatprep.subr.bf16.mxu0 %v3795
    %4414 = vmatpush2.bf16.msra.mxu0 %v3794
    %4415 = vmatprep.subr.bf16.mxu0 %v3791
    %4416 = vmatpush2.bf16.msra.mxu0 %v3790
    %4417 = vmatprep.subr.bf16.mxu0 %v3787
    %4418 = vmatpush2.bf16.msra.mxu0 %v3786
    %4419 = vmatprep.subr.bf16.mxu0 %v3783
    %4420 = vmatpush2.bf16.msra.mxu0 %v3782
    %4421 = vmatprep.subr.bf16.mxu0 %v3779
    %4422 = vmatpush2.bf16.msra.mxu0 %v3778
    %4423 = vmatprep.subr.bf16.mxu0 %v3775
    %4424 = vmatpush2.bf16.msra.mxu0 %v3774
    %4425 = vmatprep.mubr.bf16.mxu0 %v2625
    %4426 = vmatmul.mubr.bf16.gmra.mxu0 %v2624
    %v4427 = vpop.f32.mrf.mxu0
    %v4428 = vadd.f32 %v4387, %v4427
    %v4429 = vpop.f32.mrf.mxu0
    %v4430 = vadd.f32 %v4389, %v4429
    %v4431 = vpop.f32.mrf.mxu0
    %v4432 = vpop.f32.mrf.mxu0
    %4433 = vdwg.mxu0
    %4434 = vmatprep.subr.bf16.mxu0 %v3835
    %4435 = vmatpush1.bf16.msra.mxu0 %v3834
    %4436 = vmatprep.subr.bf16.mxu0 %v3831
    %4437 = vmatpush1.bf16.msra.mxu0 %v3830
    %4438 = vmatprep.subr.bf16.mxu0 %v3827
    %4439 = vmatpush1.bf16.msra.mxu0 %v3826
    %4440 = vmatprep.subr.bf16.mxu0 %v3823
    %4441 = vmatpush1.bf16.msra.mxu0 %v3822
    %4442 = vmatprep.subr.bf16.mxu0 %v3819
    %4443 = vmatpush1.bf16.msra.mxu0 %v3818
    %4444 = vmatprep.subr.bf16.mxu0 %v3815
    %4445 = vmatpush1.bf16.msra.mxu0 %v3814
    %4446 = vmatprep.subr.bf16.mxu0 %v3811
    %4447 = vmatpush1.bf16.msra.mxu0 %v3810
    %4448 = vmatprep.subr.bf16.mxu0 %v3807
    %4449 = vmatpush1.bf16.msra.mxu0 %v3806
    %4450 = vmatprep.subr.bf16.mxu0 %v3867
    %4451 = vmatpush2.bf16.msra.mxu0 %v3866
    %4452 = vmatprep.subr.bf16.mxu0 %v3863
    %4453 = vmatpush2.bf16.msra.mxu0 %v3862
    %4454 = vmatprep.subr.bf16.mxu0 %v3859
    %4455 = vmatpush2.bf16.msra.mxu0 %v3858
    %4456 = vmatprep.subr.bf16.mxu0 %v3855
    %4457 = vmatpush2.bf16.msra.mxu0 %v3854
    %4458 = vmatprep.subr.bf16.mxu0 %v3851
    %4459 = vmatpush2.bf16.msra.mxu0 %v3850
    %4460 = vmatprep.subr.bf16.mxu0 %v3847
    %4461 = vmatpush2.bf16.msra.mxu0 %v3846
    %4462 = vmatprep.subr.bf16.mxu0 %v3843
    %4463 = vmatpush2.bf16.msra.mxu0 %v3842
    %4464 = vmatprep.subr.bf16.mxu0 %v3839
    %4465 = vmatpush2.bf16.msra.mxu0 %v3838
    %4466 = vmatprep.mubr.bf16.mxu0 %v2627
    %4467 = vmatmul.mubr.bf16.gmra.mxu0 %v2626
    %v4468 = vpop.f32.mrf.mxu0
    %v4469 = vadd.f32 %v4428, %v4468
    %v4470 = vpop.f32.mrf.mxu0
    %v4471 = vadd.f32 %v4430, %v4470
    %v4472 = vpop.f32.mrf.mxu0
    %v4473 = vpop.f32.mrf.mxu0
    %4474 = vdwg.mxu0
    %4475 = vmatprep.subr.bf16.mxu0 %v3899
    %4476 = vmatpush1.bf16.msra.mxu0 %v3898
    %4477 = vmatprep.subr.bf16.mxu0 %v3895
    %4478 = vmatpush1.bf16.msra.mxu0 %v3894
    %4479 = vmatprep.subr.bf16.mxu0 %v3891
    %4480 = vmatpush1.bf16.msra.mxu0 %v3890
    %4481 = vmatprep.subr.bf16.mxu0 %v3887
    %4482 = vmatpush1.bf16.msra.mxu0 %v3886
    %4483 = vmatprep.subr.bf16.mxu0 %v3883
    %4484 = vmatpush1.bf16.msra.mxu0 %v3882
    %4485 = vmatprep.subr.bf16.mxu0 %v3879
    %4486 = vmatpush1.bf16.msra.mxu0 %v3878
    %4487 = vmatprep.subr.bf16.mxu0 %v3875
    %4488 = vmatpush1.bf16.msra.mxu0 %v3874
    %4489 = vmatprep.subr.bf16.mxu0 %v3871
    %4490 = vmatpush1.bf16.msra.mxu0 %v3870
    %4491 = vmatprep.subr.bf16.mxu0 %v3931
    %4492 = vmatpush2.bf16.msra.mxu0 %v3930
    %4493 = vmatprep.subr.bf16.mxu0 %v3927
    %4494 = vmatpush2.bf16.msra.mxu0 %v3926
    %4495 = vmatprep.subr.bf16.mxu0 %v3923
    %4496 = vmatpush2.bf16.msra.mxu0 %v3922
    %4497 = vmatprep.subr.bf16.mxu0 %v3919
    %4498 = vmatpush2.bf16.msra.mxu0 %v3918
    %4499 = vmatprep.subr.bf16.mxu0 %v3915
    %4500 = vmatpush2.bf16.msra.mxu0 %v3914
    %4501 = vmatprep.subr.bf16.mxu0 %v3911
    %4502 = vmatpush2.bf16.msra.mxu0 %v3910
    %4503 = vmatprep.subr.bf16.mxu0 %v3907
    %4504 = vmatpush2.bf16.msra.mxu0 %v3906
    %4505 = vmatprep.subr.bf16.mxu0 %v3903
    %4506 = vmatpush2.bf16.msra.mxu0 %v3902
    %4507 = vmatprep.mubr.bf16.mxu0 %v2629
    %4508 = vmatmul.mubr.bf16.gmra.mxu0 %v2628
    %v4509 = vpop.f32.mrf.mxu0
    %v4510 = vadd.f32 %v4469, %v4509
    %v4511 = vpop.f32.mrf.mxu0
    %v4512 = vadd.f32 %v4471, %v4511
    %v4513 = vpop.f32.mrf.mxu0
    %v4514 = vpop.f32.mrf.mxu0
    %4515 = vdwg.mxu0
    %v4516 = vmax.f32 %v4346, 0.0
    %v4517 = vmax.f32 %v4348, 0.0
    %v4518 = vmax.f32 %v4510, 0.0
    %v4519 = vmax.f32 %v4512, 0.0
    %v4520 = vpack.c.bf16 %v4516, %v4516
    %v4521 = vpack.c.bf16 %v4517, %v4517
    %v4522 = vpack.c.bf16 %v4518, %v4518
    %v4523 = vpack.c.bf16 %v4519, %v4519
    %v4524 = vld [vmem:[#allocation8] sm:$0xff]
    %v4525 = vld [vmem:[#allocation8 + $0x8] sm:$0xff]
    %v4526 = vld [vmem:[#allocation8 + $0x10] sm:$0xff]
    %v4527 = vld [vmem:[#allocation8 + $0x18] sm:$0xff]
    %v4528 = vld [vmem:[#allocation8 + $0x20] sm:$0xff]
    %v4529 = vld [vmem:[#allocation8 + $0x28] sm:$0xff]
    %v4530 = vld [vmem:[#allocation8 + $0x30] sm:$0xff]
    %v4531 = vld [vmem:[#allocation8 + $0x38] sm:$0xff]
    %v4532 = vld [vmem:[#allocation8 + $0x40] sm:$0xff]
    %v4533 = vld [vmem:[#allocation8 + $0x48] sm:$0xff]
    %v4534 = vld [vmem:[#allocation8 + $0x50] sm:$0xff]
    %v4535 = vld [vmem:[#allocation8 + $0x58] sm:$0xff]
    %v4536 = vld [vmem:[#allocation8 + $0x60] sm:$0xff]
    %v4537 = vld [vmem:[#allocation8 + $0x68] sm:$0xff]
    %v4538 = vld [vmem:[#allocation8 + $0x70] sm:$0xff]
    %v4539 = vld [vmem:[#allocation8 + $0x78] sm:$0xff]
    %v4540 = vld [vmem:[#allocation8 + $0x80] sm:$0xff]
    %v4541 = vld [vmem:[#allocation8 + $0x88] sm:$0xff]
    %v4542 = vld [vmem:[#allocation8 + $0x90] sm:$0xff]
    %v4543 = vld [vmem:[#allocation8 + $0x98] sm:$0xff]
    %v4544 = vld [vmem:[#allocation8 + $0xa0] sm:$0xff]
    %v4545 = vld [vmem:[#allocation8 + $0xa8] sm:$0xff]
    %v4546 = vld [vmem:[#allocation8 + $0xb0] sm:$0xff]
    %v4547 = vld [vmem:[#allocation8 + $0xb8] sm:$0xff]
    %v4548 = vld [vmem:[#allocation8 + $0xc0] sm:$0xff]
    %v4549 = vld [vmem:[#allocation8 + $0xc8] sm:$0xff]
    %v4550 = vld [vmem:[#allocation8 + $0xd0] sm:$0xff]
    %v4551 = vld [vmem:[#allocation8 + $0xd8] sm:$0xff]
    %v4552 = vld [vmem:[#allocation8 + $0xe0] sm:$0xff]
    %v4553 = vld [vmem:[#allocation8 + $0xe8] sm:$0xff]
    %v4554 = vld [vmem:[#allocation8 + $0xf0] sm:$0xff]
    %v4555 = vld [vmem:[#allocation8 + $0xf8] sm:$0xff]
    %v4556 = vld [vmem:[#allocation8 + $0x100] sm:$0xff]
    %v4557 = vld [vmem:[#allocation8 + $0x108] sm:$0xff]
    %v4558 = vld [vmem:[#allocation8 + $0x110] sm:$0xff]
    %v4559 = vld [vmem:[#allocation8 + $0x118] sm:$0xff]
    %v4560 = vld [vmem:[#allocation8 + $0x120] sm:$0xff]
    %v4561 = vld [vmem:[#allocation8 + $0x128] sm:$0xff]
    %v4562 = vld [vmem:[#allocation8 + $0x130] sm:$0xff]
    %v4563 = vld [vmem:[#allocation8 + $0x138] sm:$0xff]
    %v4564 = vld [vmem:[#allocation8 + $0x140] sm:$0xff]
    %v4565 = vld [vmem:[#allocation8 + $0x148] sm:$0xff]
    %v4566 = vld [vmem:[#allocation8 + $0x150] sm:$0xff]
    %v4567 = vld [vmem:[#allocation8 + $0x158] sm:$0xff]
    %v4568 = vld [vmem:[#allocation8 + $0x160] sm:$0xff]
    %v4569 = vld [vmem:[#allocation8 + $0x168] sm:$0xff]
    %v4570 = vld [vmem:[#allocation8 + $0x170] sm:$0xff]
    %v4571 = vld [vmem:[#allocation8 + $0x178] sm:$0xff]
    %v4572 = vld [vmem:[#allocation8 + $0x180] sm:$0xff]
    %v4573 = vld [vmem:[#allocation8 + $0x188] sm:$0xff]
    %v4574 = vld [vmem:[#allocation8 + $0x190] sm:$0xff]
    %v4575 = vld [vmem:[#allocation8 + $0x198] sm:$0xff]
    %v4576 = vld [vmem:[#allocation8 + $0x1a0] sm:$0xff]
    %v4577 = vld [vmem:[#allocation8 + $0x1a8] sm:$0xff]
    %v4578 = vld [vmem:[#allocation8 + $0x1b0] sm:$0xff]
    %v4579 = vld [vmem:[#allocation8 + $0x1b8] sm:$0xff]
    %v4580 = vld [vmem:[#allocation8 + $0x1c0] sm:$0xff]
    %v4581 = vld [vmem:[#allocation8 + $0x1c8] sm:$0xff]
    %v4582 = vld [vmem:[#allocation8 + $0x1d0] sm:$0xff]
    %v4583 = vld [vmem:[#allocation8 + $0x1d8] sm:$0xff]
    %v4584 = vld [vmem:[#allocation8 + $0x1e0] sm:$0xff]
    %v4585 = vld [vmem:[#allocation8 + $0x1e8] sm:$0xff]
    %v4586 = vld [vmem:[#allocation8 + $0x1f0] sm:$0xff]
    %v4587 = vld [vmem:[#allocation8 + $0x1f8] sm:$0xff]
    %v4588 = vld [vmem:[%s10] sm:$0x3]
    %v4590 = vlaneseq
    %v4591 = vshrl.u32 %v4590, 7
    %v4592 = vsub.s32 0, %v4591
    %v4593 = vrot.slane %v4588, %v4592
    %v4594 = vlaneseq
    %v4595 = vshrl.u32 %v4594, 7
    %v4596 = vsub.s32 1, %v4595
    %v4597 = vrot.slane %v4588, %v4596
    %v4664 = vunpack.c.l.b16 %v4524
    %v4665 = vunpack.c.h.b16 %v4524
    %v4666 = vunpack.c.l.b16 %v4525
    %v4667 = vunpack.c.h.b16 %v4525
    %v4668 = vunpack.c.l.b16 %v4526
    %v4669 = vunpack.c.h.b16 %v4526
    %v4670 = vunpack.c.l.b16 %v4527
    %v4671 = vunpack.c.h.b16 %v4527
    %v4672 = vunpack.c.l.b16 %v4528
    %v4673 = vunpack.c.h.b16 %v4528
    %v4674 = vunpack.c.l.b16 %v4529
    %v4675 = vunpack.c.h.b16 %v4529
    %v4676 = vunpack.c.l.b16 %v4530
    %v4677 = vunpack.c.h.b16 %v4530
    %v4678 = vunpack.c.l.b16 %v4531
    %v4679 = vunpack.c.h.b16 %v4531
    %v4680 = vunpack.c.l.b16 %v4532
    %v4681 = vunpack.c.h.b16 %v4532
    %v4682 = vunpack.c.l.b16 %v4533
    %v4683 = vunpack.c.h.b16 %v4533
    %v4684 = vunpack.c.l.b16 %v4534
    %v4685 = vunpack.c.h.b16 %v4534
    %v4686 = vunpack.c.l.b16 %v4535
    %v4687 = vunpack.c.h.b16 %v4535
    %v4688 = vunpack.c.l.b16 %v4536
    %v4689 = vunpack.c.h.b16 %v4536
    %v4690 = vunpack.c.l.b16 %v4537
    %v4691 = vunpack.c.h.b16 %v4537
    %v4692 = vunpack.c.l.b16 %v4538
    %v4693 = vunpack.c.h.b16 %v4538
    %v4694 = vunpack.c.l.b16 %v4539
    %v4695 = vunpack.c.h.b16 %v4539
    %v4696 = vunpack.c.l.b16 %v4540
    %v4697 = vunpack.c.h.b16 %v4540
    %v4698 = vunpack.c.l.b16 %v4541
    %v4699 = vunpack.c.h.b16 %v4541
    %v4700 = vunpack.c.l.b16 %v4542
    %v4701 = vunpack.c.h.b16 %v4542
    %v4702 = vunpack.c.l.b16 %v4543
    %v4703 = vunpack.c.h.b16 %v4543
    %v4704 = vunpack.c.l.b16 %v4544
    %v4705 = vunpack.c.h.b16 %v4544
    %v4706 = vunpack.c.l.b16 %v4545
    %v4707 = vunpack.c.h.b16 %v4545
    %v4708 = vunpack.c.l.b16 %v4546
    %v4709 = vunpack.c.h.b16 %v4546
    %v4710 = vunpack.c.l.b16 %v4547
    %v4711 = vunpack.c.h.b16 %v4547
    %v4712 = vunpack.c.l.b16 %v4548
    %v4713 = vunpack.c.h.b16 %v4548
    %v4714 = vunpack.c.l.b16 %v4549
    %v4715 = vunpack.c.h.b16 %v4549
    %v4716 = vunpack.c.l.b16 %v4550
    %v4717 = vunpack.c.h.b16 %v4550
    %v4718 = vunpack.c.l.b16 %v4551
    %v4719 = vunpack.c.h.b16 %v4551
    %v4720 = vunpack.c.l.b16 %v4552
    %v4721 = vunpack.c.h.b16 %v4552
    %v4722 = vunpack.c.l.b16 %v4553
    %v4723 = vunpack.c.h.b16 %v4553
    %v4724 = vunpack.c.l.b16 %v4554
    %v4725 = vunpack.c.h.b16 %v4554
    %v4726 = vunpack.c.l.b16 %v4555
    %v4727 = vunpack.c.h.b16 %v4555
    %v4728 = vunpack.c.l.b16 %v4556
    %v4729 = vunpack.c.h.b16 %v4556
    %v4730 = vunpack.c.l.b16 %v4557
    %v4731 = vunpack.c.h.b16 %v4557
    %v4732 = vunpack.c.l.b16 %v4558
    %v4733 = vunpack.c.h.b16 %v4558
    %v4734 = vunpack.c.l.b16 %v4559
    %v4735 = vunpack.c.h.b16 %v4559
    %v4736 = vunpack.c.l.b16 %v4560
    %v4737 = vunpack.c.h.b16 %v4560
    %v4738 = vunpack.c.l.b16 %v4561
    %v4739 = vunpack.c.h.b16 %v4561
    %v4740 = vunpack.c.l.b16 %v4562
    %v4741 = vunpack.c.h.b16 %v4562
    %v4742 = vunpack.c.l.b16 %v4563
    %v4743 = vunpack.c.h.b16 %v4563
    %v4744 = vunpack.c.l.b16 %v4564
    %v4745 = vunpack.c.h.b16 %v4564
    %v4746 = vunpack.c.l.b16 %v4565
    %v4747 = vunpack.c.h.b16 %v4565
    %v4748 = vunpack.c.l.b16 %v4566
    %v4749 = vunpack.c.h.b16 %v4566
    %v4750 = vunpack.c.l.b16 %v4567
    %v4751 = vunpack.c.h.b16 %v4567
    %v4752 = vunpack.c.l.b16 %v4568
    %v4753 = vunpack.c.h.b16 %v4568
    %v4754 = vunpack.c.l.b16 %v4569
    %v4755 = vunpack.c.h.b16 %v4569
    %v4756 = vunpack.c.l.b16 %v4570
    %v4757 = vunpack.c.h.b16 %v4570
    %v4758 = vunpack.c.l.b16 %v4571
    %v4759 = vunpack.c.h.b16 %v4571
    %v4760 = vunpack.c.l.b16 %v4572
    %v4761 = vunpack.c.h.b16 %v4572
    %v4762 = vunpack.c.l.b16 %v4573
    %v4763 = vunpack.c.h.b16 %v4573
    %v4764 = vunpack.c.l.b16 %v4574
    %v4765 = vunpack.c.h.b16 %v4574
    %v4766 = vunpack.c.l.b16 %v4575
    %v4767 = vunpack.c.h.b16 %v4575
    %v4768 = vunpack.c.l.b16 %v4576
    %v4769 = vunpack.c.h.b16 %v4576
    %v4770 = vunpack.c.l.b16 %v4577
    %v4771 = vunpack.c.h.b16 %v4577
    %v4772 = vunpack.c.l.b16 %v4578
    %v4773 = vunpack.c.h.b16 %v4578
    %v4774 = vunpack.c.l.b16 %v4579
    %v4775 = vunpack.c.h.b16 %v4579
    %v4776 = vunpack.c.l.b16 %v4580
    %v4777 = vunpack.c.h.b16 %v4580
    %v4778 = vunpack.c.l.b16 %v4581
    %v4779 = vunpack.c.h.b16 %v4581
    %v4780 = vunpack.c.l.b16 %v4582
    %v4781 = vunpack.c.h.b16 %v4582
    %v4782 = vunpack.c.l.b16 %v4583
    %v4783 = vunpack.c.h.b16 %v4583
    %v4784 = vunpack.c.l.b16 %v4584
    %v4785 = vunpack.c.h.b16 %v4584
    %v4786 = vunpack.c.l.b16 %v4585
    %v4787 = vunpack.c.h.b16 %v4585
    %v4788 = vunpack.c.l.b16 %v4586
    %v4789 = vunpack.c.h.b16 %v4586
    %v4790 = vunpack.c.l.b16 %v4587
    %v4791 = vunpack.c.h.b16 %v4587
    %v4792 = vpack.c.b16 %v4666, %v4664
    %v4793 = vpack.c.b16 %v4667, %v4665
    %v4794 = vpack.c.b16 %v4670, %v4668
    %v4795 = vpack.c.b16 %v4671, %v4669
    %v4796 = vpack.c.b16 %v4674, %v4672
    %v4797 = vpack.c.b16 %v4675, %v4673
    %v4798 = vpack.c.b16 %v4678, %v4676
    %v4799 = vpack.c.b16 %v4679, %v4677
    %v4800 = vpack.c.b16 %v4682, %v4680
    %v4801 = vpack.c.b16 %v4683, %v4681
    %v4802 = vpack.c.b16 %v4686, %v4684
    %v4803 = vpack.c.b16 %v4687, %v4685
    %v4804 = vpack.c.b16 %v4690, %v4688
    %v4805 = vpack.c.b16 %v4691, %v4689
    %v4806 = vpack.c.b16 %v4694, %v4692
    %v4807 = vpack.c.b16 %v4695, %v4693
    %v4808 = vpack.c.b16 %v4698, %v4696
    %v4809 = vpack.c.b16 %v4699, %v4697
    %v4810 = vpack.c.b16 %v4702, %v4700
    %v4811 = vpack.c.b16 %v4703, %v4701
    %v4812 = vpack.c.b16 %v4706, %v4704
    %v4813 = vpack.c.b16 %v4707, %v4705
    %v4814 = vpack.c.b16 %v4710, %v4708
    %v4815 = vpack.c.b16 %v4711, %v4709
    %v4816 = vpack.c.b16 %v4714, %v4712
    %v4817 = vpack.c.b16 %v4715, %v4713
    %v4818 = vpack.c.b16 %v4718, %v4716
    %v4819 = vpack.c.b16 %v4719, %v4717
    %v4820 = vpack.c.b16 %v4722, %v4720
    %v4821 = vpack.c.b16 %v4723, %v4721
    %v4822 = vpack.c.b16 %v4726, %v4724
    %v4823 = vpack.c.b16 %v4727, %v4725
    %v4824 = vpack.c.b16 %v4730, %v4728
    %v4825 = vpack.c.b16 %v4731, %v4729
    %v4826 = vpack.c.b16 %v4734, %v4732
    %v4827 = vpack.c.b16 %v4735, %v4733
    %v4828 = vpack.c.b16 %v4738, %v4736
    %v4829 = vpack.c.b16 %v4739, %v4737
    %v4830 = vpack.c.b16 %v4742, %v4740
    %v4831 = vpack.c.b16 %v4743, %v4741
    %v4832 = vpack.c.b16 %v4746, %v4744
    %v4833 = vpack.c.b16 %v4747, %v4745
    %v4834 = vpack.c.b16 %v4750, %v4748
    %v4835 = vpack.c.b16 %v4751, %v4749
    %v4836 = vpack.c.b16 %v4754, %v4752
    %v4837 = vpack.c.b16 %v4755, %v4753
    %v4838 = vpack.c.b16 %v4758, %v4756
    %v4839 = vpack.c.b16 %v4759, %v4757
    %v4840 = vpack.c.b16 %v4762, %v4760
    %v4841 = vpack.c.b16 %v4763, %v4761
    %v4842 = vpack.c.b16 %v4766, %v4764
    %v4843 = vpack.c.b16 %v4767, %v4765
    %v4844 = vpack.c.b16 %v4770, %v4768
    %v4845 = vpack.c.b16 %v4771, %v4769
    %v4846 = vpack.c.b16 %v4774, %v4772
    %v4847 = vpack.c.b16 %v4775, %v4773
    %v4848 = vpack.c.b16 %v4778, %v4776
    %v4849 = vpack.c.b16 %v4779, %v4777
    %v4850 = vpack.c.b16 %v4782, %v4780
    %v4851 = vpack.c.b16 %v4783, %v4781
    %v4852 = vpack.c.b16 %v4786, %v4784
    %v4853 = vpack.c.b16 %v4787, %v4785
    %v4854 = vpack.c.b16 %v4790, %v4788
    %v4855 = vpack.c.b16 %v4791, %v4789
    %4920 = vmatprep.subr.bf16.mxu0 %v4807
    %4921 = vmatpush1.bf16.msra.mxu0 %v4806
    %4922 = vmatprep.subr.bf16.mxu0 %v4805
    %4923 = vmatpush1.bf16.msra.mxu0 %v4804
    %4924 = vmatprep.subr.bf16.mxu0 %v4803
    %4925 = vmatpush1.bf16.msra.mxu0 %v4802
    %4926 = vmatprep.subr.bf16.mxu0 %v4801
    %4927 = vmatpush1.bf16.msra.mxu0 %v4800
    %4928 = vmatprep.subr.bf16.mxu0 %v4799
    %4929 = vmatpush1.bf16.msra.mxu0 %v4798
    %4930 = vmatprep.subr.bf16.mxu0 %v4797
    %4931 = vmatpush1.bf16.msra.mxu0 %v4796
    %4932 = vmatprep.subr.bf16.mxu0 %v4795
    %4933 = vmatpush1.bf16.msra.mxu0 %v4794
    %4934 = vmatprep.subr.bf16.mxu0 %v4793
    %4935 = vmatpush1.bf16.msra.mxu0 %v4792
    %4936 = vmatprep.subr.bf16.mxu0 %v4823
    %4937 = vmatpush2.bf16.msra.mxu0 %v4822
    %4938 = vmatprep.subr.bf16.mxu0 %v4821
    %4939 = vmatpush2.bf16.msra.mxu0 %v4820
    %4940 = vmatprep.subr.bf16.mxu0 %v4819
    %4941 = vmatpush2.bf16.msra.mxu0 %v4818
    %4942 = vmatprep.subr.bf16.mxu0 %v4817
    %4943 = vmatpush2.bf16.msra.mxu0 %v4816
    %4944 = vmatprep.subr.bf16.mxu0 %v4815
    %4945 = vmatpush2.bf16.msra.mxu0 %v4814
    %4946 = vmatprep.subr.bf16.mxu0 %v4813
    %4947 = vmatpush2.bf16.msra.mxu0 %v4812
    %4948 = vmatprep.subr.bf16.mxu0 %v4811
    %4949 = vmatpush2.bf16.msra.mxu0 %v4810
    %4950 = vmatprep.subr.bf16.mxu0 %v4809
    %4951 = vmatpush2.bf16.msra.mxu0 %v4808
    %4952 = vmatprep.mubr.bf16.mxu0 %v4521
    %4953 = vmatmul.mubr.bf16.gmra.mxu0 %v4520
    %v4954 = vpop.f32.mrf.mxu0
    %v4955 = vadd.f32 %v4593, %v4954
    %v4956 = vpop.f32.mrf.mxu0
    %v4957 = vadd.f32 %v4597, %v4956
    %v4958 = vpop.f32.mrf.mxu0
    %v4959 = vpop.f32.mrf.mxu0
    %4960 = vdwg.mxu0
    %4961 = vmatprep.subr.bf16.mxu0 %v4839
    %4962 = vmatpush1.bf16.msra.mxu0 %v4838
    %4963 = vmatprep.subr.bf16.mxu0 %v4837
    %4964 = vmatpush1.bf16.msra.mxu0 %v4836
    %4965 = vmatprep.subr.bf16.mxu0 %v4835
    %4966 = vmatpush1.bf16.msra.mxu0 %v4834
    %4967 = vmatprep.subr.bf16.mxu0 %v4833
    %4968 = vmatpush1.bf16.msra.mxu0 %v4832
    %4969 = vmatprep.subr.bf16.mxu0 %v4831
    %4970 = vmatpush1.bf16.msra.mxu0 %v4830
    %4971 = vmatprep.subr.bf16.mxu0 %v4829
    %4972 = vmatpush1.bf16.msra.mxu0 %v4828
    %4973 = vmatprep.subr.bf16.mxu0 %v4827
    %4974 = vmatpush1.bf16.msra.mxu0 %v4826
    %4975 = vmatprep.subr.bf16.mxu0 %v4825
    %4976 = vmatpush1.bf16.msra.mxu0 %v4824
    %4977 = vmatprep.subr.bf16.mxu0 %v4855
    %4978 = vmatpush2.bf16.msra.mxu0 %v4854
    %4979 = vmatprep.subr.bf16.mxu0 %v4853
    %4980 = vmatpush2.bf16.msra.mxu0 %v4852
    %4981 = vmatprep.subr.bf16.mxu0 %v4851
    %4982 = vmatpush2.bf16.msra.mxu0 %v4850
    %4983 = vmatprep.subr.bf16.mxu0 %v4849
    %4984 = vmatpush2.bf16.msra.mxu0 %v4848
    %4985 = vmatprep.subr.bf16.mxu0 %v4847
    %4986 = vmatpush2.bf16.msra.mxu0 %v4846
    %4987 = vmatprep.subr.bf16.mxu0 %v4845
    %4988 = vmatpush2.bf16.msra.mxu0 %v4844
    %4989 = vmatprep.subr.bf16.mxu0 %v4843
    %4990 = vmatpush2.bf16.msra.mxu0 %v4842
    %4991 = vmatprep.subr.bf16.mxu0 %v4841
    %4992 = vmatpush2.bf16.msra.mxu0 %v4840
    %4993 = vmatprep.mubr.bf16.mxu0 %v4523
    %4994 = vmatmul.mubr.bf16.gmra.mxu0 %v4522
    %v4995 = vpop.f32.mrf.mxu0
    %v4996 = vadd.f32 %v4955, %v4995
    %v4997 = vpop.f32.mrf.mxu0
    %v4998 = vadd.f32 %v4957, %v4997
    %v4999 = vpop.f32.mrf.mxu0
    %v5000 = vpop.f32.mrf.mxu0
    %5001 = vdwg.mxu0
    %v5002 = vmax.f32 %v4996, 0.0
    %v5003 = vmax.f32 %v4998, 0.0
    %v5004 = vpack.c.bf16 %v5002, %v5002
    %v5005 = vpack.c.bf16 %v5003, %v5003
    %v5006 = vld [vmem:[%s11] sm:$0xf]
    %v5007 = vld [vmem:[%s11 + $0x4] sm:$0xf]
    %v5008 = vld [vmem:[%s11 + $0x8] sm:$0xf]
    %v5009 = vld [vmem:[%s11 + $0xc] sm:$0xf]
    %v5010 = vld [vmem:[%s11 + $0x10] sm:$0xf]
    %v5011 = vld [vmem:[%s11 + $0x14] sm:$0xf]
    %v5012 = vld [vmem:[%s11 + $0x18] sm:$0xf]
    %v5013 = vld [vmem:[%s11 + $0x1c] sm:$0xf]
    %v5014 = vld [vmem:[%s11 + $0x20] sm:$0xf]
    %v5015 = vld [vmem:[%s11 + $0x24] sm:$0xf]
    %v5016 = vld [vmem:[%s11 + $0x28] sm:$0xf]
    %v5017 = vld [vmem:[%s11 + $0x2c] sm:$0xf]
    %v5018 = vld [vmem:[%s11 + $0x30] sm:$0xf]
    %v5019 = vld [vmem:[%s11 + $0x34] sm:$0xf]
    %v5020 = vld [vmem:[%s11 + $0x38] sm:$0xf]
    %v5021 = vld [vmem:[%s11 + $0x3c] sm:$0xf]
    %v5022 = vld [vmem:[%s11 + $0x40] sm:$0xf]
    %v5023 = vld [vmem:[%s11 + $0x44] sm:$0xf]
    %v5024 = vld [vmem:[%s11 + $0x48] sm:$0xf]
    %v5025 = vld [vmem:[%s11 + $0x4c] sm:$0xf]
    %v5026 = vld [vmem:[%s11 + $0x50] sm:$0xf]
    %v5027 = vld [vmem:[%s11 + $0x54] sm:$0xf]
    %v5028 = vld [vmem:[%s11 + $0x58] sm:$0xf]
    %v5029 = vld [vmem:[%s11 + $0x5c] sm:$0xf]
    %v5030 = vld [vmem:[%s11 + $0x60] sm:$0xf]
    %v5031 = vld [vmem:[%s11 + $0x64] sm:$0xf]
    %v5032 = vld [vmem:[%s11 + $0x68] sm:$0xf]
    %v5033 = vld [vmem:[%s11 + $0x6c] sm:$0xf]
    %v5034 = vld [vmem:[%s11 + $0x70] sm:$0xf]
    %v5035 = vld [vmem:[%s11 + $0x74] sm:$0xf]
    %v5036 = vld [vmem:[%s11 + $0x78] sm:$0xf]
    %v5037 = vld [vmem:[%s11 + $0x7c] sm:$0xf]
    %v5038 = vld [vmem:[%s12] sm:$0x1]
    %v5040 = vlaneseq
    %v5041 = vshrl.u32 %v5040, 7
    %v5042 = vsub.s32 0, %v5041
    %v5043 = vrot.slane %v5038, %v5042
    %v5077 = vunpack.c.l.b16 %v5006
    %v5078 = vunpack.c.l.b16 %v5007
    %v5079 = vunpack.c.l.b16 %v5008
    %v5080 = vunpack.c.l.b16 %v5009
    %v5081 = vunpack.c.l.b16 %v5010
    %v5082 = vunpack.c.l.b16 %v5011
    %v5083 = vunpack.c.l.b16 %v5012
    %v5084 = vunpack.c.l.b16 %v5013
    %v5085 = vunpack.c.l.b16 %v5014
    %v5086 = vunpack.c.l.b16 %v5015
    %v5087 = vunpack.c.l.b16 %v5016
    %v5088 = vunpack.c.l.b16 %v5017
    %v5089 = vunpack.c.l.b16 %v5018
    %v5090 = vunpack.c.l.b16 %v5019
    %v5091 = vunpack.c.l.b16 %v5020
    %v5092 = vunpack.c.l.b16 %v5021
    %v5093 = vunpack.c.l.b16 %v5022
    %v5094 = vunpack.c.l.b16 %v5023
    %v5095 = vunpack.c.l.b16 %v5024
    %v5096 = vunpack.c.l.b16 %v5025
    %v5097 = vunpack.c.l.b16 %v5026
    %v5098 = vunpack.c.l.b16 %v5027
    %v5099 = vunpack.c.l.b16 %v5028
    %v5100 = vunpack.c.l.b16 %v5029
    %v5101 = vunpack.c.l.b16 %v5030
    %v5102 = vunpack.c.l.b16 %v5031
    %v5103 = vunpack.c.l.b16 %v5032
    %v5104 = vunpack.c.l.b16 %v5033
    %v5105 = vunpack.c.l.b16 %v5034
    %v5106 = vunpack.c.l.b16 %v5035
    %v5107 = vunpack.c.l.b16 %v5036
    %v5108 = vunpack.c.l.b16 %v5037
    %v5109 = vpack.c.b16 %v5078, %v5077
    %v5110 = vpack.c.b16 %v5080, %v5079
    %v5111 = vpack.c.b16 %v5082, %v5081
    %v5112 = vpack.c.b16 %v5084, %v5083
    %v5113 = vpack.c.b16 %v5086, %v5085
    %v5114 = vpack.c.b16 %v5088, %v5087
    %v5115 = vpack.c.b16 %v5090, %v5089
    %v5116 = vpack.c.b16 %v5092, %v5091
    %v5117 = vpack.c.b16 %v5094, %v5093
    %v5118 = vpack.c.b16 %v5096, %v5095
    %v5119 = vpack.c.b16 %v5098, %v5097
    %v5120 = vpack.c.b16 %v5100, %v5099
    %v5121 = vpack.c.b16 %v5102, %v5101
    %v5122 = vpack.c.b16 %v5104, %v5103
    %v5123 = vpack.c.b16 %v5106, %v5105
    %v5124 = vpack.c.b16 %v5108, %v5107
    %5141 = vmatprep.subr.bf16.mxu0 0
    %5142 = vmatpush1.bf16.msra.mxu0 %v5116
    %5143 = vmatprep.subr.bf16.mxu0 0
    %5144 = vmatpush1.bf16.msra.mxu0 %v5115
    %5145 = vmatprep.subr.bf16.mxu0 0
    %5146 = vmatpush1.bf16.msra.mxu0 %v5114
    %5147 = vmatprep.subr.bf16.mxu0 0
    %5148 = vmatpush1.bf16.msra.mxu0 %v5113
    %5149 = vmatprep.subr.bf16.mxu0 0
    %5150 = vmatpush1.bf16.msra.mxu0 %v5112
    %5151 = vmatprep.subr.bf16.mxu0 0
    %5152 = vmatpush1.bf16.msra.mxu0 %v5111
    %5153 = vmatprep.subr.bf16.mxu0 0
    %5154 = vmatpush1.bf16.msra.mxu0 %v5110
    %5155 = vmatprep.subr.bf16.mxu0 0
    %5156 = vmatpush1.bf16.msra.mxu0 %v5109
    %5157 = vmatprep.subr.bf16.mxu0 0
    %5158 = vmatpush2.bf16.msra.mxu0 %v5124
    %5159 = vmatprep.subr.bf16.mxu0 0
    %5160 = vmatpush2.bf16.msra.mxu0 %v5123
    %5161 = vmatprep.subr.bf16.mxu0 0
    %5162 = vmatpush2.bf16.msra.mxu0 %v5122
    %5163 = vmatprep.subr.bf16.mxu0 0
    %5164 = vmatpush2.bf16.msra.mxu0 %v5121
    %5165 = vmatprep.subr.bf16.mxu0 0
    %5166 = vmatpush2.bf16.msra.mxu0 %v5120
    %5167 = vmatprep.subr.bf16.mxu0 0
    %5168 = vmatpush2.bf16.msra.mxu0 %v5119
    %5169 = vmatprep.subr.bf16.mxu0 0
    %5170 = vmatpush2.bf16.msra.mxu0 %v5118
    %5171 = vmatprep.subr.bf16.mxu0 0
    %5172 = vmatpush2.bf16.msra.mxu0 %v5117
    %5173 = vmatprep.mubr.bf16.mxu0 %v5005
    %5174 = vmatmul.mubr.bf16.gmra.mxu0 %v5004
    %v5175 = vpop.f32.mrf.mxu0
    %v5176 = vadd.f32 %v5043, %v5175
    %v5177 = vpop.f32.mrf.mxu0
    %v5178 = vpop.f32.mrf.mxu0
    %v5179 = vpop.f32.mrf.mxu0
    %5180 = vdwg.mxu0
    %vm5181 = vcmask 64512
    %5182 = vst.msk [vmem:[#allocation10] sm:$0xff] %vm5181, %v5176
    // Predicated region
    $region70: #{tpu_custom_call.1} parent=1 // pred_check
      _
    $region71: #{tpu_custom_call.1} parent=1 // pred_check_branch
      %5184 = sbr.rel (0) target = $region73
    $region72: #{tpu_custom_call.1} parent=1 // pred_region
      %s5186 = ssub.s32 128, 128
      %5187 = vsyncadd [#allocation4], %s5186
      %s5189 = sshll.u32 [#allocation10], 4
      %s5190 = int_to_ptr.vmem [resolvable:$true] %s5189
      %5192 = dma.vmem_to_hbm [thread:$0]  %s5190, 128, %s13, [#allocation4]
    $region73: #{tpu_custom_call.1} parent=1 // pred_fallthru
      _
    // Predicated region
    $region74: #{tpu_custom_call.1} parent=1 // pred_check
      _
    $region75: #{tpu_custom_call.1} parent=1 // pred_check_branch
      %5194 = sbr.rel (0) target = $region77
    $region76: #{tpu_custom_call.1} parent=1 // pred_region
      %5195 = dma.done [#allocation4], 128
    $region77: #{tpu_custom_call.1} parent=1 // pred_fallthru
      _
    %5196 = vsyncpa [#allocation3], 1
    %5197 = vsyncpa [#allocation6], 1
    %5198 = vsyncpa [#allocation9], 1
    %5199 = vsyncpa [#allocation4], 1

</llo_original>
